<compile_context>
chip_gen: v5e
topology: v5e:2x2
jax: 0.10.0
libtpu: 0.0.40
codegen_flags: <defaults>
</compile_context>

<pallas_src>
import jax
import jax.numpy as jnp
from jax.experimental import pallas as pl
from jax.experimental.pallas import tpu as pltpu

EPS = 1e-5
CP = 128          # padded (lane-dense) channel count


def _shift2d(x, oy, ox):
    """y[n, i, j, :] = x[n, i + oy, j + ox, :], zero outside the image."""
    N, H, W, C = x.shape
    z_row = jnp.zeros((N, 1, W, C), x.dtype)
    if oy == -1:
        x = jnp.concatenate([z_row, x[:, :H - 1]], axis=1)
    elif oy == 1:
        x = jnp.concatenate([x[:, 1:], z_row], axis=1)
    z_col = jnp.zeros((N, H, 1, C), x.dtype)
    if ox == -1:
        x = jnp.concatenate([z_col, x[:, :, :W - 1]], axis=2)
    elif ox == 1:
        x = jnp.concatenate([x[:, :, 1:], z_col], axis=2)
    return x


def _conv3x3(x, w_mat):
    """3x3 'same' conv via im2col: a single MXU matmul.
    x: (N,H,W,Cin) value; w_mat: (9*Cin, CP).  Returns (N*H*W, CP) f32."""
    N, H, W, C = x.shape
    taps = [_shift2d(x, oy, ox).reshape(N * H * W, C)
            for oy in (-1, 0, 1) for ox in (-1, 0, 1)]
    patch = jnp.concatenate(taps, axis=-1)                     # (NHW, 9*Cin)
    return jnp.dot(patch, w_mat, preferred_element_type=jnp.float32)


def _bn_train(y, gamma, beta, nhw):
    """Training-mode batchnorm over rows, single pass (sum & sum-of-squares)."""
    inv_n = 1.0 / nhw
    mu = jnp.sum(y, axis=0, keepdims=True) * inv_n
    ex2 = jnp.sum(y * y, axis=0, keepdims=True) * inv_n
    var = ex2 - mu * mu
    scale = gamma * jax.lax.rsqrt(var + EPS)
    return y * scale + (beta - mu * scale)


def resnet1_kernel(x_ref, w1_ref, g1_ref, be1_ref,
                   w2_ref, g2_ref, be2_ref, out_ref):
    N, H, W, C = x_ref.shape
    NHW = N * H * W

    x = x_ref[...]

    # conv1 + BN1 + relu  (conv bias omitted: cancelled by BN mean subtraction)
    y1 = _conv3x3(x, w1_ref[...])                              # (NHW, CP)
    h1 = jnp.maximum(_bn_train(y1, g1_ref[...], be1_ref[...], NHW), 0.0)

    # conv2 + BN2 (real channels are the first C lanes; padded lanes stay 0)
    h1c = h1[:, :C].reshape(N, H, W, C)
    y2 = _conv3x3(h1c, w2_ref[...])
    h2 = _bn_train(y2, g2_ref[...], be2_ref[...], NHW)

    # residual + relu; lane-dense (CP-wide) unmasked store, wrapper slices to C
    ident = jnp.concatenate(
        [x.reshape(NHW, C), jnp.zeros((NHW, CP - C), jnp.float32)], axis=-1)
    out = jnp.maximum(h2 + ident, 0.0)
    out_ref[...] = out.reshape(N, H, W, CP)


def resnet1_forward(x, params):
    """x: (N, H, W, C) float32, NHWC.  Requires in_channels == out_channels."""
    N, H, W, C = x.shape

    def w_mat(w):           # (3,3,Cin,Cout) HWIO -> (9*Cin, CP), zero-padded
        m = w.reshape(9 * C, -1).astype(jnp.float32)
        return jnp.pad(m, ((0, 0), (0, CP - m.shape[1])))

    def row(v, fill):       # (Cout,) -> (1, CP)
        v = v.reshape(1, -1).astype(jnp.float32)
        return jnp.pad(v, ((0, 0), (0, CP - v.shape[1])), constant_values=fill)

    args = (x.astype(jnp.float32),
            w_mat(params["w1"]), row(params["g1"], 1.0), row(params["be1"], 0.0),
            w_mat(params["w2"]), row(params["g2"], 1.0), row(params["be2"], 0.0))

    vmem = pl.BlockSpec(memory_space=pltpu.MemorySpace.VMEM)
    out_p = pl.pallas_call(
        resnet1_kernel,
        out_shape=jax.ShapeDtypeStruct((N, H, W, CP), jnp.float32),
        in_specs=[vmem] * len(args),
        out_specs=vmem,
    )(*args)
    # TODO(synk): for large N*H*W, switch to a gridded two-pass structure
    # (pass 1: conv1 + global per-channel sum/sumsq accumulators; pass 2:
    #  normalize + conv2 + BN2 + residual) with a 'parallel' batch/row axis for
    #  v7x megacore and tiles sized to the 64 MiB v7x VMEM budget.
    return out_p[..., :C]


# ----------------------------- pure-JAX reference -----------------------------
def _conv3x3_ref(x, w, b):
    y = jax.lax.conv_general_dilated(
        x, w, window_strides=(1, 1), padding="SAME",
        dimension_numbers=("NHWC", "HWIO", "NHWC"),
        precision=jax.lax.Precision.HIGHEST)
    return y + b.reshape(1, 1, 1, -1)


def _bn_ref(x, g, be):
    mu = jnp.mean(x, axis=(0, 1, 2), keepdims=True)
    var = jnp.mean((x - mu) ** 2, axis=(0, 1, 2), keepdims=True)
    return (x - mu) * jax.lax.rsqrt(var + EPS) * g.reshape(1, 1, 1, -1) \
        + be.reshape(1, 1, 1, -1)


def resnet1_reference(x, p):
    h = _conv3x3_ref(x, p["w1"], p["b1"])
    h = jnp.maximum(_bn_ref(h, p["g1"], p["be1"]), 0.0)
    h = _conv3x3_ref(h, p["w2"], p["b2"])
    h = _bn_ref(h, p["g2"], p["be2"])
    return jnp.maximum(h + x, 0.0)


if __name__ == "__main__":
    N, H, W, C = 2, 16, 16, 8      # in_channel == out_channel (residual add)

    key = jax.random.PRNGKey(0)
    k_w1, k_w2, k_x = jax.random.split(key, 3)

    # Kaiming-normal, fan_out, relu: std = sqrt(2 / (out_ch * kh * kw))
    std = (2.0 / (C * 3 * 3)) ** 0.5
    params = {
        "w1": jax.random.normal(k_w1, (3, 3, C, C), jnp.float32) * std,
        "b1": jnp.zeros((C,), jnp.float32),
        "g1": jnp.ones((C,), jnp.float32),
        "be1": jnp.zeros((C,), jnp.float32),
        "w2": jax.random.normal(k_w2, (3, 3, C, C), jnp.float32) * std,
        "b2": jnp.zeros((C,), jnp.float32),
        "g2": jnp.ones((C,), jnp.float32),
        "be2": jnp.zeros((C,), jnp.float32),
    }

    x = jax.random.normal(k_x, (N, H, W, C), jnp.float32)

    out = jax.block_until_ready(resnet1_forward(x, params))
    ref = jax.block_until_ready(resnet1_reference(x, params))

    assert out.shape == (N, H, W, C)
    err = float(jnp.max(jnp.abs(out - ref)))
    assert jnp.allclose(out, ref, atol=1e-4, rtol=1e-4), f"max abs err {err}"

    print("KERNEL_OK")
</pallas_src>

<mosaic_0001>
module attributes {stable_mosaic.version = 11 : i64} {
  func.func @resnet1_kernel(%arg0: memref<2x16x16x8xf32, #tpu.memory_space<vmem>>, %arg1: memref<72x128xf32, #tpu.memory_space<vmem>>, %arg2: memref<1x128xf32, #tpu.memory_space<vmem>>, %arg3: memref<1x128xf32, #tpu.memory_space<vmem>>, %arg4: memref<72x128xf32, #tpu.memory_space<vmem>>, %arg5: memref<1x128xf32, #tpu.memory_space<vmem>>, %arg6: memref<1x128xf32, #tpu.memory_space<vmem>>, %arg7: memref<2x16x16x128xf32, #tpu.memory_space<vmem>>) attributes {dimension_semantics = [], scalar_prefetch = 0 : i64, scratch_operands = 0 : i64, tpu.core_type = #tpu.core_type<tc>} {
    %c0 = arith.constant 0 : index
    %c0_0 = arith.constant 0 : index
    %c0_1 = arith.constant 0 : index
    %c0_2 = arith.constant 0 : index
    %0 = vector.load %arg0[%c0, %c0_0, %c0_1, %c0_2] : memref<2x16x16x8xf32, #tpu.memory_space<vmem>>, vector<2x16x16x8xf32>
    %c0_3 = arith.constant 0 : index
    %c0_4 = arith.constant 0 : index
    %1 = vector.load %arg1[%c0_3, %c0_4] : memref<72x128xf32, #tpu.memory_space<vmem>>, vector<72x128xf32>
    %cst = arith.constant 0.000000e+00 : f32
    %2 = vector.broadcast %cst : f32 to vector<2x1x16x8xf32>
    %3 = vector.extract_strided_slice %0 {offsets = [0, 0, 0, 0], sizes = [2, 15, 16, 8], strides = [1, 1, 1, 1]} : vector<2x16x16x8xf32> to vector<2x15x16x8xf32>
    %4 = tpu.concatenate %2, %3 in 1 : vector<2x1x16x8xf32>, vector<2x15x16x8xf32> -> vector<2x16x16x8xf32>
    %cst_5 = arith.constant 0.000000e+00 : f32
    %5 = vector.broadcast %cst_5 : f32 to vector<2x16x1x8xf32>
    %6 = vector.extract_strided_slice %4 {offsets = [0, 0, 0, 0], sizes = [2, 16, 15, 8], strides = [1, 1, 1, 1]} : vector<2x16x16x8xf32> to vector<2x16x15x8xf32>
    %7 = tpu.concatenate %5, %6 in 2 : vector<2x16x1x8xf32>, vector<2x16x15x8xf32> -> vector<2x16x16x8xf32>
    %8 = vector.shape_cast %7 : vector<2x16x16x8xf32> to vector<512x8xf32>
    %cst_6 = arith.constant 0.000000e+00 : f32
    %9 = vector.broadcast %cst_6 : f32 to vector<2x1x16x8xf32>
    %10 = vector.extract_strided_slice %0 {offsets = [0, 0, 0, 0], sizes = [2, 15, 16, 8], strides = [1, 1, 1, 1]} : vector<2x16x16x8xf32> to vector<2x15x16x8xf32>
    %11 = tpu.concatenate %9, %10 in 1 : vector<2x1x16x8xf32>, vector<2x15x16x8xf32> -> vector<2x16x16x8xf32>
    %12 = vector.shape_cast %11 : vector<2x16x16x8xf32> to vector<512x8xf32>
    %cst_7 = arith.constant 0.000000e+00 : f32
    %13 = vector.broadcast %cst_7 : f32 to vector<2x1x16x8xf32>
    %14 = vector.extract_strided_slice %0 {offsets = [0, 0, 0, 0], sizes = [2, 15, 16, 8], strides = [1, 1, 1, 1]} : vector<2x16x16x8xf32> to vector<2x15x16x8xf32>
    %15 = tpu.concatenate %13, %14 in 1 : vector<2x1x16x8xf32>, vector<2x15x16x8xf32> -> vector<2x16x16x8xf32>
    %cst_8 = arith.constant 0.000000e+00 : f32
    %16 = vector.broadcast %cst_8 : f32 to vector<2x16x1x8xf32>
    %17 = vector.extract_strided_slice %15 {offsets = [0, 0, 1, 0], sizes = [2, 16, 15, 8], strides = [1, 1, 1, 1]} : vector<2x16x16x8xf32> to vector<2x16x15x8xf32>
    %18 = tpu.concatenate %17, %16 in 2 : vector<2x16x15x8xf32>, vector<2x16x1x8xf32> -> vector<2x16x16x8xf32>
    %19 = vector.shape_cast %18 : vector<2x16x16x8xf32> to vector<512x8xf32>
    %cst_9 = arith.constant 0.000000e+00 : f32
    %20 = vector.broadcast %cst_9 : f32 to vector<2x16x1x8xf32>
    %21 = vector.extract_strided_slice %0 {offsets = [0, 0, 0, 0], sizes = [2, 16, 15, 8], strides = [1, 1, 1, 1]} : vector<2x16x16x8xf32> to vector<2x16x15x8xf32>
    %22 = tpu.concatenate %20, %21 in 2 : vector<2x16x1x8xf32>, vector<2x16x15x8xf32> -> vector<2x16x16x8xf32>
    %23 = vector.shape_cast %22 : vector<2x16x16x8xf32> to vector<512x8xf32>
    %24 = vector.shape_cast %0 : vector<2x16x16x8xf32> to vector<512x8xf32>
    %cst_10 = arith.constant 0.000000e+00 : f32
    %25 = vector.broadcast %cst_10 : f32 to vector<2x16x1x8xf32>
    %26 = vector.extract_strided_slice %0 {offsets = [0, 0, 1, 0], sizes = [2, 16, 15, 8], strides = [1, 1, 1, 1]} : vector<2x16x16x8xf32> to vector<2x16x15x8xf32>
    %27 = tpu.concatenate %26, %25 in 2 : vector<2x16x15x8xf32>, vector<2x16x1x8xf32> -> vector<2x16x16x8xf32>
    %28 = vector.shape_cast %27 : vector<2x16x16x8xf32> to vector<512x8xf32>
    %cst_11 = arith.constant 0.000000e+00 : f32
    %29 = vector.broadcast %cst_11 : f32 to vector<2x1x16x8xf32>
    %30 = vector.extract_strided_slice %0 {offsets = [0, 1, 0, 0], sizes = [2, 15, 16, 8], strides = [1, 1, 1, 1]} : vector<2x16x16x8xf32> to vector<2x15x16x8xf32>
    %31 = tpu.concatenate %30, %29 in 1 : vector<2x15x16x8xf32>, vector<2x1x16x8xf32> -> vector<2x16x16x8xf32>
    %cst_12 = arith.constant 0.000000e+00 : f32
    %32 = vector.broadcast %cst_12 : f32 to vector<2x16x1x8xf32>
    %33 = vector.extract_strided_slice %31 {offsets = [0, 0, 0, 0], sizes = [2, 16, 15, 8], strides = [1, 1, 1, 1]} : vector<2x16x16x8xf32> to vector<2x16x15x8xf32>
    %34 = tpu.concatenate %32, %33 in 2 : vector<2x16x1x8xf32>, vector<2x16x15x8xf32> -> vector<2x16x16x8xf32>
    %35 = vector.shape_cast %34 : vector<2x16x16x8xf32> to vector<512x8xf32>
    %cst_13 = arith.constant 0.000000e+00 : f32
    %36 = vector.broadcast %cst_13 : f32 to vector<2x1x16x8xf32>
    %37 = vector.extract_strided_slice %0 {offsets = [0, 1, 0, 0], sizes = [2, 15, 16, 8], strides = [1, 1, 1, 1]} : vector<2x16x16x8xf32> to vector<2x15x16x8xf32>
    %38 = tpu.concatenate %37, %36 in 1 : vector<2x15x16x8xf32>, vector<2x1x16x8xf32> -> vector<2x16x16x8xf32>
    %39 = vector.shape_cast %38 : vector<2x16x16x8xf32> to vector<512x8xf32>
    %cst_14 = arith.constant 0.000000e+00 : f32
    %40 = vector.broadcast %cst_14 : f32 to vector<2x1x16x8xf32>
    %41 = vector.extract_strided_slice %0 {offsets = [0, 1, 0, 0], sizes = [2, 15, 16, 8], strides = [1, 1, 1, 1]} : vector<2x16x16x8xf32> to vector<2x15x16x8xf32>
    %42 = tpu.concatenate %41, %40 in 1 : vector<2x15x16x8xf32>, vector<2x1x16x8xf32> -> vector<2x16x16x8xf32>
    %cst_15 = arith.constant 0.000000e+00 : f32
    %43 = vector.broadcast %cst_15 : f32 to vector<2x16x1x8xf32>
    %44 = vector.extract_strided_slice %42 {offsets = [0, 0, 1, 0], sizes = [2, 16, 15, 8], strides = [1, 1, 1, 1]} : vector<2x16x16x8xf32> to vector<2x16x15x8xf32>
    %45 = tpu.concatenate %44, %43 in 2 : vector<2x16x15x8xf32>, vector<2x16x1x8xf32> -> vector<2x16x16x8xf32>
    %46 = vector.shape_cast %45 : vector<2x16x16x8xf32> to vector<512x8xf32>
    %47 = tpu.concatenate %8, %12, %19, %23, %24, %28, %35, %39, %46 in 1 : vector<512x8xf32>, vector<512x8xf32>, vector<512x8xf32>, vector<512x8xf32>, vector<512x8xf32>, vector<512x8xf32>, vector<512x8xf32>, vector<512x8xf32>, vector<512x8xf32> -> vector<512x72xf32>
    %cst_16 = arith.constant dense<0.000000e+00> : vector<512x128xf32>
    %48 = tpu.matmul %47, %1, %cst_16 {dimension_numbers = #tpu.dot_dimension_numbers<[1], [0], [0], [1], [0, 0, 1, 1], [], []>} : vector<512x72xf32>, vector<72x128xf32>, vector<512x128xf32> -> vector<512x128xf32>
    %c0_17 = arith.constant 0 : index
    %c0_18 = arith.constant 0 : index
    %49 = vector.load %arg2[%c0_17, %c0_18] : memref<1x128xf32, #tpu.memory_space<vmem>>, vector<1x128xf32>
    %c0_19 = arith.constant 0 : index
    %c0_20 = arith.constant 0 : index
    %50 = vector.load %arg3[%c0_19, %c0_20] : memref<1x128xf32, #tpu.memory_space<vmem>>, vector<1x128xf32>
    %cst_21 = arith.constant dense<0.000000e+00> : vector<128xf32>
    %51 = vector.multi_reduction <add>, %48, %cst_21 [0] : vector<512x128xf32> to vector<128xf32>
    %52 = vector.shape_cast %51 : vector<128xf32> to vector<1x128xf32>
    %cst_22 = arith.constant 0.001953125 : f32
    %53 = vector.broadcast %cst_22 : f32 to vector<1x128xf32>
    %54 = arith.mulf %52, %53 : vector<1x128xf32>
    %55 = arith.mulf %48, %48 : vector<512x128xf32>
    %cst_23 = arith.constant dense<0.000000e+00> : vector<128xf32>
    %56 = vector.multi_reduction <add>, %55, %cst_23 [0] : vector<512x128xf32> to vector<128xf32>
    %57 = vector.shape_cast %56 : vector<128xf32> to vector<1x128xf32>
    %cst_24 = arith.constant 0.001953125 : f32
    %58 = vector.broadcast %cst_24 : f32 to vector<1x128xf32>
    %59 = arith.mulf %57, %58 : vector<1x128xf32>
    %60 = arith.mulf %54, %54 : vector<1x128xf32>
    %61 = arith.subf %59, %60 : vector<1x128xf32>
    %cst_25 = arith.constant 9.99999974E-6 : f32
    %62 = vector.broadcast %cst_25 : f32 to vector<1x128xf32>
    %63 = arith.addf %61, %62 : vector<1x128xf32>
    %64 = math.rsqrt %63 : vector<1x128xf32>
    %65 = arith.mulf %49, %64 : vector<1x128xf32>
    %66 = vector.broadcast %65 : vector<1x128xf32> to vector<512x128xf32>
    %67 = arith.mulf %48, %66 : vector<512x128xf32>
    %68 = arith.mulf %54, %65 : vector<1x128xf32>
    %69 = arith.subf %50, %68 : vector<1x128xf32>
    %70 = vector.broadcast %69 : vector<1x128xf32> to vector<512x128xf32>
    %71 = arith.addf %67, %70 : vector<512x128xf32>
    %cst_26 = arith.constant 0.000000e+00 : f32
    %72 = vector.broadcast %cst_26 : f32 to vector<512x128xf32>
    %73 = arith.maximumf %71, %72 : vector<512x128xf32>
    %74 = vector.extract_strided_slice %73 {offsets = [0, 0], sizes = [512, 8], strides = [1, 1]} : vector<512x128xf32> to vector<512x8xf32>
    %75 = vector.shape_cast %74 : vector<512x8xf32> to vector<2x16x16x8xf32>
    %c0_27 = arith.constant 0 : index
    %c0_28 = arith.constant 0 : index
    %76 = vector.load %arg4[%c0_27, %c0_28] : memref<72x128xf32, #tpu.memory_space<vmem>>, vector<72x128xf32>
    %cst_29 = arith.constant 0.000000e+00 : f32
    %77 = vector.broadcast %cst_29 : f32 to vector<2x1x16x8xf32>
    %78 = vector.extract_strided_slice %75 {offsets = [0, 0, 0, 0], sizes = [2, 15, 16, 8], strides = [1, 1, 1, 1]} : vector<2x16x16x8xf32> to vector<2x15x16x8xf32>
    %79 = tpu.concatenate %77, %78 in 1 : vector<2x1x16x8xf32>, vector<2x15x16x8xf32> -> vector<2x16x16x8xf32>
    %cst_30 = arith.constant 0.000000e+00 : f32
    %80 = vector.broadcast %cst_30 : f32 to vector<2x16x1x8xf32>
    %81 = vector.extract_strided_slice %79 {offsets = [0, 0, 0, 0], sizes = [2, 16, 15, 8], strides = [1, 1, 1, 1]} : vector<2x16x16x8xf32> to vector<2x16x15x8xf32>
    %82 = tpu.concatenate %80, %81 in 2 : vector<2x16x1x8xf32>, vector<2x16x15x8xf32> -> vector<2x16x16x8xf32>
    %83 = vector.shape_cast %82 : vector<2x16x16x8xf32> to vector<512x8xf32>
    %cst_31 = arith.constant 0.000000e+00 : f32
    %84 = vector.broadcast %cst_31 : f32 to vector<2x1x16x8xf32>
    %85 = vector.extract_strided_slice %75 {offsets = [0, 0, 0, 0], sizes = [2, 15, 16, 8], strides = [1, 1, 1, 1]} : vector<2x16x16x8xf32> to vector<2x15x16x8xf32>
    %86 = tpu.concatenate %84, %85 in 1 : vector<2x1x16x8xf32>, vector<2x15x16x8xf32> -> vector<2x16x16x8xf32>
    %87 = vector.shape_cast %86 : vector<2x16x16x8xf32> to vector<512x8xf32>
    %cst_32 = arith.constant 0.000000e+00 : f32
    %88 = vector.broadcast %cst_32 : f32 to vector<2x1x16x8xf32>
    %89 = vector.extract_strided_slice %75 {offsets = [0, 0, 0, 0], sizes = [2, 15, 16, 8], strides = [1, 1, 1, 1]} : vector<2x16x16x8xf32> to vector<2x15x16x8xf32>
    %90 = tpu.concatenate %88, %89 in 1 : vector<2x1x16x8xf32>, vector<2x15x16x8xf32> -> vector<2x16x16x8xf32>
    %cst_33 = arith.constant 0.000000e+00 : f32
    %91 = vector.broadcast %cst_33 : f32 to vector<2x16x1x8xf32>
    %92 = vector.extract_strided_slice %90 {offsets = [0, 0, 1, 0], sizes = [2, 16, 15, 8], strides = [1, 1, 1, 1]} : vector<2x16x16x8xf32> to vector<2x16x15x8xf32>
    %93 = tpu.concatenate %92, %91 in 2 : vector<2x16x15x8xf32>, vector<2x16x1x8xf32> -> vector<2x16x16x8xf32>
    %94 = vector.shape_cast %93 : vector<2x16x16x8xf32> to vector<512x8xf32>
    %cst_34 = arith.constant 0.000000e+00 : f32
    %95 = vector.broadcast %cst_34 : f32 to vector<2x16x1x8xf32>
    %96 = vector.extract_strided_slice %75 {offsets = [0, 0, 0, 0], sizes = [2, 16, 15, 8], strides = [1, 1, 1, 1]} : vector<2x16x16x8xf32> to vector<2x16x15x8xf32>
    %97 = tpu.concatenate %95, %96 in 2 : vector<2x16x1x8xf32>, vector<2x16x15x8xf32> -> vector<2x16x16x8xf32>
    %98 = vector.shape_cast %97 : vector<2x16x16x8xf32> to vector<512x8xf32>
    %99 = vector.shape_cast %75 : vector<2x16x16x8xf32> to vector<512x8xf32>
    %cst_35 = arith.constant 0.000000e+00 : f32
    %100 = vector.broadcast %cst_35 : f32 to vector<2x16x1x8xf32>
    %101 = vector.extract_strided_slice %75 {offsets = [0, 0, 1, 0], sizes = [2, 16, 15, 8], strides = [1, 1, 1, 1]} : vector<2x16x16x8xf32> to vector<2x16x15x8xf32>
    %102 = tpu.concatenate %101, %100 in 2 : vector<2x16x15x8xf32>, vector<2x16x1x8xf32> -> vector<2x16x16x8xf32>
    %103 = vector.shape_cast %102 : vector<2x16x16x8xf32> to vector<512x8xf32>
    %cst_36 = arith.constant 0.000000e+00 : f32
    %104 = vector.broadcast %cst_36 : f32 to vector<2x1x16x8xf32>
    %105 = vector.extract_strided_slice %75 {offsets = [0, 1, 0, 0], sizes = [2, 15, 16, 8], strides = [1, 1, 1, 1]} : vector<2x16x16x8xf32> to vector<2x15x16x8xf32>
    %106 = tpu.concatenate %105, %104 in 1 : vector<2x15x16x8xf32>, vector<2x1x16x8xf32> -> vector<2x16x16x8xf32>
    %cst_37 = arith.constant 0.000000e+00 : f32
    %107 = vector.broadcast %cst_37 : f32 to vector<2x16x1x8xf32>
    %108 = vector.extract_strided_slice %106 {offsets = [0, 0, 0, 0], sizes = [2, 16, 15, 8], strides = [1, 1, 1, 1]} : vector<2x16x16x8xf32> to vector<2x16x15x8xf32>
    %109 = tpu.concatenate %107, %108 in 2 : vector<2x16x1x8xf32>, vector<2x16x15x8xf32> -> vector<2x16x16x8xf32>
    %110 = vector.shape_cast %109 : vector<2x16x16x8xf32> to vector<512x8xf32>
    %cst_38 = arith.constant 0.000000e+00 : f32
    %111 = vector.broadcast %cst_38 : f32 to vector<2x1x16x8xf32>
    %112 = vector.extract_strided_slice %75 {offsets = [0, 1, 0, 0], sizes = [2, 15, 16, 8], strides = [1, 1, 1, 1]} : vector<2x16x16x8xf32> to vector<2x15x16x8xf32>
    %113 = tpu.concatenate %112, %111 in 1 : vector<2x15x16x8xf32>, vector<2x1x16x8xf32> -> vector<2x16x16x8xf32>
    %114 = vector.shape_cast %113 : vector<2x16x16x8xf32> to vector<512x8xf32>
    %cst_39 = arith.constant 0.000000e+00 : f32
    %115 = vector.broadcast %cst_39 : f32 to vector<2x1x16x8xf32>
    %116 = vector.extract_strided_slice %75 {offsets = [0, 1, 0, 0], sizes = [2, 15, 16, 8], strides = [1, 1, 1, 1]} : vector<2x16x16x8xf32> to vector<2x15x16x8xf32>
    %117 = tpu.concatenate %116, %115 in 1 : vector<2x15x16x8xf32>, vector<2x1x16x8xf32> -> vector<2x16x16x8xf32>
    %cst_40 = arith.constant 0.000000e+00 : f32
    %118 = vector.broadcast %cst_40 : f32 to vector<2x16x1x8xf32>
    %119 = vector.extract_strided_slice %117 {offsets = [0, 0, 1, 0], sizes = [2, 16, 15, 8], strides = [1, 1, 1, 1]} : vector<2x16x16x8xf32> to vector<2x16x15x8xf32>
    %120 = tpu.concatenate %119, %118 in 2 : vector<2x16x15x8xf32>, vector<2x16x1x8xf32> -> vector<2x16x16x8xf32>
    %121 = vector.shape_cast %120 : vector<2x16x16x8xf32> to vector<512x8xf32>
    %122 = tpu.concatenate %83, %87, %94, %98, %99, %103, %110, %114, %121 in 1 : vector<512x8xf32>, vector<512x8xf32>, vector<512x8xf32>, vector<512x8xf32>, vector<512x8xf32>, vector<512x8xf32>, vector<512x8xf32>, vector<512x8xf32>, vector<512x8xf32> -> vector<512x72xf32>
    %cst_41 = arith.constant dense<0.000000e+00> : vector<512x128xf32>
    %123 = tpu.matmul %122, %76, %cst_41 {dimension_numbers = #tpu.dot_dimension_numbers<[1], [0], [0], [1], [0, 0, 1, 1], [], []>} : vector<512x72xf32>, vector<72x128xf32>, vector<512x128xf32> -> vector<512x128xf32>
    %c0_42 = arith.constant 0 : index
    %c0_43 = arith.constant 0 : index
    %124 = vector.load %arg5[%c0_42, %c0_43] : memref<1x128xf32, #tpu.memory_space<vmem>>, vector<1x128xf32>
    %c0_44 = arith.constant 0 : index
    %c0_45 = arith.constant 0 : index
    %125 = vector.load %arg6[%c0_44, %c0_45] : memref<1x128xf32, #tpu.memory_space<vmem>>, vector<1x128xf32>
    %cst_46 = arith.constant dense<0.000000e+00> : vector<128xf32>
    %126 = vector.multi_reduction <add>, %123, %cst_46 [0] : vector<512x128xf32> to vector<128xf32>
    %127 = vector.shape_cast %126 : vector<128xf32> to vector<1x128xf32>
    %cst_47 = arith.constant 0.001953125 : f32
    %128 = vector.broadcast %cst_47 : f32 to vector<1x128xf32>
    %129 = arith.mulf %127, %128 : vector<1x128xf32>
    %130 = arith.mulf %123, %123 : vector<512x128xf32>
    %cst_48 = arith.constant dense<0.000000e+00> : vector<128xf32>
    %131 = vector.multi_reduction <add>, %130, %cst_48 [0] : vector<512x128xf32> to vector<128xf32>
    %132 = vector.shape_cast %131 : vector<128xf32> to vector<1x128xf32>
    %cst_49 = arith.constant 0.001953125 : f32
    %133 = vector.broadcast %cst_49 : f32 to vector<1x128xf32>
    %134 = arith.mulf %132, %133 : vector<1x128xf32>
    %135 = arith.mulf %129, %129 : vector<1x128xf32>
    %136 = arith.subf %134, %135 : vector<1x128xf32>
    %cst_50 = arith.constant 9.99999974E-6 : f32
    %137 = vector.broadcast %cst_50 : f32 to vector<1x128xf32>
    %138 = arith.addf %136, %137 : vector<1x128xf32>
    %139 = math.rsqrt %138 : vector<1x128xf32>
    %140 = arith.mulf %124, %139 : vector<1x128xf32>
    %141 = vector.broadcast %140 : vector<1x128xf32> to vector<512x128xf32>
    %142 = arith.mulf %123, %141 : vector<512x128xf32>
    %143 = arith.mulf %129, %140 : vector<1x128xf32>
    %144 = arith.subf %125, %143 : vector<1x128xf32>
    %145 = vector.broadcast %144 : vector<1x128xf32> to vector<512x128xf32>
    %146 = arith.addf %142, %145 : vector<512x128xf32>
    %147 = vector.shape_cast %0 : vector<2x16x16x8xf32> to vector<512x8xf32>
    %cst_51 = arith.constant 0.000000e+00 : f32
    %148 = vector.broadcast %cst_51 : f32 to vector<512x120xf32>
    %149 = tpu.concatenate %147, %148 in 1 : vector<512x8xf32>, vector<512x120xf32> -> vector<512x128xf32>
    %150 = arith.addf %146, %149 : vector<512x128xf32>
    %cst_52 = arith.constant 0.000000e+00 : f32
    %151 = vector.broadcast %cst_52 : f32 to vector<512x128xf32>
    %152 = arith.maximumf %150, %151 : vector<512x128xf32>
    %153 = vector.shape_cast %152 : vector<512x128xf32> to vector<2x16x16x128xf32>
    %c0_53 = arith.constant 0 : index
    %c0_54 = arith.constant 0 : index
    %c0_55 = arith.constant 0 : index
    %c0_56 = arith.constant 0 : index
    %154 = vector.load %arg7[%c0_53, %c0_54, %c0_55, %c0_56] : memref<2x16x16x128xf32, #tpu.memory_space<vmem>>, vector<2x16x16x128xf32>
    tpu.vector_store %arg7[%c0_53, %c0_54, %c0_55, %c0_56], %153 {strides = array<i32>} : memref<2x16x16x128xf32, #tpu.memory_space<vmem>>, vector<2x16x16x128xf32>,
    return
  }
}

</mosaic_0001>

<llo_original>
// kernel: tpu_custom_call.1
$region0: #{tpu_custom_call.1}
  #allocation0 [shape = 'u32[]', space=smem, size = 0x4, offset = 0x4, fixed_abs, tag = 'smem constant byte address 0x4 - core index']
  #allocation1 [shape = 'u32[72,128]{1,0:T(1,128)}', space=vmem, size = 0x9000, scoped, tag = 'internal scratch']
  %s0 = inlined_call_operand.vmem [shape: f32[2,16,16,8], index: 0, kind: input, shape index: {}]
  %s1 = inlined_call_operand.vmem [shape: f32[72,128], index: 1, kind: input, shape index: {}]
  %s2 = inlined_call_operand.vmem [shape: f32[1,128], index: 2, kind: input, shape index: {}]
  %s3 = inlined_call_operand.vmem [shape: f32[1,128], index: 3, kind: input, shape index: {}]
  %s4 = inlined_call_operand.vmem [shape: f32[72,128], index: 4, kind: input, shape index: {}]
  %s5 = inlined_call_operand.vmem [shape: f32[1,128], index: 5, kind: input, shape index: {}]
  %s6 = inlined_call_operand.vmem [shape: f32[1,128], index: 6, kind: input, shape index: {}]
  %s7 = inlined_call_operand.hbm [shape: f32[2,16,16,128], index: 7, kind: output, shape index: {}]
  %s8 = sld [smem:[#allocation0]]
  $region38: #{tpu_custom_call.1} parent=0
    _
  %s10 = ssub.s32 1, %s8
  %s11 = scalar_select 0, %s10, %s8
  $region1: #{tpu_custom_call.1} parent=0
    #allocation2 [shape = 'u8[262144]{0}', space=vmem, size = 0x40000, scoped, tag = 'output window, operand 0, single buffered']
    #allocation3 [shape = 's32[1]{0}', space=sflag, size = 0x4, scoped, tag = 'scoped memory for tpu_custom_call.1']
    %12 = vsyncpa [#allocation3], 0
    // Predicated region
    $region2: #{tpu_custom_call.1} parent=1 // pred_check
      _
    $region3: #{tpu_custom_call.1} parent=1 // pred_check_branch
      %14 = sbr.rel (0) target = $region5
    $region4: #{tpu_custom_call.1} parent=1 // pred_region
      _
    $region5: #{tpu_custom_call.1} parent=1 // pred_fallthru
      _
    // Predicated region
    $region6: #{tpu_custom_call.1} parent=1 // pred_check
      _
    $region7: #{tpu_custom_call.1} parent=1 // pred_check_branch
      %16 = sbr.rel (0) target = $region9
    $region8: #{tpu_custom_call.1} parent=1 // pred_region
      _
    $region9: #{tpu_custom_call.1} parent=1 // pred_fallthru
      _
    // Predicated region
    $region10: #{tpu_custom_call.1} parent=1 // pred_check
      _
    $region11: #{tpu_custom_call.1} parent=1 // pred_check_branch
      %18 = sbr.rel (0) target = $region13
    $region12: #{tpu_custom_call.1} parent=1 // pred_region
      _
    $region13: #{tpu_custom_call.1} parent=1 // pred_fallthru
      _
    // Predicated region
    $region14: #{tpu_custom_call.1} parent=1 // pred_check
      _
    $region15: #{tpu_custom_call.1} parent=1 // pred_check_branch
      %20 = sbr.rel (0) target = $region17
    $region16: #{tpu_custom_call.1} parent=1 // pred_region
      _
    $region17: #{tpu_custom_call.1} parent=1 // pred_fallthru
      _
    // Predicated region
    $region18: #{tpu_custom_call.1} parent=1 // pred_check
      _
    $region19: #{tpu_custom_call.1} parent=1 // pred_check_branch
      %22 = sbr.rel (0) target = $region21
    $region20: #{tpu_custom_call.1} parent=1 // pred_region
      _
    $region21: #{tpu_custom_call.1} parent=1 // pred_fallthru
      _
    // Predicated region
    $region22: #{tpu_custom_call.1} parent=1 // pred_check
      _
    $region23: #{tpu_custom_call.1} parent=1 // pred_check_branch
      %24 = sbr.rel (0) target = $region25
    $region24: #{tpu_custom_call.1} parent=1 // pred_region
      _
    $region25: #{tpu_custom_call.1} parent=1 // pred_fallthru
      _
    // Predicated region
    $region26: #{tpu_custom_call.1} parent=1 // pred_check
      _
    $region27: #{tpu_custom_call.1} parent=1 // pred_check_branch
      %26 = sbr.rel (0) target = $region29
    $region28: #{tpu_custom_call.1} parent=1 // pred_region
      _
    $region29: #{tpu_custom_call.1} parent=1 // pred_fallthru
      _
    %v27 = vld [vmem:[%s0] sm:$0xff]
    %v28 = vld [vmem:[%s0 + $0x8] sm:$0xff]
    %v29 = vld [vmem:[%s0 + $0x10] sm:$0xff]
    %v30 = vld [vmem:[%s0 + $0x18] sm:$0xff]
    %v31 = vld [vmem:[%s0 + $0x20] sm:$0xff]
    %v32 = vld [vmem:[%s0 + $0x28] sm:$0xff]
    %v33 = vld [vmem:[%s0 + $0x30] sm:$0xff]
    %v34 = vld [vmem:[%s0 + $0x38] sm:$0xff]
    %v35 = vld [vmem:[%s0 + $0x40] sm:$0xff]
    %v36 = vld [vmem:[%s0 + $0x48] sm:$0xff]
    %v37 = vld [vmem:[%s0 + $0x50] sm:$0xff]
    %v38 = vld [vmem:[%s0 + $0x58] sm:$0xff]
    %v39 = vld [vmem:[%s0 + $0x60] sm:$0xff]
    %v40 = vld [vmem:[%s0 + $0x68] sm:$0xff]
    %v41 = vld [vmem:[%s0 + $0x70] sm:$0xff]
    %v42 = vld [vmem:[%s0 + $0x78] sm:$0xff]
    %v43 = vld [vmem:[%s0 + $0x80] sm:$0xff]
    %v44 = vld [vmem:[%s0 + $0x88] sm:$0xff]
    %v45 = vld [vmem:[%s0 + $0x90] sm:$0xff]
    %v46 = vld [vmem:[%s0 + $0x98] sm:$0xff]
    %v47 = vld [vmem:[%s0 + $0xa0] sm:$0xff]
    %v48 = vld [vmem:[%s0 + $0xa8] sm:$0xff]
    %v49 = vld [vmem:[%s0 + $0xb0] sm:$0xff]
    %v50 = vld [vmem:[%s0 + $0xb8] sm:$0xff]
    %v51 = vld [vmem:[%s0 + $0xc0] sm:$0xff]
    %v52 = vld [vmem:[%s0 + $0xc8] sm:$0xff]
    %v53 = vld [vmem:[%s0 + $0xd0] sm:$0xff]
    %v54 = vld [vmem:[%s0 + $0xd8] sm:$0xff]
    %v55 = vld [vmem:[%s0 + $0xe0] sm:$0xff]
    %v56 = vld [vmem:[%s0 + $0xe8] sm:$0xff]
    %v57 = vld [vmem:[%s0 + $0xf0] sm:$0xff]
    %v58 = vld [vmem:[%s0 + $0xf8] sm:$0xff]
    %v59 = vld [vmem:[%s0 + $0x100] sm:$0xff]
    %v60 = vld [vmem:[%s0 + $0x108] sm:$0xff]
    %v61 = vld [vmem:[%s0 + $0x110] sm:$0xff]
    %v62 = vld [vmem:[%s0 + $0x118] sm:$0xff]
    %v63 = vld [vmem:[%s0 + $0x120] sm:$0xff]
    %v64 = vld [vmem:[%s0 + $0x128] sm:$0xff]
    %v65 = vld [vmem:[%s0 + $0x130] sm:$0xff]
    %v66 = vld [vmem:[%s0 + $0x138] sm:$0xff]
    %v67 = vld [vmem:[%s0 + $0x140] sm:$0xff]
    %v68 = vld [vmem:[%s0 + $0x148] sm:$0xff]
    %v69 = vld [vmem:[%s0 + $0x150] sm:$0xff]
    %v70 = vld [vmem:[%s0 + $0x158] sm:$0xff]
    %v71 = vld [vmem:[%s0 + $0x160] sm:$0xff]
    %v72 = vld [vmem:[%s0 + $0x168] sm:$0xff]
    %v73 = vld [vmem:[%s0 + $0x170] sm:$0xff]
    %v74 = vld [vmem:[%s0 + $0x178] sm:$0xff]
    %v75 = vld [vmem:[%s0 + $0x180] sm:$0xff]
    %v76 = vld [vmem:[%s0 + $0x188] sm:$0xff]
    %v77 = vld [vmem:[%s0 + $0x190] sm:$0xff]
    %v78 = vld [vmem:[%s0 + $0x198] sm:$0xff]
    %v79 = vld [vmem:[%s0 + $0x1a0] sm:$0xff]
    %v80 = vld [vmem:[%s0 + $0x1a8] sm:$0xff]
    %v81 = vld [vmem:[%s0 + $0x1b0] sm:$0xff]
    %v82 = vld [vmem:[%s0 + $0x1b8] sm:$0xff]
    %v83 = vld [vmem:[%s0 + $0x1c0] sm:$0xff]
    %v84 = vld [vmem:[%s0 + $0x1c8] sm:$0xff]
    %v85 = vld [vmem:[%s0 + $0x1d0] sm:$0xff]
    %v86 = vld [vmem:[%s0 + $0x1d8] sm:$0xff]
    %v87 = vld [vmem:[%s0 + $0x1e0] sm:$0xff]
    %v88 = vld [vmem:[%s0 + $0x1e8] sm:$0xff]
    %v89 = vld [vmem:[%s0 + $0x1f0] sm:$0xff]
    %v90 = vld [vmem:[%s0 + $0x1f8] sm:$0xff]
    %v91 = vld [vmem:[%s1] sm:$0xff]
    %v92 = vld [vmem:[%s1 + $0x8] sm:$0xff]
    %v93 = vld [vmem:[%s1 + $0x10] sm:$0xff]
    %v94 = vld [vmem:[%s1 + $0x18] sm:$0xff]
    %v95 = vld [vmem:[%s1 + $0x20] sm:$0xff]
    %v96 = vld [vmem:[%s1 + $0x28] sm:$0xff]
    %v97 = vld [vmem:[%s1 + $0x30] sm:$0xff]
    %v98 = vld [vmem:[%s1 + $0x38] sm:$0xff]
    %v99 = vld [vmem:[%s1 + $0x40] sm:$0xff]
    %vm161 = vcmask 1040384
    %v162 = vrot.slane 0.0, 7
    %v163 = vsel %vm161, %v162, %v162
    %v164 = vrot.slane %v27, 7
    %v165 = vrot.slane %v28, 7
    %v166 = vsel %vm161, %v164, %v165
    %v167 = vrot.slane %v29, 7
    %v168 = vrot.slane %v30, 7
    %v169 = vsel %vm161, %v167, %v168
    %v170 = vrot.slane %v31, 7
    %v171 = vrot.slane %v32, 7
    %v172 = vsel %vm161, %v170, %v171
    %v173 = vrot.slane %v33, 7
    %v174 = vrot.slane %v34, 7
    %v175 = vsel %vm161, %v173, %v174
    %v176 = vrot.slane %v35, 7
    %v177 = vrot.slane %v36, 7
    %v178 = vsel %vm161, %v176, %v177
    %v179 = vrot.slane %v37, 7
    %v180 = vrot.slane %v38, 7
    %v181 = vsel %vm161, %v179, %v180
    %v182 = vrot.slane %v39, 7
    %v183 = vrot.slane %v40, 7
    %v184 = vsel %vm161, %v182, %v183
    %v185 = vrot.slane %v41, 7
    %v186 = vrot.slane %v42, 7
    %v187 = vsel %vm161, %v185, %v186
    %v188 = vrot.slane %v43, 7
    %v189 = vrot.slane %v44, 7
    %v190 = vsel %vm161, %v188, %v189
    %v191 = vrot.slane %v45, 7
    %v192 = vrot.slane %v46, 7
    %v193 = vsel %vm161, %v191, %v192
    %v194 = vrot.slane %v47, 7
    %v195 = vrot.slane %v48, 7
    %v196 = vsel %vm161, %v194, %v195
    %v197 = vrot.slane %v49, 7
    %v198 = vrot.slane %v50, 7
    %v199 = vsel %vm161, %v197, %v198
    %v200 = vrot.slane %v51, 7
    %v201 = vrot.slane %v52, 7
    %v202 = vsel %vm161, %v200, %v201
    %v203 = vrot.slane %v53, 7
    %v204 = vrot.slane %v54, 7
    %v205 = vsel %vm161, %v203, %v204
    %v206 = vrot.slane %v55, 7
    %v207 = vrot.slane %v56, 7
    %v208 = vsel %vm161, %v206, %v207
    %v209 = vrot.slane %v59, 7
    %v210 = vrot.slane %v60, 7
    %v211 = vsel %vm161, %v209, %v210
    %v212 = vrot.slane %v61, 7
    %v213 = vrot.slane %v62, 7
    %v214 = vsel %vm161, %v212, %v213
    %v215 = vrot.slane %v63, 7
    %v216 = vrot.slane %v64, 7
    %v217 = vsel %vm161, %v215, %v216
    %v218 = vrot.slane %v65, 7
    %v219 = vrot.slane %v66, 7
    %v220 = vsel %vm161, %v218, %v219
    %v221 = vrot.slane %v67, 7
    %v222 = vrot.slane %v68, 7
    %v223 = vsel %vm161, %v221, %v222
    %v224 = vrot.slane %v69, 7
    %v225 = vrot.slane %v70, 7
    %v226 = vsel %vm161, %v224, %v225
    %v227 = vrot.slane %v71, 7
    %v228 = vrot.slane %v72, 7
    %v229 = vsel %vm161, %v227, %v228
    %v230 = vrot.slane %v73, 7
    %v231 = vrot.slane %v74, 7
    %v232 = vsel %vm161, %v230, %v231
    %v233 = vrot.slane %v75, 7
    %v234 = vrot.slane %v76, 7
    %v235 = vsel %vm161, %v233, %v234
    %v236 = vrot.slane %v77, 7
    %v237 = vrot.slane %v78, 7
    %v238 = vsel %vm161, %v236, %v237
    %v239 = vrot.slane %v79, 7
    %v240 = vrot.slane %v80, 7
    %v241 = vsel %vm161, %v239, %v240
    %v242 = vrot.slane %v81, 7
    %v243 = vrot.slane %v82, 7
    %v244 = vsel %vm161, %v242, %v243
    %v245 = vrot.slane %v83, 7
    %v246 = vrot.slane %v84, 7
    %v247 = vsel %vm161, %v245, %v246
    %v248 = vrot.slane %v85, 7
    %v249 = vrot.slane %v86, 7
    %v250 = vsel %vm161, %v248, %v249
    %v251 = vrot.slane %v87, 7
    %v252 = vrot.slane %v88, 7
    %v253 = vsel %vm161, %v251, %v252
    %v316 = vsel %vm161, 0.0, %v162
    %v317 = vsel %vm161, 0.0, %v164
    %v318 = vsel %vm161, 0.0, %v167
    %v319 = vsel %vm161, 0.0, %v170
    %v320 = vsel %vm161, 0.0, %v173
    %v321 = vsel %vm161, 0.0, %v176
    %v322 = vsel %vm161, 0.0, %v179
    %v323 = vsel %vm161, 0.0, %v182
    %v324 = vsel %vm161, 0.0, %v185
    %v325 = vsel %vm161, 0.0, %v188
    %v326 = vsel %vm161, 0.0, %v191
    %v327 = vsel %vm161, 0.0, %v194
    %v328 = vsel %vm161, 0.0, %v197
    %v329 = vsel %vm161, 0.0, %v200
    %v330 = vsel %vm161, 0.0, %v203
    %v331 = vsel %vm161, 0.0, %v206
    %v332 = vsel %vm161, 0.0, %v209
    %v333 = vsel %vm161, 0.0, %v212
    %v334 = vsel %vm161, 0.0, %v215
    %v335 = vsel %vm161, 0.0, %v218
    %v336 = vsel %vm161, 0.0, %v221
    %v337 = vsel %vm161, 0.0, %v224
    %v338 = vsel %vm161, 0.0, %v227
    %v339 = vsel %vm161, 0.0, %v230
    %v340 = vsel %vm161, 0.0, %v233
    %v341 = vsel %vm161, 0.0, %v236
    %v342 = vsel %vm161, 0.0, %v239
    %v343 = vsel %vm161, 0.0, %v242
    %v344 = vsel %vm161, 0.0, %v245
    %v345 = vsel %vm161, 0.0, %v248
    %v346 = vsel %vm161, 0.0, %v251
    %vm347 = vcmask 1046528
    %v348 = vrot.slane 0.0, 1
    %v349 = vsel %vm347, %v348, %v348
    %v350 = vrot.slane %v27, 1
    %v351 = vrot.slane %v28, 1
    %v352 = vsel %vm347, %v350, %v351
    %v353 = vrot.slane %v29, 1
    %v354 = vrot.slane %v30, 1
    %v355 = vsel %vm347, %v353, %v354
    %v356 = vrot.slane %v31, 1
    %v357 = vrot.slane %v32, 1
    %v358 = vsel %vm347, %v356, %v357
    %v359 = vrot.slane %v33, 1
    %v360 = vrot.slane %v34, 1
    %v361 = vsel %vm347, %v359, %v360
    %v362 = vrot.slane %v35, 1
    %v363 = vrot.slane %v36, 1
    %v364 = vsel %vm347, %v362, %v363
    %v365 = vrot.slane %v37, 1
    %v366 = vrot.slane %v38, 1
    %v367 = vsel %vm347, %v365, %v366
    %v368 = vrot.slane %v39, 1
    %v369 = vrot.slane %v40, 1
    %v370 = vsel %vm347, %v368, %v369
    %v371 = vrot.slane %v41, 1
    %v372 = vrot.slane %v42, 1
    %v373 = vsel %vm347, %v371, %v372
    %v374 = vrot.slane %v43, 1
    %v375 = vrot.slane %v44, 1
    %v376 = vsel %vm347, %v374, %v375
    %v377 = vrot.slane %v45, 1
    %v378 = vrot.slane %v46, 1
    %v379 = vsel %vm347, %v377, %v378
    %v380 = vrot.slane %v47, 1
    %v381 = vrot.slane %v48, 1
    %v382 = vsel %vm347, %v380, %v381
    %v383 = vrot.slane %v49, 1
    %v384 = vrot.slane %v50, 1
    %v385 = vsel %vm347, %v383, %v384
    %v386 = vrot.slane %v51, 1
    %v387 = vrot.slane %v52, 1
    %v388 = vsel %vm347, %v386, %v387
    %v389 = vrot.slane %v53, 1
    %v390 = vrot.slane %v54, 1
    %v391 = vsel %vm347, %v389, %v390
    %v392 = vrot.slane %v55, 1
    %v393 = vrot.slane %v56, 1
    %v394 = vsel %vm347, %v392, %v393
    %v395 = vrot.slane %v59, 1
    %v396 = vrot.slane %v60, 1
    %v397 = vsel %vm347, %v395, %v396
    %v398 = vrot.slane %v61, 1
    %v399 = vrot.slane %v62, 1
    %v400 = vsel %vm347, %v398, %v399
    %v401 = vrot.slane %v63, 1
    %v402 = vrot.slane %v64, 1
    %v403 = vsel %vm347, %v401, %v402
    %v404 = vrot.slane %v65, 1
    %v405 = vrot.slane %v66, 1
    %v406 = vsel %vm347, %v404, %v405
    %v407 = vrot.slane %v67, 1
    %v408 = vrot.slane %v68, 1
    %v409 = vsel %vm347, %v407, %v408
    %v410 = vrot.slane %v69, 1
    %v411 = vrot.slane %v70, 1
    %v412 = vsel %vm347, %v410, %v411
    %v413 = vrot.slane %v71, 1
    %v414 = vrot.slane %v72, 1
    %v415 = vsel %vm347, %v413, %v414
    %v416 = vrot.slane %v73, 1
    %v417 = vrot.slane %v74, 1
    %v418 = vsel %vm347, %v416, %v417
    %v419 = vrot.slane %v75, 1
    %v420 = vrot.slane %v76, 1
    %v421 = vsel %vm347, %v419, %v420
    %v422 = vrot.slane %v77, 1
    %v423 = vrot.slane %v78, 1
    %v424 = vsel %vm347, %v422, %v423
    %v425 = vrot.slane %v79, 1
    %v426 = vrot.slane %v80, 1
    %v427 = vsel %vm347, %v425, %v426
    %v428 = vrot.slane %v81, 1
    %v429 = vrot.slane %v82, 1
    %v430 = vsel %vm347, %v428, %v429
    %v431 = vrot.slane %v83, 1
    %v432 = vrot.slane %v84, 1
    %v433 = vsel %vm347, %v431, %v432
    %v434 = vrot.slane %v85, 1
    %v435 = vrot.slane %v86, 1
    %v436 = vsel %vm347, %v434, %v435
    %v437 = vrot.slane %v87, 1
    %v438 = vrot.slane %v88, 1
    %v439 = vsel %vm347, %v437, %v438
    %v471 = vsel %vm347, %v348, 0.0
    %v472 = vsel %vm347, %v351, 0.0
    %v473 = vsel %vm347, %v354, 0.0
    %v474 = vsel %vm347, %v357, 0.0
    %v475 = vsel %vm347, %v360, 0.0
    %v476 = vsel %vm347, %v363, 0.0
    %v477 = vsel %vm347, %v366, 0.0
    %v478 = vsel %vm347, %v369, 0.0
    %v479 = vsel %vm347, %v372, 0.0
    %v480 = vsel %vm347, %v375, 0.0
    %v481 = vsel %vm347, %v378, 0.0
    %v482 = vsel %vm347, %v381, 0.0
    %v483 = vsel %vm347, %v384, 0.0
    %v484 = vsel %vm347, %v387, 0.0
    %v485 = vsel %vm347, %v390, 0.0
    %v486 = vsel %vm347, %v393, 0.0
    %v487 = vsel %vm347, %v396, 0.0
    %v488 = vsel %vm347, %v399, 0.0
    %v489 = vsel %vm347, %v402, 0.0
    %v490 = vsel %vm347, %v405, 0.0
    %v491 = vsel %vm347, %v408, 0.0
    %v492 = vsel %vm347, %v411, 0.0
    %v493 = vsel %vm347, %v414, 0.0
    %v494 = vsel %vm347, %v417, 0.0
    %v495 = vsel %vm347, %v420, 0.0
    %v496 = vsel %vm347, %v423, 0.0
    %v497 = vsel %vm347, %v426, 0.0
    %v498 = vsel %vm347, %v429, 0.0
    %v499 = vsel %vm347, %v432, 0.0
    %v500 = vsel %vm347, %v435, 0.0
    %v501 = vsel %vm347, %v438, 0.0
    %v506 = vrot.slane %v57, 7
    %v507 = vrot.slane %v58, 7
    %v508 = vsel %vm161, %v506, %v507
    %v509 = vrot.slane %v89, 7
    %v510 = vrot.slane %v90, 7
    %v511 = vsel %vm161, %v509, %v510
    %v514 = vsel %vm161, 0.0, %v506
    %v515 = vsel %vm161, 0.0, %v509
    %v516 = vrot.slane %v57, 1
    %v517 = vrot.slane %v58, 1
    %v518 = vsel %vm347, %v516, %v517
    %v519 = vrot.slane %v89, 1
    %v520 = vrot.slane %v90, 1
    %v521 = vsel %vm347, %v519, %v520
    %v524 = vsel %vm347, %v517, 0.0
    %v525 = vsel %vm347, %v520, 0.0
    %526 = vrot.lane.b32.xlu0 0.0, 8
    %v527 = vpop.permute.xlu0 %526
    %528 = vrot.lane.b32.xlu0 %v27, 8
    %v529 = vpop.permute.xlu0 %528
    %530 = vrot.lane.b32.xlu0 %v28, 8
    %v531 = vpop.permute.xlu0 %530
    %532 = vrot.lane.b32.xlu0 %v29, 8
    %v533 = vpop.permute.xlu0 %532
    %534 = vrot.lane.b32.xlu0 %v30, 8
    %v535 = vpop.permute.xlu0 %534
    %536 = vrot.lane.b32.xlu0 %v31, 8
    %v537 = vpop.permute.xlu0 %536
    %538 = vrot.lane.b32.xlu0 %v32, 8
    %v539 = vpop.permute.xlu0 %538
    %540 = vrot.lane.b32.xlu0 %v33, 8
    %v541 = vpop.permute.xlu0 %540
    %542 = vrot.lane.b32.xlu0 %v34, 8
    %v543 = vpop.permute.xlu0 %542
    %544 = vrot.lane.b32.xlu0 %v35, 8
    %v545 = vpop.permute.xlu0 %544
    %546 = vrot.lane.b32.xlu0 %v36, 8
    %v547 = vpop.permute.xlu0 %546
    %548 = vrot.lane.b32.xlu0 %v37, 8
    %v549 = vpop.permute.xlu0 %548
    %550 = vrot.lane.b32.xlu0 %v38, 8
    %v551 = vpop.permute.xlu0 %550
    %552 = vrot.lane.b32.xlu0 %v39, 8
    %v553 = vpop.permute.xlu0 %552
    %554 = vrot.lane.b32.xlu0 %v40, 8
    %v555 = vpop.permute.xlu0 %554
    %556 = vrot.lane.b32.xlu0 %v41, 8
    %v557 = vpop.permute.xlu0 %556
    %558 = vrot.lane.b32.xlu0 %v42, 8
    %v559 = vpop.permute.xlu0 %558
    %560 = vrot.lane.b32.xlu0 %v43, 8
    %v561 = vpop.permute.xlu0 %560
    %562 = vrot.lane.b32.xlu0 %v44, 8
    %v563 = vpop.permute.xlu0 %562
    %564 = vrot.lane.b32.xlu0 %v45, 8
    %v565 = vpop.permute.xlu0 %564
    %566 = vrot.lane.b32.xlu0 %v46, 8
    %v567 = vpop.permute.xlu0 %566
    %568 = vrot.lane.b32.xlu0 %v47, 8
    %v569 = vpop.permute.xlu0 %568
    %570 = vrot.lane.b32.xlu0 %v48, 8
    %v571 = vpop.permute.xlu0 %570
    %572 = vrot.lane.b32.xlu0 %v49, 8
    %v573 = vpop.permute.xlu0 %572
    %574 = vrot.lane.b32.xlu0 %v50, 8
    %v575 = vpop.permute.xlu0 %574
    %576 = vrot.lane.b32.xlu0 %v51, 8
    %v577 = vpop.permute.xlu0 %576
    %578 = vrot.lane.b32.xlu0 %v52, 8
    %v579 = vpop.permute.xlu0 %578
    %580 = vrot.lane.b32.xlu0 %v53, 8
    %v581 = vpop.permute.xlu0 %580
    %582 = vrot.lane.b32.xlu0 %v54, 8
    %v583 = vpop.permute.xlu0 %582
    %584 = vrot.lane.b32.xlu0 %v55, 8
    %v585 = vpop.permute.xlu0 %584
    %586 = vrot.lane.b32.xlu0 %v56, 8
    %v587 = vpop.permute.xlu0 %586
    %588 = vrot.lane.b32.xlu0 %v59, 8
    %v589 = vpop.permute.xlu0 %588
    %590 = vrot.lane.b32.xlu0 %v60, 8
    %v591 = vpop.permute.xlu0 %590
    %592 = vrot.lane.b32.xlu0 %v61, 8
    %v593 = vpop.permute.xlu0 %592
    %594 = vrot.lane.b32.xlu0 %v62, 8
    %v595 = vpop.permute.xlu0 %594
    %596 = vrot.lane.b32.xlu0 %v63, 8
    %v597 = vpop.permute.xlu0 %596
    %598 = vrot.lane.b32.xlu0 %v64, 8
    %v599 = vpop.permute.xlu0 %598
    %600 = vrot.lane.b32.xlu0 %v65, 8
    %v601 = vpop.permute.xlu0 %600
    %602 = vrot.lane.b32.xlu0 %v66, 8
    %v603 = vpop.permute.xlu0 %602
    %604 = vrot.lane.b32.xlu0 %v67, 8
    %v605 = vpop.permute.xlu0 %604
    %606 = vrot.lane.b32.xlu0 %v68, 8
    %v607 = vpop.permute.xlu0 %606
    %608 = vrot.lane.b32.xlu0 %v69, 8
    %v609 = vpop.permute.xlu0 %608
    %610 = vrot.lane.b32.xlu0 %v70, 8
    %v611 = vpop.permute.xlu0 %610
    %612 = vrot.lane.b32.xlu0 %v71, 8
    %v613 = vpop.permute.xlu0 %612
    %614 = vrot.lane.b32.xlu0 %v72, 8
    %v615 = vpop.permute.xlu0 %614
    %616 = vrot.lane.b32.xlu0 %v73, 8
    %v617 = vpop.permute.xlu0 %616
    %618 = vrot.lane.b32.xlu0 %v74, 8
    %v619 = vpop.permute.xlu0 %618
    %620 = vrot.lane.b32.xlu0 %v75, 8
    %v621 = vpop.permute.xlu0 %620
    %622 = vrot.lane.b32.xlu0 %v76, 8
    %v623 = vpop.permute.xlu0 %622
    %624 = vrot.lane.b32.xlu0 %v77, 8
    %v625 = vpop.permute.xlu0 %624
    %626 = vrot.lane.b32.xlu0 %v78, 8
    %v627 = vpop.permute.xlu0 %626
    %628 = vrot.lane.b32.xlu0 %v79, 8
    %v629 = vpop.permute.xlu0 %628
    %630 = vrot.lane.b32.xlu0 %v80, 8
    %v631 = vpop.permute.xlu0 %630
    %632 = vrot.lane.b32.xlu0 %v81, 8
    %v633 = vpop.permute.xlu0 %632
    %634 = vrot.lane.b32.xlu0 %v82, 8
    %v635 = vpop.permute.xlu0 %634
    %636 = vrot.lane.b32.xlu0 %v83, 8
    %v637 = vpop.permute.xlu0 %636
    %638 = vrot.lane.b32.xlu0 %v84, 8
    %v639 = vpop.permute.xlu0 %638
    %640 = vrot.lane.b32.xlu0 %v85, 8
    %v641 = vpop.permute.xlu0 %640
    %642 = vrot.lane.b32.xlu0 %v86, 8
    %v643 = vpop.permute.xlu0 %642
    %644 = vrot.lane.b32.xlu0 %v87, 8
    %v645 = vpop.permute.xlu0 %644
    %646 = vrot.lane.b32.xlu0 %v88, 8
    %v647 = vpop.permute.xlu0 %646
    %740 = vrot.lane.b32.xlu0 %v349, 16
    %v741 = vpop.permute.xlu0 %740
    %742 = vrot.lane.b32.xlu0 %v471, 16
    %v743 = vpop.permute.xlu0 %742
    %744 = vrot.lane.b32.xlu0 %v352, 16
    %v745 = vpop.permute.xlu0 %744
    %746 = vrot.lane.b32.xlu0 %v472, 16
    %v747 = vpop.permute.xlu0 %746
    %748 = vrot.lane.b32.xlu0 %v355, 16
    %v749 = vpop.permute.xlu0 %748
    %750 = vrot.lane.b32.xlu0 %v473, 16
    %v751 = vpop.permute.xlu0 %750
    %752 = vrot.lane.b32.xlu0 %v358, 16
    %v753 = vpop.permute.xlu0 %752
    %754 = vrot.lane.b32.xlu0 %v474, 16
    %v755 = vpop.permute.xlu0 %754
    %756 = vrot.lane.b32.xlu0 %v361, 16
    %v757 = vpop.permute.xlu0 %756
    %758 = vrot.lane.b32.xlu0 %v475, 16
    %v759 = vpop.permute.xlu0 %758
    %760 = vrot.lane.b32.xlu0 %v364, 16
    %v761 = vpop.permute.xlu0 %760
    %762 = vrot.lane.b32.xlu0 %v476, 16
    %v763 = vpop.permute.xlu0 %762
    %764 = vrot.lane.b32.xlu0 %v367, 16
    %v765 = vpop.permute.xlu0 %764
    %766 = vrot.lane.b32.xlu0 %v477, 16
    %v767 = vpop.permute.xlu0 %766
    %768 = vrot.lane.b32.xlu0 %v370, 16
    %v769 = vpop.permute.xlu0 %768
    %770 = vrot.lane.b32.xlu0 %v478, 16
    %v771 = vpop.permute.xlu0 %770
    %772 = vrot.lane.b32.xlu0 %v373, 16
    %v773 = vpop.permute.xlu0 %772
    %774 = vrot.lane.b32.xlu0 %v479, 16
    %v775 = vpop.permute.xlu0 %774
    %776 = vrot.lane.b32.xlu0 %v376, 16
    %v777 = vpop.permute.xlu0 %776
    %778 = vrot.lane.b32.xlu0 %v480, 16
    %v779 = vpop.permute.xlu0 %778
    %780 = vrot.lane.b32.xlu0 %v379, 16
    %v781 = vpop.permute.xlu0 %780
    %782 = vrot.lane.b32.xlu0 %v481, 16
    %v783 = vpop.permute.xlu0 %782
    %784 = vrot.lane.b32.xlu0 %v382, 16
    %v785 = vpop.permute.xlu0 %784
    %786 = vrot.lane.b32.xlu0 %v482, 16
    %v787 = vpop.permute.xlu0 %786
    %788 = vrot.lane.b32.xlu0 %v385, 16
    %v789 = vpop.permute.xlu0 %788
    %790 = vrot.lane.b32.xlu0 %v483, 16
    %v791 = vpop.permute.xlu0 %790
    %792 = vrot.lane.b32.xlu0 %v388, 16
    %v793 = vpop.permute.xlu0 %792
    %794 = vrot.lane.b32.xlu0 %v484, 16
    %v795 = vpop.permute.xlu0 %794
    %796 = vrot.lane.b32.xlu0 %v391, 16
    %v797 = vpop.permute.xlu0 %796
    %798 = vrot.lane.b32.xlu0 %v485, 16
    %v799 = vpop.permute.xlu0 %798
    %800 = vrot.lane.b32.xlu0 %v394, 16
    %v801 = vpop.permute.xlu0 %800
    %802 = vrot.lane.b32.xlu0 %v486, 16
    %v803 = vpop.permute.xlu0 %802
    %804 = vrot.lane.b32.xlu0 %v397, 16
    %v805 = vpop.permute.xlu0 %804
    %806 = vrot.lane.b32.xlu0 %v487, 16
    %v807 = vpop.permute.xlu0 %806
    %808 = vrot.lane.b32.xlu0 %v400, 16
    %v809 = vpop.permute.xlu0 %808
    %810 = vrot.lane.b32.xlu0 %v488, 16
    %v811 = vpop.permute.xlu0 %810
    %812 = vrot.lane.b32.xlu0 %v403, 16
    %v813 = vpop.permute.xlu0 %812
    %814 = vrot.lane.b32.xlu0 %v489, 16
    %v815 = vpop.permute.xlu0 %814
    %816 = vrot.lane.b32.xlu0 %v406, 16
    %v817 = vpop.permute.xlu0 %816
    %818 = vrot.lane.b32.xlu0 %v490, 16
    %v819 = vpop.permute.xlu0 %818
    %820 = vrot.lane.b32.xlu0 %v409, 16
    %v821 = vpop.permute.xlu0 %820
    %822 = vrot.lane.b32.xlu0 %v491, 16
    %v823 = vpop.permute.xlu0 %822
    %824 = vrot.lane.b32.xlu0 %v412, 16
    %v825 = vpop.permute.xlu0 %824
    %826 = vrot.lane.b32.xlu0 %v492, 16
    %v827 = vpop.permute.xlu0 %826
    %828 = vrot.lane.b32.xlu0 %v415, 16
    %v829 = vpop.permute.xlu0 %828
    %830 = vrot.lane.b32.xlu0 %v493, 16
    %v831 = vpop.permute.xlu0 %830
    %832 = vrot.lane.b32.xlu0 %v418, 16
    %v833 = vpop.permute.xlu0 %832
    %834 = vrot.lane.b32.xlu0 %v494, 16
    %v835 = vpop.permute.xlu0 %834
    %836 = vrot.lane.b32.xlu0 %v421, 16
    %v837 = vpop.permute.xlu0 %836
    %838 = vrot.lane.b32.xlu0 %v495, 16
    %v839 = vpop.permute.xlu0 %838
    %840 = vrot.lane.b32.xlu0 %v424, 16
    %v841 = vpop.permute.xlu0 %840
    %842 = vrot.lane.b32.xlu0 %v496, 16
    %v843 = vpop.permute.xlu0 %842
    %844 = vrot.lane.b32.xlu0 %v427, 16
    %v845 = vpop.permute.xlu0 %844
    %846 = vrot.lane.b32.xlu0 %v497, 16
    %v847 = vpop.permute.xlu0 %846
    %848 = vrot.lane.b32.xlu0 %v430, 16
    %v849 = vpop.permute.xlu0 %848
    %850 = vrot.lane.b32.xlu0 %v498, 16
    %v851 = vpop.permute.xlu0 %850
    %852 = vrot.lane.b32.xlu0 %v433, 16
    %v853 = vpop.permute.xlu0 %852
    %854 = vrot.lane.b32.xlu0 %v499, 16
    %v855 = vpop.permute.xlu0 %854
    %856 = vrot.lane.b32.xlu0 %v436, 16
    %v857 = vpop.permute.xlu0 %856
    %858 = vrot.lane.b32.xlu0 %v500, 16
    %v859 = vpop.permute.xlu0 %858
    %860 = vrot.lane.b32.xlu0 %v439, 16
    %v861 = vpop.permute.xlu0 %860
    %862 = vrot.lane.b32.xlu0 %v501, 16
    %v863 = vpop.permute.xlu0 %862
    %958 = vrot.lane.b32.xlu0 %v317, 24
    %v959 = vpop.permute.xlu0 %958
    %960 = vrot.lane.b32.xlu0 %v166, 24
    %v961 = vpop.permute.xlu0 %960
    %962 = vrot.lane.b32.xlu0 %v318, 24
    %v963 = vpop.permute.xlu0 %962
    %964 = vrot.lane.b32.xlu0 %v169, 24
    %v965 = vpop.permute.xlu0 %964
    %966 = vrot.lane.b32.xlu0 %v319, 24
    %v967 = vpop.permute.xlu0 %966
    %968 = vrot.lane.b32.xlu0 %v172, 24
    %v969 = vpop.permute.xlu0 %968
    %970 = vrot.lane.b32.xlu0 %v320, 24
    %v971 = vpop.permute.xlu0 %970
    %972 = vrot.lane.b32.xlu0 %v175, 24
    %v973 = vpop.permute.xlu0 %972
    %974 = vrot.lane.b32.xlu0 %v321, 24
    %v975 = vpop.permute.xlu0 %974
    %976 = vrot.lane.b32.xlu0 %v178, 24
    %v977 = vpop.permute.xlu0 %976
    %978 = vrot.lane.b32.xlu0 %v322, 24
    %v979 = vpop.permute.xlu0 %978
    %980 = vrot.lane.b32.xlu0 %v181, 24
    %v981 = vpop.permute.xlu0 %980
    %982 = vrot.lane.b32.xlu0 %v323, 24
    %v983 = vpop.permute.xlu0 %982
    %984 = vrot.lane.b32.xlu0 %v184, 24
    %v985 = vpop.permute.xlu0 %984
    %986 = vrot.lane.b32.xlu0 %v324, 24
    %v987 = vpop.permute.xlu0 %986
    %988 = vrot.lane.b32.xlu0 %v187, 24
    %v989 = vpop.permute.xlu0 %988
    %990 = vrot.lane.b32.xlu0 %v325, 24
    %v991 = vpop.permute.xlu0 %990
    %992 = vrot.lane.b32.xlu0 %v190, 24
    %v993 = vpop.permute.xlu0 %992
    %994 = vrot.lane.b32.xlu0 %v326, 24
    %v995 = vpop.permute.xlu0 %994
    %996 = vrot.lane.b32.xlu0 %v193, 24
    %v997 = vpop.permute.xlu0 %996
    %998 = vrot.lane.b32.xlu0 %v327, 24
    %v999 = vpop.permute.xlu0 %998
    %1000 = vrot.lane.b32.xlu0 %v196, 24
    %v1001 = vpop.permute.xlu0 %1000
    %1002 = vrot.lane.b32.xlu0 %v328, 24
    %v1003 = vpop.permute.xlu0 %1002
    %1004 = vrot.lane.b32.xlu0 %v199, 24
    %v1005 = vpop.permute.xlu0 %1004
    %1006 = vrot.lane.b32.xlu0 %v329, 24
    %v1007 = vpop.permute.xlu0 %1006
    %1008 = vrot.lane.b32.xlu0 %v202, 24
    %v1009 = vpop.permute.xlu0 %1008
    %1010 = vrot.lane.b32.xlu0 %v330, 24
    %v1011 = vpop.permute.xlu0 %1010
    %1012 = vrot.lane.b32.xlu0 %v205, 24
    %v1013 = vpop.permute.xlu0 %1012
    %1014 = vrot.lane.b32.xlu0 %v331, 24
    %v1015 = vpop.permute.xlu0 %1014
    %1016 = vrot.lane.b32.xlu0 %v208, 24
    %v1017 = vpop.permute.xlu0 %1016
    %1018 = vrot.lane.b32.xlu0 %v514, 24
    %v1019 = vpop.permute.xlu0 %1018
    %1020 = vrot.lane.b32.xlu0 %v508, 24
    %v1021 = vpop.permute.xlu0 %1020
    %1022 = vrot.lane.b32.xlu0 %v332, 24
    %v1023 = vpop.permute.xlu0 %1022
    %1024 = vrot.lane.b32.xlu0 %v211, 24
    %v1025 = vpop.permute.xlu0 %1024
    %1026 = vrot.lane.b32.xlu0 %v333, 24
    %v1027 = vpop.permute.xlu0 %1026
    %1028 = vrot.lane.b32.xlu0 %v214, 24
    %v1029 = vpop.permute.xlu0 %1028
    %1030 = vrot.lane.b32.xlu0 %v334, 24
    %v1031 = vpop.permute.xlu0 %1030
    %1032 = vrot.lane.b32.xlu0 %v217, 24
    %v1033 = vpop.permute.xlu0 %1032
    %1034 = vrot.lane.b32.xlu0 %v335, 24
    %v1035 = vpop.permute.xlu0 %1034
    %1036 = vrot.lane.b32.xlu0 %v220, 24
    %v1037 = vpop.permute.xlu0 %1036
    %1038 = vrot.lane.b32.xlu0 %v336, 24
    %v1039 = vpop.permute.xlu0 %1038
    %1040 = vrot.lane.b32.xlu0 %v223, 24
    %v1041 = vpop.permute.xlu0 %1040
    %1042 = vrot.lane.b32.xlu0 %v337, 24
    %v1043 = vpop.permute.xlu0 %1042
    %1044 = vrot.lane.b32.xlu0 %v226, 24
    %v1045 = vpop.permute.xlu0 %1044
    %1046 = vrot.lane.b32.xlu0 %v338, 24
    %v1047 = vpop.permute.xlu0 %1046
    %1048 = vrot.lane.b32.xlu0 %v229, 24
    %v1049 = vpop.permute.xlu0 %1048
    %1050 = vrot.lane.b32.xlu0 %v339, 24
    %v1051 = vpop.permute.xlu0 %1050
    %1052 = vrot.lane.b32.xlu0 %v232, 24
    %v1053 = vpop.permute.xlu0 %1052
    %1054 = vrot.lane.b32.xlu0 %v340, 24
    %v1055 = vpop.permute.xlu0 %1054
    %1056 = vrot.lane.b32.xlu0 %v235, 24
    %v1057 = vpop.permute.xlu0 %1056
    %1058 = vrot.lane.b32.xlu0 %v341, 24
    %v1059 = vpop.permute.xlu0 %1058
    %1060 = vrot.lane.b32.xlu0 %v238, 24
    %v1061 = vpop.permute.xlu0 %1060
    %1062 = vrot.lane.b32.xlu0 %v342, 24
    %v1063 = vpop.permute.xlu0 %1062
    %1064 = vrot.lane.b32.xlu0 %v241, 24
    %v1065 = vpop.permute.xlu0 %1064
    %1066 = vrot.lane.b32.xlu0 %v343, 24
    %v1067 = vpop.permute.xlu0 %1066
    %1068 = vrot.lane.b32.xlu0 %v244, 24
    %v1069 = vpop.permute.xlu0 %1068
    %1070 = vrot.lane.b32.xlu0 %v344, 24
    %v1071 = vpop.permute.xlu0 %1070
    %1072 = vrot.lane.b32.xlu0 %v247, 24
    %v1073 = vpop.permute.xlu0 %1072
    %1074 = vrot.lane.b32.xlu0 %v345, 24
    %v1075 = vpop.permute.xlu0 %1074
    %1076 = vrot.lane.b32.xlu0 %v250, 24
    %v1077 = vpop.permute.xlu0 %1076
    %1078 = vrot.lane.b32.xlu0 %v346, 24
    %v1079 = vpop.permute.xlu0 %1078
    %1080 = vrot.lane.b32.xlu0 %v253, 24
    %v1081 = vpop.permute.xlu0 %1080
    %1082 = vrot.lane.b32.xlu0 %v515, 24
    %v1083 = vpop.permute.xlu0 %1082
    %1084 = vrot.lane.b32.xlu0 %v511, 24
    %v1085 = vpop.permute.xlu0 %1084
    %1150 = vrot.lane.b32.xlu0 %v27, 32
    %v1151 = vpop.permute.xlu0 %1150
    %1152 = vrot.lane.b32.xlu0 %v28, 32
    %v1153 = vpop.permute.xlu0 %1152
    %1154 = vrot.lane.b32.xlu0 %v29, 32
    %v1155 = vpop.permute.xlu0 %1154
    %1156 = vrot.lane.b32.xlu0 %v30, 32
    %v1157 = vpop.permute.xlu0 %1156
    %1158 = vrot.lane.b32.xlu0 %v31, 32
    %v1159 = vpop.permute.xlu0 %1158
    %1160 = vrot.lane.b32.xlu0 %v32, 32
    %v1161 = vpop.permute.xlu0 %1160
    %1162 = vrot.lane.b32.xlu0 %v33, 32
    %v1163 = vpop.permute.xlu0 %1162
    %1164 = vrot.lane.b32.xlu0 %v34, 32
    %v1165 = vpop.permute.xlu0 %1164
    %1166 = vrot.lane.b32.xlu0 %v35, 32
    %v1167 = vpop.permute.xlu0 %1166
    %1168 = vrot.lane.b32.xlu0 %v36, 32
    %v1169 = vpop.permute.xlu0 %1168
    %1170 = vrot.lane.b32.xlu0 %v37, 32
    %v1171 = vpop.permute.xlu0 %1170
    %1172 = vrot.lane.b32.xlu0 %v38, 32
    %v1173 = vpop.permute.xlu0 %1172
    %1174 = vrot.lane.b32.xlu0 %v39, 32
    %v1175 = vpop.permute.xlu0 %1174
    %1176 = vrot.lane.b32.xlu0 %v40, 32
    %v1177 = vpop.permute.xlu0 %1176
    %1178 = vrot.lane.b32.xlu0 %v41, 32
    %v1179 = vpop.permute.xlu0 %1178
    %1180 = vrot.lane.b32.xlu0 %v42, 32
    %v1181 = vpop.permute.xlu0 %1180
    %1182 = vrot.lane.b32.xlu0 %v43, 32
    %v1183 = vpop.permute.xlu0 %1182
    %1184 = vrot.lane.b32.xlu0 %v44, 32
    %v1185 = vpop.permute.xlu0 %1184
    %1186 = vrot.lane.b32.xlu0 %v45, 32
    %v1187 = vpop.permute.xlu0 %1186
    %1188 = vrot.lane.b32.xlu0 %v46, 32
    %v1189 = vpop.permute.xlu0 %1188
    %1190 = vrot.lane.b32.xlu0 %v47, 32
    %v1191 = vpop.permute.xlu0 %1190
    %1192 = vrot.lane.b32.xlu0 %v48, 32
    %v1193 = vpop.permute.xlu0 %1192
    %1194 = vrot.lane.b32.xlu0 %v49, 32
    %v1195 = vpop.permute.xlu0 %1194
    %1196 = vrot.lane.b32.xlu0 %v50, 32
    %v1197 = vpop.permute.xlu0 %1196
    %1198 = vrot.lane.b32.xlu0 %v51, 32
    %v1199 = vpop.permute.xlu0 %1198
    %1200 = vrot.lane.b32.xlu0 %v52, 32
    %v1201 = vpop.permute.xlu0 %1200
    %1202 = vrot.lane.b32.xlu0 %v53, 32
    %v1203 = vpop.permute.xlu0 %1202
    %1204 = vrot.lane.b32.xlu0 %v54, 32
    %v1205 = vpop.permute.xlu0 %1204
    %1206 = vrot.lane.b32.xlu0 %v55, 32
    %v1207 = vpop.permute.xlu0 %1206
    %1208 = vrot.lane.b32.xlu0 %v56, 32
    %v1209 = vpop.permute.xlu0 %1208
    %1210 = vrot.lane.b32.xlu0 %v57, 32
    %v1211 = vpop.permute.xlu0 %1210
    %1212 = vrot.lane.b32.xlu0 %v58, 32
    %v1213 = vpop.permute.xlu0 %1212
    %1214 = vrot.lane.b32.xlu0 %v59, 32
    %v1215 = vpop.permute.xlu0 %1214
    %1216 = vrot.lane.b32.xlu0 %v60, 32
    %v1217 = vpop.permute.xlu0 %1216
    %1218 = vrot.lane.b32.xlu0 %v61, 32
    %v1219 = vpop.permute.xlu0 %1218
    %1220 = vrot.lane.b32.xlu0 %v62, 32
    %v1221 = vpop.permute.xlu0 %1220
    %1222 = vrot.lane.b32.xlu0 %v63, 32
    %v1223 = vpop.permute.xlu0 %1222
    %1224 = vrot.lane.b32.xlu0 %v64, 32
    %v1225 = vpop.permute.xlu0 %1224
    %1226 = vrot.lane.b32.xlu0 %v65, 32
    %v1227 = vpop.permute.xlu0 %1226
    %1228 = vrot.lane.b32.xlu0 %v66, 32
    %v1229 = vpop.permute.xlu0 %1228
    %1230 = vrot.lane.b32.xlu0 %v67, 32
    %v1231 = vpop.permute.xlu0 %1230
    %1232 = vrot.lane.b32.xlu0 %v68, 32
    %v1233 = vpop.permute.xlu0 %1232
    %1234 = vrot.lane.b32.xlu0 %v69, 32
    %v1235 = vpop.permute.xlu0 %1234
    %1236 = vrot.lane.b32.xlu0 %v70, 32
    %v1237 = vpop.permute.xlu0 %1236
    %1238 = vrot.lane.b32.xlu0 %v71, 32
    %v1239 = vpop.permute.xlu0 %1238
    %1240 = vrot.lane.b32.xlu0 %v72, 32
    %v1241 = vpop.permute.xlu0 %1240
    %1242 = vrot.lane.b32.xlu0 %v73, 32
    %v1243 = vpop.permute.xlu0 %1242
    %1244 = vrot.lane.b32.xlu0 %v74, 32
    %v1245 = vpop.permute.xlu0 %1244
    %1246 = vrot.lane.b32.xlu0 %v75, 32
    %v1247 = vpop.permute.xlu0 %1246
    %1248 = vrot.lane.b32.xlu0 %v76, 32
    %v1249 = vpop.permute.xlu0 %1248
    %1250 = vrot.lane.b32.xlu0 %v77, 32
    %v1251 = vpop.permute.xlu0 %1250
    %1252 = vrot.lane.b32.xlu0 %v78, 32
    %v1253 = vpop.permute.xlu0 %1252
    %1254 = vrot.lane.b32.xlu0 %v79, 32
    %v1255 = vpop.permute.xlu0 %1254
    %1256 = vrot.lane.b32.xlu0 %v80, 32
    %v1257 = vpop.permute.xlu0 %1256
    %1258 = vrot.lane.b32.xlu0 %v81, 32
    %v1259 = vpop.permute.xlu0 %1258
    %1260 = vrot.lane.b32.xlu0 %v82, 32
    %v1261 = vpop.permute.xlu0 %1260
    %1262 = vrot.lane.b32.xlu0 %v83, 32
    %v1263 = vpop.permute.xlu0 %1262
    %1264 = vrot.lane.b32.xlu0 %v84, 32
    %v1265 = vpop.permute.xlu0 %1264
    %1266 = vrot.lane.b32.xlu0 %v85, 32
    %v1267 = vpop.permute.xlu0 %1266
    %1268 = vrot.lane.b32.xlu0 %v86, 32
    %v1269 = vpop.permute.xlu0 %1268
    %1270 = vrot.lane.b32.xlu0 %v87, 32
    %v1271 = vpop.permute.xlu0 %1270
    %1272 = vrot.lane.b32.xlu0 %v88, 32
    %v1273 = vpop.permute.xlu0 %1272
    %1274 = vrot.lane.b32.xlu0 %v89, 32
    %v1275 = vpop.permute.xlu0 %1274
    %1276 = vrot.lane.b32.xlu0 %v90, 32
    %v1277 = vpop.permute.xlu0 %1276
    %1344 = vrot.lane.b32.xlu0 %v352, 40
    %v1345 = vpop.permute.xlu0 %1344
    %1346 = vrot.lane.b32.xlu0 %v472, 40
    %v1347 = vpop.permute.xlu0 %1346
    %1348 = vrot.lane.b32.xlu0 %v355, 40
    %v1349 = vpop.permute.xlu0 %1348
    %1350 = vrot.lane.b32.xlu0 %v473, 40
    %v1351 = vpop.permute.xlu0 %1350
    %1352 = vrot.lane.b32.xlu0 %v358, 40
    %v1353 = vpop.permute.xlu0 %1352
    %1354 = vrot.lane.b32.xlu0 %v474, 40
    %v1355 = vpop.permute.xlu0 %1354
    %1356 = vrot.lane.b32.xlu0 %v361, 40
    %v1357 = vpop.permute.xlu0 %1356
    %1358 = vrot.lane.b32.xlu0 %v475, 40
    %v1359 = vpop.permute.xlu0 %1358
    %1360 = vrot.lane.b32.xlu0 %v364, 40
    %v1361 = vpop.permute.xlu0 %1360
    %1362 = vrot.lane.b32.xlu0 %v476, 40
    %v1363 = vpop.permute.xlu0 %1362
    %1364 = vrot.lane.b32.xlu0 %v367, 40
    %v1365 = vpop.permute.xlu0 %1364
    %1366 = vrot.lane.b32.xlu0 %v477, 40
    %v1367 = vpop.permute.xlu0 %1366
    %1368 = vrot.lane.b32.xlu0 %v370, 40
    %v1369 = vpop.permute.xlu0 %1368
    %1370 = vrot.lane.b32.xlu0 %v478, 40
    %v1371 = vpop.permute.xlu0 %1370
    %1372 = vrot.lane.b32.xlu0 %v373, 40
    %v1373 = vpop.permute.xlu0 %1372
    %1374 = vrot.lane.b32.xlu0 %v479, 40
    %v1375 = vpop.permute.xlu0 %1374
    %1376 = vrot.lane.b32.xlu0 %v376, 40
    %v1377 = vpop.permute.xlu0 %1376
    %1378 = vrot.lane.b32.xlu0 %v480, 40
    %v1379 = vpop.permute.xlu0 %1378
    %1380 = vrot.lane.b32.xlu0 %v379, 40
    %v1381 = vpop.permute.xlu0 %1380
    %1382 = vrot.lane.b32.xlu0 %v481, 40
    %v1383 = vpop.permute.xlu0 %1382
    %1384 = vrot.lane.b32.xlu0 %v382, 40
    %v1385 = vpop.permute.xlu0 %1384
    %1386 = vrot.lane.b32.xlu0 %v482, 40
    %v1387 = vpop.permute.xlu0 %1386
    %1388 = vrot.lane.b32.xlu0 %v385, 40
    %v1389 = vpop.permute.xlu0 %1388
    %1390 = vrot.lane.b32.xlu0 %v483, 40
    %v1391 = vpop.permute.xlu0 %1390
    %1392 = vrot.lane.b32.xlu0 %v388, 40
    %v1393 = vpop.permute.xlu0 %1392
    %1394 = vrot.lane.b32.xlu0 %v484, 40
    %v1395 = vpop.permute.xlu0 %1394
    %1396 = vrot.lane.b32.xlu0 %v391, 40
    %v1397 = vpop.permute.xlu0 %1396
    %1398 = vrot.lane.b32.xlu0 %v485, 40
    %v1399 = vpop.permute.xlu0 %1398
    %1400 = vrot.lane.b32.xlu0 %v394, 40
    %v1401 = vpop.permute.xlu0 %1400
    %1402 = vrot.lane.b32.xlu0 %v486, 40
    %v1403 = vpop.permute.xlu0 %1402
    %1404 = vrot.lane.b32.xlu0 %v518, 40
    %v1405 = vpop.permute.xlu0 %1404
    %1406 = vrot.lane.b32.xlu0 %v524, 40
    %v1407 = vpop.permute.xlu0 %1406
    %1408 = vrot.lane.b32.xlu0 %v397, 40
    %v1409 = vpop.permute.xlu0 %1408
    %1410 = vrot.lane.b32.xlu0 %v487, 40
    %v1411 = vpop.permute.xlu0 %1410
    %1412 = vrot.lane.b32.xlu0 %v400, 40
    %v1413 = vpop.permute.xlu0 %1412
    %1414 = vrot.lane.b32.xlu0 %v488, 40
    %v1415 = vpop.permute.xlu0 %1414
    %1416 = vrot.lane.b32.xlu0 %v403, 40
    %v1417 = vpop.permute.xlu0 %1416
    %1418 = vrot.lane.b32.xlu0 %v489, 40
    %v1419 = vpop.permute.xlu0 %1418
    %1420 = vrot.lane.b32.xlu0 %v406, 40
    %v1421 = vpop.permute.xlu0 %1420
    %1422 = vrot.lane.b32.xlu0 %v490, 40
    %v1423 = vpop.permute.xlu0 %1422
    %1424 = vrot.lane.b32.xlu0 %v409, 40
    %v1425 = vpop.permute.xlu0 %1424
    %1426 = vrot.lane.b32.xlu0 %v491, 40
    %v1427 = vpop.permute.xlu0 %1426
    %1428 = vrot.lane.b32.xlu0 %v412, 40
    %v1429 = vpop.permute.xlu0 %1428
    %1430 = vrot.lane.b32.xlu0 %v492, 40
    %v1431 = vpop.permute.xlu0 %1430
    %1432 = vrot.lane.b32.xlu0 %v415, 40
    %v1433 = vpop.permute.xlu0 %1432
    %1434 = vrot.lane.b32.xlu0 %v493, 40
    %v1435 = vpop.permute.xlu0 %1434
    %1436 = vrot.lane.b32.xlu0 %v418, 40
    %v1437 = vpop.permute.xlu0 %1436
    %1438 = vrot.lane.b32.xlu0 %v494, 40
    %v1439 = vpop.permute.xlu0 %1438
    %1440 = vrot.lane.b32.xlu0 %v421, 40
    %v1441 = vpop.permute.xlu0 %1440
    %1442 = vrot.lane.b32.xlu0 %v495, 40
    %v1443 = vpop.permute.xlu0 %1442
    %1444 = vrot.lane.b32.xlu0 %v424, 40
    %v1445 = vpop.permute.xlu0 %1444
    %1446 = vrot.lane.b32.xlu0 %v496, 40
    %v1447 = vpop.permute.xlu0 %1446
    %1448 = vrot.lane.b32.xlu0 %v427, 40
    %v1449 = vpop.permute.xlu0 %1448
    %1450 = vrot.lane.b32.xlu0 %v497, 40
    %v1451 = vpop.permute.xlu0 %1450
    %1452 = vrot.lane.b32.xlu0 %v430, 40
    %v1453 = vpop.permute.xlu0 %1452
    %1454 = vrot.lane.b32.xlu0 %v498, 40
    %v1455 = vpop.permute.xlu0 %1454
    %1456 = vrot.lane.b32.xlu0 %v433, 40
    %v1457 = vpop.permute.xlu0 %1456
    %1458 = vrot.lane.b32.xlu0 %v499, 40
    %v1459 = vpop.permute.xlu0 %1458
    %1460 = vrot.lane.b32.xlu0 %v436, 40
    %v1461 = vpop.permute.xlu0 %1460
    %1462 = vrot.lane.b32.xlu0 %v500, 40
    %v1463 = vpop.permute.xlu0 %1462
    %1464 = vrot.lane.b32.xlu0 %v439, 40
    %v1465 = vpop.permute.xlu0 %1464
    %1466 = vrot.lane.b32.xlu0 %v501, 40
    %v1467 = vpop.permute.xlu0 %1466
    %1468 = vrot.lane.b32.xlu0 %v521, 40
    %v1469 = vpop.permute.xlu0 %1468
    %1470 = vrot.lane.b32.xlu0 %v525, 40
    %v1471 = vpop.permute.xlu0 %1470
    %1537 = vrot.lane.b32.xlu0 %v318, 48
    %v1538 = vpop.permute.xlu0 %1537
    %1539 = vrot.lane.b32.xlu0 %v169, 48
    %v1540 = vpop.permute.xlu0 %1539
    %1541 = vrot.lane.b32.xlu0 %v319, 48
    %v1542 = vpop.permute.xlu0 %1541
    %1543 = vrot.lane.b32.xlu0 %v172, 48
    %v1544 = vpop.permute.xlu0 %1543
    %1545 = vrot.lane.b32.xlu0 %v320, 48
    %v1546 = vpop.permute.xlu0 %1545
    %1547 = vrot.lane.b32.xlu0 %v175, 48
    %v1548 = vpop.permute.xlu0 %1547
    %1549 = vrot.lane.b32.xlu0 %v321, 48
    %v1550 = vpop.permute.xlu0 %1549
    %1551 = vrot.lane.b32.xlu0 %v178, 48
    %v1552 = vpop.permute.xlu0 %1551
    %1553 = vrot.lane.b32.xlu0 %v322, 48
    %v1554 = vpop.permute.xlu0 %1553
    %1555 = vrot.lane.b32.xlu0 %v181, 48
    %v1556 = vpop.permute.xlu0 %1555
    %1557 = vrot.lane.b32.xlu0 %v323, 48
    %v1558 = vpop.permute.xlu0 %1557
    %1559 = vrot.lane.b32.xlu0 %v184, 48
    %v1560 = vpop.permute.xlu0 %1559
    %1561 = vrot.lane.b32.xlu0 %v324, 48
    %v1562 = vpop.permute.xlu0 %1561
    %1563 = vrot.lane.b32.xlu0 %v187, 48
    %v1564 = vpop.permute.xlu0 %1563
    %1565 = vrot.lane.b32.xlu0 %v325, 48
    %v1566 = vpop.permute.xlu0 %1565
    %1567 = vrot.lane.b32.xlu0 %v190, 48
    %v1568 = vpop.permute.xlu0 %1567
    %1569 = vrot.lane.b32.xlu0 %v326, 48
    %v1570 = vpop.permute.xlu0 %1569
    %1571 = vrot.lane.b32.xlu0 %v193, 48
    %v1572 = vpop.permute.xlu0 %1571
    %1573 = vrot.lane.b32.xlu0 %v327, 48
    %v1574 = vpop.permute.xlu0 %1573
    %1575 = vrot.lane.b32.xlu0 %v196, 48
    %v1576 = vpop.permute.xlu0 %1575
    %1577 = vrot.lane.b32.xlu0 %v328, 48
    %v1578 = vpop.permute.xlu0 %1577
    %1579 = vrot.lane.b32.xlu0 %v199, 48
    %v1580 = vpop.permute.xlu0 %1579
    %1581 = vrot.lane.b32.xlu0 %v329, 48
    %v1582 = vpop.permute.xlu0 %1581
    %1583 = vrot.lane.b32.xlu0 %v202, 48
    %v1584 = vpop.permute.xlu0 %1583
    %1585 = vrot.lane.b32.xlu0 %v330, 48
    %v1586 = vpop.permute.xlu0 %1585
    %1587 = vrot.lane.b32.xlu0 %v205, 48
    %v1588 = vpop.permute.xlu0 %1587
    %1589 = vrot.lane.b32.xlu0 %v331, 48
    %v1590 = vpop.permute.xlu0 %1589
    %1591 = vrot.lane.b32.xlu0 %v208, 48
    %v1592 = vpop.permute.xlu0 %1591
    %1593 = vrot.lane.b32.xlu0 %v514, 48
    %v1594 = vpop.permute.xlu0 %1593
    %1595 = vrot.lane.b32.xlu0 %v508, 48
    %v1596 = vpop.permute.xlu0 %1595
    %1597 = vrot.lane.b32.xlu0 %v316, 48
    %v1598 = vpop.permute.xlu0 %1597
    %1599 = vrot.lane.b32.xlu0 %v163, 48
    %v1600 = vpop.permute.xlu0 %1599
    %1601 = vrot.lane.b32.xlu0 %v333, 48
    %v1602 = vpop.permute.xlu0 %1601
    %1603 = vrot.lane.b32.xlu0 %v214, 48
    %v1604 = vpop.permute.xlu0 %1603
    %1605 = vrot.lane.b32.xlu0 %v334, 48
    %v1606 = vpop.permute.xlu0 %1605
    %1607 = vrot.lane.b32.xlu0 %v217, 48
    %v1608 = vpop.permute.xlu0 %1607
    %1609 = vrot.lane.b32.xlu0 %v335, 48
    %v1610 = vpop.permute.xlu0 %1609
    %1611 = vrot.lane.b32.xlu0 %v220, 48
    %v1612 = vpop.permute.xlu0 %1611
    %1613 = vrot.lane.b32.xlu0 %v336, 48
    %v1614 = vpop.permute.xlu0 %1613
    %1615 = vrot.lane.b32.xlu0 %v223, 48
    %v1616 = vpop.permute.xlu0 %1615
    %1617 = vrot.lane.b32.xlu0 %v337, 48
    %v1618 = vpop.permute.xlu0 %1617
    %1619 = vrot.lane.b32.xlu0 %v226, 48
    %v1620 = vpop.permute.xlu0 %1619
    %1621 = vrot.lane.b32.xlu0 %v338, 48
    %v1622 = vpop.permute.xlu0 %1621
    %1623 = vrot.lane.b32.xlu0 %v229, 48
    %v1624 = vpop.permute.xlu0 %1623
    %1625 = vrot.lane.b32.xlu0 %v339, 48
    %v1626 = vpop.permute.xlu0 %1625
    %1627 = vrot.lane.b32.xlu0 %v232, 48
    %v1628 = vpop.permute.xlu0 %1627
    %1629 = vrot.lane.b32.xlu0 %v340, 48
    %v1630 = vpop.permute.xlu0 %1629
    %1631 = vrot.lane.b32.xlu0 %v235, 48
    %v1632 = vpop.permute.xlu0 %1631
    %1633 = vrot.lane.b32.xlu0 %v341, 48
    %v1634 = vpop.permute.xlu0 %1633
    %1635 = vrot.lane.b32.xlu0 %v238, 48
    %v1636 = vpop.permute.xlu0 %1635
    %1637 = vrot.lane.b32.xlu0 %v342, 48
    %v1638 = vpop.permute.xlu0 %1637
    %1639 = vrot.lane.b32.xlu0 %v241, 48
    %v1640 = vpop.permute.xlu0 %1639
    %1641 = vrot.lane.b32.xlu0 %v343, 48
    %v1642 = vpop.permute.xlu0 %1641
    %1643 = vrot.lane.b32.xlu0 %v244, 48
    %v1644 = vpop.permute.xlu0 %1643
    %1645 = vrot.lane.b32.xlu0 %v344, 48
    %v1646 = vpop.permute.xlu0 %1645
    %1647 = vrot.lane.b32.xlu0 %v247, 48
    %v1648 = vpop.permute.xlu0 %1647
    %1649 = vrot.lane.b32.xlu0 %v345, 48
    %v1650 = vpop.permute.xlu0 %1649
    %1651 = vrot.lane.b32.xlu0 %v250, 48
    %v1652 = vpop.permute.xlu0 %1651
    %1653 = vrot.lane.b32.xlu0 %v346, 48
    %v1654 = vpop.permute.xlu0 %1653
    %1655 = vrot.lane.b32.xlu0 %v253, 48
    %v1656 = vpop.permute.xlu0 %1655
    %1657 = vrot.lane.b32.xlu0 %v515, 48
    %v1658 = vpop.permute.xlu0 %1657
    %1659 = vrot.lane.b32.xlu0 %v511, 48
    %v1660 = vpop.permute.xlu0 %1659
    %1723 = vrot.lane.b32.xlu0 %v29, 56
    %v1724 = vpop.permute.xlu0 %1723
    %1725 = vrot.lane.b32.xlu0 %v30, 56
    %v1726 = vpop.permute.xlu0 %1725
    %1727 = vrot.lane.b32.xlu0 %v31, 56
    %v1728 = vpop.permute.xlu0 %1727
    %1729 = vrot.lane.b32.xlu0 %v32, 56
    %v1730 = vpop.permute.xlu0 %1729
    %1731 = vrot.lane.b32.xlu0 %v33, 56
    %v1732 = vpop.permute.xlu0 %1731
    %1733 = vrot.lane.b32.xlu0 %v34, 56
    %v1734 = vpop.permute.xlu0 %1733
    %1735 = vrot.lane.b32.xlu0 %v35, 56
    %v1736 = vpop.permute.xlu0 %1735
    %1737 = vrot.lane.b32.xlu0 %v36, 56
    %v1738 = vpop.permute.xlu0 %1737
    %1739 = vrot.lane.b32.xlu0 %v37, 56
    %v1740 = vpop.permute.xlu0 %1739
    %1741 = vrot.lane.b32.xlu0 %v38, 56
    %v1742 = vpop.permute.xlu0 %1741
    %1743 = vrot.lane.b32.xlu0 %v39, 56
    %v1744 = vpop.permute.xlu0 %1743
    %1745 = vrot.lane.b32.xlu0 %v40, 56
    %v1746 = vpop.permute.xlu0 %1745
    %1747 = vrot.lane.b32.xlu0 %v41, 56
    %v1748 = vpop.permute.xlu0 %1747
    %1749 = vrot.lane.b32.xlu0 %v42, 56
    %v1750 = vpop.permute.xlu0 %1749
    %1751 = vrot.lane.b32.xlu0 %v43, 56
    %v1752 = vpop.permute.xlu0 %1751
    %1753 = vrot.lane.b32.xlu0 %v44, 56
    %v1754 = vpop.permute.xlu0 %1753
    %1755 = vrot.lane.b32.xlu0 %v45, 56
    %v1756 = vpop.permute.xlu0 %1755
    %1757 = vrot.lane.b32.xlu0 %v46, 56
    %v1758 = vpop.permute.xlu0 %1757
    %1759 = vrot.lane.b32.xlu0 %v47, 56
    %v1760 = vpop.permute.xlu0 %1759
    %1761 = vrot.lane.b32.xlu0 %v48, 56
    %v1762 = vpop.permute.xlu0 %1761
    %1763 = vrot.lane.b32.xlu0 %v49, 56
    %v1764 = vpop.permute.xlu0 %1763
    %1765 = vrot.lane.b32.xlu0 %v50, 56
    %v1766 = vpop.permute.xlu0 %1765
    %1767 = vrot.lane.b32.xlu0 %v51, 56
    %v1768 = vpop.permute.xlu0 %1767
    %1769 = vrot.lane.b32.xlu0 %v52, 56
    %v1770 = vpop.permute.xlu0 %1769
    %1771 = vrot.lane.b32.xlu0 %v53, 56
    %v1772 = vpop.permute.xlu0 %1771
    %1773 = vrot.lane.b32.xlu0 %v54, 56
    %v1774 = vpop.permute.xlu0 %1773
    %1775 = vrot.lane.b32.xlu0 %v55, 56
    %v1776 = vpop.permute.xlu0 %1775
    %1777 = vrot.lane.b32.xlu0 %v56, 56
    %v1778 = vpop.permute.xlu0 %1777
    %1779 = vrot.lane.b32.xlu0 %v57, 56
    %v1780 = vpop.permute.xlu0 %1779
    %1781 = vrot.lane.b32.xlu0 %v58, 56
    %v1782 = vpop.permute.xlu0 %1781
    %1783 = vrot.lane.b32.xlu0 0.0, 56
    %v1784 = vpop.permute.xlu0 %1783
    %1785 = vrot.lane.b32.xlu0 %v61, 56
    %v1786 = vpop.permute.xlu0 %1785
    %1787 = vrot.lane.b32.xlu0 %v62, 56
    %v1788 = vpop.permute.xlu0 %1787
    %1789 = vrot.lane.b32.xlu0 %v63, 56
    %v1790 = vpop.permute.xlu0 %1789
    %1791 = vrot.lane.b32.xlu0 %v64, 56
    %v1792 = vpop.permute.xlu0 %1791
    %1793 = vrot.lane.b32.xlu0 %v65, 56
    %v1794 = vpop.permute.xlu0 %1793
    %1795 = vrot.lane.b32.xlu0 %v66, 56
    %v1796 = vpop.permute.xlu0 %1795
    %1797 = vrot.lane.b32.xlu0 %v67, 56
    %v1798 = vpop.permute.xlu0 %1797
    %1799 = vrot.lane.b32.xlu0 %v68, 56
    %v1800 = vpop.permute.xlu0 %1799
    %1801 = vrot.lane.b32.xlu0 %v69, 56
    %v1802 = vpop.permute.xlu0 %1801
    %1803 = vrot.lane.b32.xlu0 %v70, 56
    %v1804 = vpop.permute.xlu0 %1803
    %1805 = vrot.lane.b32.xlu0 %v71, 56
    %v1806 = vpop.permute.xlu0 %1805
    %1807 = vrot.lane.b32.xlu0 %v72, 56
    %v1808 = vpop.permute.xlu0 %1807
    %1809 = vrot.lane.b32.xlu0 %v73, 56
    %v1810 = vpop.permute.xlu0 %1809
    %1811 = vrot.lane.b32.xlu0 %v74, 56
    %v1812 = vpop.permute.xlu0 %1811
    %1813 = vrot.lane.b32.xlu0 %v75, 56
    %v1814 = vpop.permute.xlu0 %1813
    %1815 = vrot.lane.b32.xlu0 %v76, 56
    %v1816 = vpop.permute.xlu0 %1815
    %1817 = vrot.lane.b32.xlu0 %v77, 56
    %v1818 = vpop.permute.xlu0 %1817
    %1819 = vrot.lane.b32.xlu0 %v78, 56
    %v1820 = vpop.permute.xlu0 %1819
    %1821 = vrot.lane.b32.xlu0 %v79, 56
    %v1822 = vpop.permute.xlu0 %1821
    %1823 = vrot.lane.b32.xlu0 %v80, 56
    %v1824 = vpop.permute.xlu0 %1823
    %1825 = vrot.lane.b32.xlu0 %v81, 56
    %v1826 = vpop.permute.xlu0 %1825
    %1827 = vrot.lane.b32.xlu0 %v82, 56
    %v1828 = vpop.permute.xlu0 %1827
    %1829 = vrot.lane.b32.xlu0 %v83, 56
    %v1830 = vpop.permute.xlu0 %1829
    %1831 = vrot.lane.b32.xlu0 %v84, 56
    %v1832 = vpop.permute.xlu0 %1831
    %1833 = vrot.lane.b32.xlu0 %v85, 56
    %v1834 = vpop.permute.xlu0 %1833
    %1835 = vrot.lane.b32.xlu0 %v86, 56
    %v1836 = vpop.permute.xlu0 %1835
    %1837 = vrot.lane.b32.xlu0 %v87, 56
    %v1838 = vpop.permute.xlu0 %1837
    %1839 = vrot.lane.b32.xlu0 %v88, 56
    %v1840 = vpop.permute.xlu0 %1839
    %1841 = vrot.lane.b32.xlu0 %v89, 56
    %v1842 = vpop.permute.xlu0 %1841
    %1843 = vrot.lane.b32.xlu0 %v90, 56
    %v1844 = vpop.permute.xlu0 %1843
    %1906 = vrot.lane.b32.xlu0 %v355, 64
    %v1907 = vpop.permute.xlu0 %1906
    %1908 = vrot.lane.b32.xlu0 %v473, 64
    %v1909 = vpop.permute.xlu0 %1908
    %1910 = vrot.lane.b32.xlu0 %v358, 64
    %v1911 = vpop.permute.xlu0 %1910
    %1912 = vrot.lane.b32.xlu0 %v474, 64
    %v1913 = vpop.permute.xlu0 %1912
    %1914 = vrot.lane.b32.xlu0 %v361, 64
    %v1915 = vpop.permute.xlu0 %1914
    %1916 = vrot.lane.b32.xlu0 %v475, 64
    %v1917 = vpop.permute.xlu0 %1916
    %1918 = vrot.lane.b32.xlu0 %v364, 64
    %v1919 = vpop.permute.xlu0 %1918
    %1920 = vrot.lane.b32.xlu0 %v476, 64
    %v1921 = vpop.permute.xlu0 %1920
    %1922 = vrot.lane.b32.xlu0 %v367, 64
    %v1923 = vpop.permute.xlu0 %1922
    %1924 = vrot.lane.b32.xlu0 %v477, 64
    %v1925 = vpop.permute.xlu0 %1924
    %1926 = vrot.lane.b32.xlu0 %v370, 64
    %v1927 = vpop.permute.xlu0 %1926
    %1928 = vrot.lane.b32.xlu0 %v478, 64
    %v1929 = vpop.permute.xlu0 %1928
    %1930 = vrot.lane.b32.xlu0 %v373, 64
    %v1931 = vpop.permute.xlu0 %1930
    %1932 = vrot.lane.b32.xlu0 %v479, 64
    %v1933 = vpop.permute.xlu0 %1932
    %1934 = vrot.lane.b32.xlu0 %v376, 64
    %v1935 = vpop.permute.xlu0 %1934
    %1936 = vrot.lane.b32.xlu0 %v480, 64
    %v1937 = vpop.permute.xlu0 %1936
    %1938 = vrot.lane.b32.xlu0 %v379, 64
    %v1939 = vpop.permute.xlu0 %1938
    %1940 = vrot.lane.b32.xlu0 %v481, 64
    %v1941 = vpop.permute.xlu0 %1940
    %1942 = vrot.lane.b32.xlu0 %v382, 64
    %v1943 = vpop.permute.xlu0 %1942
    %1944 = vrot.lane.b32.xlu0 %v482, 64
    %v1945 = vpop.permute.xlu0 %1944
    %1946 = vrot.lane.b32.xlu0 %v385, 64
    %v1947 = vpop.permute.xlu0 %1946
    %1948 = vrot.lane.b32.xlu0 %v483, 64
    %v1949 = vpop.permute.xlu0 %1948
    %1950 = vrot.lane.b32.xlu0 %v388, 64
    %v1951 = vpop.permute.xlu0 %1950
    %1952 = vrot.lane.b32.xlu0 %v484, 64
    %v1953 = vpop.permute.xlu0 %1952
    %1954 = vrot.lane.b32.xlu0 %v391, 64
    %v1955 = vpop.permute.xlu0 %1954
    %1956 = vrot.lane.b32.xlu0 %v485, 64
    %v1957 = vpop.permute.xlu0 %1956
    %1958 = vrot.lane.b32.xlu0 %v394, 64
    %v1959 = vpop.permute.xlu0 %1958
    %1960 = vrot.lane.b32.xlu0 %v486, 64
    %v1961 = vpop.permute.xlu0 %1960
    %1962 = vrot.lane.b32.xlu0 %v518, 64
    %v1963 = vpop.permute.xlu0 %1962
    %1964 = vrot.lane.b32.xlu0 %v524, 64
    %v1965 = vpop.permute.xlu0 %1964
    %1966 = vrot.lane.b32.xlu0 %v349, 64
    %v1967 = vpop.permute.xlu0 %1966
    %1968 = vrot.lane.b32.xlu0 %v471, 64
    %v1969 = vpop.permute.xlu0 %1968
    %1970 = vrot.lane.b32.xlu0 %v400, 64
    %v1971 = vpop.permute.xlu0 %1970
    %1972 = vrot.lane.b32.xlu0 %v488, 64
    %v1973 = vpop.permute.xlu0 %1972
    %1974 = vrot.lane.b32.xlu0 %v403, 64
    %v1975 = vpop.permute.xlu0 %1974
    %1976 = vrot.lane.b32.xlu0 %v489, 64
    %v1977 = vpop.permute.xlu0 %1976
    %1978 = vrot.lane.b32.xlu0 %v406, 64
    %v1979 = vpop.permute.xlu0 %1978
    %1980 = vrot.lane.b32.xlu0 %v490, 64
    %v1981 = vpop.permute.xlu0 %1980
    %1982 = vrot.lane.b32.xlu0 %v409, 64
    %v1983 = vpop.permute.xlu0 %1982
    %1984 = vrot.lane.b32.xlu0 %v491, 64
    %v1985 = vpop.permute.xlu0 %1984
    %1986 = vrot.lane.b32.xlu0 %v412, 64
    %v1987 = vpop.permute.xlu0 %1986
    %1988 = vrot.lane.b32.xlu0 %v492, 64
    %v1989 = vpop.permute.xlu0 %1988
    %1990 = vrot.lane.b32.xlu0 %v415, 64
    %v1991 = vpop.permute.xlu0 %1990
    %1992 = vrot.lane.b32.xlu0 %v493, 64
    %v1993 = vpop.permute.xlu0 %1992
    %1994 = vrot.lane.b32.xlu0 %v418, 64
    %v1995 = vpop.permute.xlu0 %1994
    %1996 = vrot.lane.b32.xlu0 %v494, 64
    %v1997 = vpop.permute.xlu0 %1996
    %1998 = vrot.lane.b32.xlu0 %v421, 64
    %v1999 = vpop.permute.xlu0 %1998
    %2000 = vrot.lane.b32.xlu0 %v495, 64
    %v2001 = vpop.permute.xlu0 %2000
    %2002 = vrot.lane.b32.xlu0 %v424, 64
    %v2003 = vpop.permute.xlu0 %2002
    %2004 = vrot.lane.b32.xlu0 %v496, 64
    %v2005 = vpop.permute.xlu0 %2004
    %2006 = vrot.lane.b32.xlu0 %v427, 64
    %v2007 = vpop.permute.xlu0 %2006
    %2008 = vrot.lane.b32.xlu0 %v497, 64
    %v2009 = vpop.permute.xlu0 %2008
    %2010 = vrot.lane.b32.xlu0 %v430, 64
    %v2011 = vpop.permute.xlu0 %2010
    %2012 = vrot.lane.b32.xlu0 %v498, 64
    %v2013 = vpop.permute.xlu0 %2012
    %2014 = vrot.lane.b32.xlu0 %v433, 64
    %v2015 = vpop.permute.xlu0 %2014
    %2016 = vrot.lane.b32.xlu0 %v499, 64
    %v2017 = vpop.permute.xlu0 %2016
    %2018 = vrot.lane.b32.xlu0 %v436, 64
    %v2019 = vpop.permute.xlu0 %2018
    %2020 = vrot.lane.b32.xlu0 %v500, 64
    %v2021 = vpop.permute.xlu0 %2020
    %2022 = vrot.lane.b32.xlu0 %v439, 64
    %v2023 = vpop.permute.xlu0 %2022
    %2024 = vrot.lane.b32.xlu0 %v501, 64
    %v2025 = vpop.permute.xlu0 %2024
    %2026 = vrot.lane.b32.xlu0 %v521, 64
    %v2027 = vpop.permute.xlu0 %2026
    %2028 = vrot.lane.b32.xlu0 %v525, 64
    %v2029 = vpop.permute.xlu0 %2028
    %vm2092 = vcmask 64512
    %v2093 = vsel %vm2092, %v316, %v527
    %v2094 = vsel %vm2092, %v163, %v527
    %v2095 = vsel %vm2092, %v317, %v529
    %v2096 = vsel %vm2092, %v166, %v531
    %v2097 = vsel %vm2092, %v318, %v533
    %v2098 = vsel %vm2092, %v169, %v535
    %v2099 = vsel %vm2092, %v319, %v537
    %v2100 = vsel %vm2092, %v172, %v539
    %v2101 = vsel %vm2092, %v320, %v541
    %v2102 = vsel %vm2092, %v175, %v543
    %v2103 = vsel %vm2092, %v321, %v545
    %v2104 = vsel %vm2092, %v178, %v547
    %v2105 = vsel %vm2092, %v322, %v549
    %v2106 = vsel %vm2092, %v181, %v551
    %v2107 = vsel %vm2092, %v323, %v553
    %v2108 = vsel %vm2092, %v184, %v555
    %v2109 = vsel %vm2092, %v324, %v557
    %v2110 = vsel %vm2092, %v187, %v559
    %v2111 = vsel %vm2092, %v325, %v561
    %v2112 = vsel %vm2092, %v190, %v563
    %v2113 = vsel %vm2092, %v326, %v565
    %v2114 = vsel %vm2092, %v193, %v567
    %v2115 = vsel %vm2092, %v327, %v569
    %v2116 = vsel %vm2092, %v196, %v571
    %v2117 = vsel %vm2092, %v328, %v573
    %v2118 = vsel %vm2092, %v199, %v575
    %v2119 = vsel %vm2092, %v329, %v577
    %v2120 = vsel %vm2092, %v202, %v579
    %v2121 = vsel %vm2092, %v330, %v581
    %v2122 = vsel %vm2092, %v205, %v583
    %v2123 = vsel %vm2092, %v331, %v585
    %v2124 = vsel %vm2092, %v208, %v587
    %v2125 = vsel %vm2092, %v332, %v589
    %v2126 = vsel %vm2092, %v211, %v591
    %v2127 = vsel %vm2092, %v333, %v593
    %v2128 = vsel %vm2092, %v214, %v595
    %v2129 = vsel %vm2092, %v334, %v597
    %v2130 = vsel %vm2092, %v217, %v599
    %v2131 = vsel %vm2092, %v335, %v601
    %v2132 = vsel %vm2092, %v220, %v603
    %v2133 = vsel %vm2092, %v336, %v605
    %v2134 = vsel %vm2092, %v223, %v607
    %v2135 = vsel %vm2092, %v337, %v609
    %v2136 = vsel %vm2092, %v226, %v611
    %v2137 = vsel %vm2092, %v338, %v613
    %v2138 = vsel %vm2092, %v229, %v615
    %v2139 = vsel %vm2092, %v339, %v617
    %v2140 = vsel %vm2092, %v232, %v619
    %v2141 = vsel %vm2092, %v340, %v621
    %v2142 = vsel %vm2092, %v235, %v623
    %v2143 = vsel %vm2092, %v341, %v625
    %v2144 = vsel %vm2092, %v238, %v627
    %v2145 = vsel %vm2092, %v342, %v629
    %v2146 = vsel %vm2092, %v241, %v631
    %v2147 = vsel %vm2092, %v343, %v633
    %v2148 = vsel %vm2092, %v244, %v635
    %v2149 = vsel %vm2092, %v344, %v637
    %v2150 = vsel %vm2092, %v247, %v639
    %v2151 = vsel %vm2092, %v345, %v641
    %v2152 = vsel %vm2092, %v250, %v643
    %v2153 = vsel %vm2092, %v346, %v645
    %v2154 = vsel %vm2092, %v253, %v647
    %vm2155 = vcmask 130048
    %v2156 = vsel %vm2155, %v2093, %v741
    %v2157 = vsel %vm2155, %v2094, %v743
    %v2158 = vsel %vm2155, %v2095, %v745
    %v2159 = vsel %vm2155, %v2096, %v747
    %v2160 = vsel %vm2155, %v2097, %v749
    %v2161 = vsel %vm2155, %v2098, %v751
    %v2162 = vsel %vm2155, %v2099, %v753
    %v2163 = vsel %vm2155, %v2100, %v755
    %v2164 = vsel %vm2155, %v2101, %v757
    %v2165 = vsel %vm2155, %v2102, %v759
    %v2166 = vsel %vm2155, %v2103, %v761
    %v2167 = vsel %vm2155, %v2104, %v763
    %v2168 = vsel %vm2155, %v2105, %v765
    %v2169 = vsel %vm2155, %v2106, %v767
    %v2170 = vsel %vm2155, %v2107, %v769
    %v2171 = vsel %vm2155, %v2108, %v771
    %v2172 = vsel %vm2155, %v2109, %v773
    %v2173 = vsel %vm2155, %v2110, %v775
    %v2174 = vsel %vm2155, %v2111, %v777
    %v2175 = vsel %vm2155, %v2112, %v779
    %v2176 = vsel %vm2155, %v2113, %v781
    %v2177 = vsel %vm2155, %v2114, %v783
    %v2178 = vsel %vm2155, %v2115, %v785
    %v2179 = vsel %vm2155, %v2116, %v787
    %v2180 = vsel %vm2155, %v2117, %v789
    %v2181 = vsel %vm2155, %v2118, %v791
    %v2182 = vsel %vm2155, %v2119, %v793
    %v2183 = vsel %vm2155, %v2120, %v795
    %v2184 = vsel %vm2155, %v2121, %v797
    %v2185 = vsel %vm2155, %v2122, %v799
    %v2186 = vsel %vm2155, %v2123, %v801
    %v2187 = vsel %vm2155, %v2124, %v803
    %v2188 = vsel %vm2155, %v2125, %v805
    %v2189 = vsel %vm2155, %v2126, %v807
    %v2190 = vsel %vm2155, %v2127, %v809
    %v2191 = vsel %vm2155, %v2128, %v811
    %v2192 = vsel %vm2155, %v2129, %v813
    %v2193 = vsel %vm2155, %v2130, %v815
    %v2194 = vsel %vm2155, %v2131, %v817
    %v2195 = vsel %vm2155, %v2132, %v819
    %v2196 = vsel %vm2155, %v2133, %v821
    %v2197 = vsel %vm2155, %v2134, %v823
    %v2198 = vsel %vm2155, %v2135, %v825
    %v2199 = vsel %vm2155, %v2136, %v827
    %v2200 = vsel %vm2155, %v2137, %v829
    %v2201 = vsel %vm2155, %v2138, %v831
    %v2202 = vsel %vm2155, %v2139, %v833
    %v2203 = vsel %vm2155, %v2140, %v835
    %v2204 = vsel %vm2155, %v2141, %v837
    %v2205 = vsel %vm2155, %v2142, %v839
    %v2206 = vsel %vm2155, %v2143, %v841
    %v2207 = vsel %vm2155, %v2144, %v843
    %v2208 = vsel %vm2155, %v2145, %v845
    %v2209 = vsel %vm2155, %v2146, %v847
    %v2210 = vsel %vm2155, %v2147, %v849
    %v2211 = vsel %vm2155, %v2148, %v851
    %v2212 = vsel %vm2155, %v2149, %v853
    %v2213 = vsel %vm2155, %v2150, %v855
    %v2214 = vsel %vm2155, %v2151, %v857
    %v2215 = vsel %vm2155, %v2152, %v859
    %v2216 = vsel %vm2155, %v2153, %v861
    %v2217 = vsel %vm2155, %v2154, %v863
    %vm2218 = vcmask 195584
    %v2219 = vsel %vm2218, %v2156, %v959
    %v2220 = vsel %vm2218, %v2157, %v961
    %v2221 = vsel %vm2218, %v2158, %v963
    %v2222 = vsel %vm2218, %v2159, %v965
    %v2223 = vsel %vm2218, %v2160, %v967
    %v2224 = vsel %vm2218, %v2161, %v969
    %v2225 = vsel %vm2218, %v2162, %v971
    %v2226 = vsel %vm2218, %v2163, %v973
    %v2227 = vsel %vm2218, %v2164, %v975
    %v2228 = vsel %vm2218, %v2165, %v977
    %v2229 = vsel %vm2218, %v2166, %v979
    %v2230 = vsel %vm2218, %v2167, %v981
    %v2231 = vsel %vm2218, %v2168, %v983
    %v2232 = vsel %vm2218, %v2169, %v985
    %v2233 = vsel %vm2218, %v2170, %v987
    %v2234 = vsel %vm2218, %v2171, %v989
    %v2235 = vsel %vm2218, %v2172, %v991
    %v2236 = vsel %vm2218, %v2173, %v993
    %v2237 = vsel %vm2218, %v2174, %v995
    %v2238 = vsel %vm2218, %v2175, %v997
    %v2239 = vsel %vm2218, %v2176, %v999
    %v2240 = vsel %vm2218, %v2177, %v1001
    %v2241 = vsel %vm2218, %v2178, %v1003
    %v2242 = vsel %vm2218, %v2179, %v1005
    %v2243 = vsel %vm2218, %v2180, %v1007
    %v2244 = vsel %vm2218, %v2181, %v1009
    %v2245 = vsel %vm2218, %v2182, %v1011
    %v2246 = vsel %vm2218, %v2183, %v1013
    %v2247 = vsel %vm2218, %v2184, %v1015
    %v2248 = vsel %vm2218, %v2185, %v1017
    %v2249 = vsel %vm2218, %v2186, %v1019
    %v2250 = vsel %vm2218, %v2187, %v1021
    %v2251 = vsel %vm2218, %v2156, %v1023
    %v2252 = vsel %vm2218, %v2157, %v1025
    %v2253 = vsel %vm2218, %v2188, %v1027
    %v2254 = vsel %vm2218, %v2189, %v1029
    %v2255 = vsel %vm2218, %v2190, %v1031
    %v2256 = vsel %vm2218, %v2191, %v1033
    %v2257 = vsel %vm2218, %v2192, %v1035
    %v2258 = vsel %vm2218, %v2193, %v1037
    %v2259 = vsel %vm2218, %v2194, %v1039
    %v2260 = vsel %vm2218, %v2195, %v1041
    %v2261 = vsel %vm2218, %v2196, %v1043
    %v2262 = vsel %vm2218, %v2197, %v1045
    %v2263 = vsel %vm2218, %v2198, %v1047
    %v2264 = vsel %vm2218, %v2199, %v1049
    %v2265 = vsel %vm2218, %v2200, %v1051
    %v2266 = vsel %vm2218, %v2201, %v1053
    %v2267 = vsel %vm2218, %v2202, %v1055
    %v2268 = vsel %vm2218, %v2203, %v1057
    %v2269 = vsel %vm2218, %v2204, %v1059
    %v2270 = vsel %vm2218, %v2205, %v1061
    %v2271 = vsel %vm2218, %v2206, %v1063
    %v2272 = vsel %vm2218, %v2207, %v1065
    %v2273 = vsel %vm2218, %v2208, %v1067
    %v2274 = vsel %vm2218, %v2209, %v1069
    %v2275 = vsel %vm2218, %v2210, %v1071
    %v2276 = vsel %vm2218, %v2211, %v1073
    %v2277 = vsel %vm2218, %v2212, %v1075
    %v2278 = vsel %vm2218, %v2213, %v1077
    %v2279 = vsel %vm2218, %v2214, %v1079
    %v2280 = vsel %vm2218, %v2215, %v1081
    %v2281 = vsel %vm2218, %v2216, %v1083
    %v2282 = vsel %vm2218, %v2217, %v1085
    %vm2283 = vcmask 261120
    %v2284 = vsel %vm2283, %v2219, %v1151
    %v2285 = vsel %vm2283, %v2220, %v1153
    %v2286 = vsel %vm2283, %v2221, %v1155
    %v2287 = vsel %vm2283, %v2222, %v1157
    %v2288 = vsel %vm2283, %v2223, %v1159
    %v2289 = vsel %vm2283, %v2224, %v1161
    %v2290 = vsel %vm2283, %v2225, %v1163
    %v2291 = vsel %vm2283, %v2226, %v1165
    %v2292 = vsel %vm2283, %v2227, %v1167
    %v2293 = vsel %vm2283, %v2228, %v1169
    %v2294 = vsel %vm2283, %v2229, %v1171
    %v2295 = vsel %vm2283, %v2230, %v1173
    %v2296 = vsel %vm2283, %v2231, %v1175
    %v2297 = vsel %vm2283, %v2232, %v1177
    %v2298 = vsel %vm2283, %v2233, %v1179
    %v2299 = vsel %vm2283, %v2234, %v1181
    %v2300 = vsel %vm2283, %v2235, %v1183
    %v2301 = vsel %vm2283, %v2236, %v1185
    %v2302 = vsel %vm2283, %v2237, %v1187
    %v2303 = vsel %vm2283, %v2238, %v1189
    %v2304 = vsel %vm2283, %v2239, %v1191
    %v2305 = vsel %vm2283, %v2240, %v1193
    %v2306 = vsel %vm2283, %v2241, %v1195
    %v2307 = vsel %vm2283, %v2242, %v1197
    %v2308 = vsel %vm2283, %v2243, %v1199
    %v2309 = vsel %vm2283, %v2244, %v1201
    %v2310 = vsel %vm2283, %v2245, %v1203
    %v2311 = vsel %vm2283, %v2246, %v1205
    %v2312 = vsel %vm2283, %v2247, %v1207
    %v2313 = vsel %vm2283, %v2248, %v1209
    %v2314 = vsel %vm2283, %v2249, %v1211
    %v2315 = vsel %vm2283, %v2250, %v1213
    %v2316 = vsel %vm2283, %v2251, %v1215
    %v2317 = vsel %vm2283, %v2252, %v1217
    %v2318 = vsel %vm2283, %v2253, %v1219
    %v2319 = vsel %vm2283, %v2254, %v1221
    %v2320 = vsel %vm2283, %v2255, %v1223
    %v2321 = vsel %vm2283, %v2256, %v1225
    %v2322 = vsel %vm2283, %v2257, %v1227
    %v2323 = vsel %vm2283, %v2258, %v1229
    %v2324 = vsel %vm2283, %v2259, %v1231
    %v2325 = vsel %vm2283, %v2260, %v1233
    %v2326 = vsel %vm2283, %v2261, %v1235
    %v2327 = vsel %vm2283, %v2262, %v1237
    %v2328 = vsel %vm2283, %v2263, %v1239
    %v2329 = vsel %vm2283, %v2264, %v1241
    %v2330 = vsel %vm2283, %v2265, %v1243
    %v2331 = vsel %vm2283, %v2266, %v1245
    %v2332 = vsel %vm2283, %v2267, %v1247
    %v2333 = vsel %vm2283, %v2268, %v1249
    %v2334 = vsel %vm2283, %v2269, %v1251
    %v2335 = vsel %vm2283, %v2270, %v1253
    %v2336 = vsel %vm2283, %v2271, %v1255
    %v2337 = vsel %vm2283, %v2272, %v1257
    %v2338 = vsel %vm2283, %v2273, %v1259
    %v2339 = vsel %vm2283, %v2274, %v1261
    %v2340 = vsel %vm2283, %v2275, %v1263
    %v2341 = vsel %vm2283, %v2276, %v1265
    %v2342 = vsel %vm2283, %v2277, %v1267
    %v2343 = vsel %vm2283, %v2278, %v1269
    %v2344 = vsel %vm2283, %v2279, %v1271
    %v2345 = vsel %vm2283, %v2280, %v1273
    %v2346 = vsel %vm2283, %v2281, %v1275
    %v2347 = vsel %vm2283, %v2282, %v1277
    %vm2348 = vcmask 326656
    %v2349 = vsel %vm2348, %v2284, %v1345
    %v2350 = vsel %vm2348, %v2285, %v1347
    %v2351 = vsel %vm2348, %v2286, %v1349
    %v2352 = vsel %vm2348, %v2287, %v1351
    %v2353 = vsel %vm2348, %v2288, %v1353
    %v2354 = vsel %vm2348, %v2289, %v1355
    %v2355 = vsel %vm2348, %v2290, %v1357
    %v2356 = vsel %vm2348, %v2291, %v1359
    %v2357 = vsel %vm2348, %v2292, %v1361
    %v2358 = vsel %vm2348, %v2293, %v1363
    %v2359 = vsel %vm2348, %v2294, %v1365
    %v2360 = vsel %vm2348, %v2295, %v1367
    %v2361 = vsel %vm2348, %v2296, %v1369
    %v2362 = vsel %vm2348, %v2297, %v1371
    %v2363 = vsel %vm2348, %v2298, %v1373
    %v2364 = vsel %vm2348, %v2299, %v1375
    %v2365 = vsel %vm2348, %v2300, %v1377
    %v2366 = vsel %vm2348, %v2301, %v1379
    %v2367 = vsel %vm2348, %v2302, %v1381
    %v2368 = vsel %vm2348, %v2303, %v1383
    %v2369 = vsel %vm2348, %v2304, %v1385
    %v2370 = vsel %vm2348, %v2305, %v1387
    %v2371 = vsel %vm2348, %v2306, %v1389
    %v2372 = vsel %vm2348, %v2307, %v1391
    %v2373 = vsel %vm2348, %v2308, %v1393
    %v2374 = vsel %vm2348, %v2309, %v1395
    %v2375 = vsel %vm2348, %v2310, %v1397
    %v2376 = vsel %vm2348, %v2311, %v1399
    %v2377 = vsel %vm2348, %v2312, %v1401
    %v2378 = vsel %vm2348, %v2313, %v1403
    %v2379 = vsel %vm2348, %v2314, %v1405
    %v2380 = vsel %vm2348, %v2315, %v1407
    %v2381 = vsel %vm2348, %v2316, %v1409
    %v2382 = vsel %vm2348, %v2317, %v1411
    %v2383 = vsel %vm2348, %v2318, %v1413
    %v2384 = vsel %vm2348, %v2319, %v1415
    %v2385 = vsel %vm2348, %v2320, %v1417
    %v2386 = vsel %vm2348, %v2321, %v1419
    %v2387 = vsel %vm2348, %v2322, %v1421
    %v2388 = vsel %vm2348, %v2323, %v1423
    %v2389 = vsel %vm2348, %v2324, %v1425
    %v2390 = vsel %vm2348, %v2325, %v1427
    %v2391 = vsel %vm2348, %v2326, %v1429
    %v2392 = vsel %vm2348, %v2327, %v1431
    %v2393 = vsel %vm2348, %v2328, %v1433
    %v2394 = vsel %vm2348, %v2329, %v1435
    %v2395 = vsel %vm2348, %v2330, %v1437
    %v2396 = vsel %vm2348, %v2331, %v1439
    %v2397 = vsel %vm2348, %v2332, %v1441
    %v2398 = vsel %vm2348, %v2333, %v1443
    %v2399 = vsel %vm2348, %v2334, %v1445
    %v2400 = vsel %vm2348, %v2335, %v1447
    %v2401 = vsel %vm2348, %v2336, %v1449
    %v2402 = vsel %vm2348, %v2337, %v1451
    %v2403 = vsel %vm2348, %v2338, %v1453
    %v2404 = vsel %vm2348, %v2339, %v1455
    %v2405 = vsel %vm2348, %v2340, %v1457
    %v2406 = vsel %vm2348, %v2341, %v1459
    %v2407 = vsel %vm2348, %v2342, %v1461
    %v2408 = vsel %vm2348, %v2343, %v1463
    %v2409 = vsel %vm2348, %v2344, %v1465
    %v2410 = vsel %vm2348, %v2345, %v1467
    %v2411 = vsel %vm2348, %v2346, %v1469
    %v2412 = vsel %vm2348, %v2347, %v1471
    %vm2413 = vcmask 392192
    %v2414 = vsel %vm2413, %v2349, %v1538
    %v2415 = vsel %vm2413, %v2350, %v1540
    %v2416 = vsel %vm2413, %v2351, %v1542
    %v2417 = vsel %vm2413, %v2352, %v1544
    %v2418 = vsel %vm2413, %v2353, %v1546
    %v2419 = vsel %vm2413, %v2354, %v1548
    %v2420 = vsel %vm2413, %v2355, %v1550
    %v2421 = vsel %vm2413, %v2356, %v1552
    %v2422 = vsel %vm2413, %v2357, %v1554
    %v2423 = vsel %vm2413, %v2358, %v1556
    %v2424 = vsel %vm2413, %v2359, %v1558
    %v2425 = vsel %vm2413, %v2360, %v1560
    %v2426 = vsel %vm2413, %v2361, %v1562
    %v2427 = vsel %vm2413, %v2362, %v1564
    %v2428 = vsel %vm2413, %v2363, %v1566
    %v2429 = vsel %vm2413, %v2364, %v1568
    %v2430 = vsel %vm2413, %v2365, %v1570
    %v2431 = vsel %vm2413, %v2366, %v1572
    %v2432 = vsel %vm2413, %v2367, %v1574
    %v2433 = vsel %vm2413, %v2368, %v1576
    %v2434 = vsel %vm2413, %v2369, %v1578
    %v2435 = vsel %vm2413, %v2370, %v1580
    %v2436 = vsel %vm2413, %v2371, %v1582
    %v2437 = vsel %vm2413, %v2372, %v1584
    %v2438 = vsel %vm2413, %v2373, %v1586
    %v2439 = vsel %vm2413, %v2374, %v1588
    %v2440 = vsel %vm2413, %v2375, %v1590
    %v2441 = vsel %vm2413, %v2376, %v1592
    %v2442 = vsel %vm2413, %v2377, %v1594
    %v2443 = vsel %vm2413, %v2378, %v1596
    %v2444 = vsel %vm2413, %v2379, %v1598
    %v2445 = vsel %vm2413, %v2380, %v1600
    %v2446 = vsel %vm2413, %v2381, %v1602
    %v2447 = vsel %vm2413, %v2382, %v1604
    %v2448 = vsel %vm2413, %v2383, %v1606
    %v2449 = vsel %vm2413, %v2384, %v1608
    %v2450 = vsel %vm2413, %v2385, %v1610
    %v2451 = vsel %vm2413, %v2386, %v1612
    %v2452 = vsel %vm2413, %v2387, %v1614
    %v2453 = vsel %vm2413, %v2388, %v1616
    %v2454 = vsel %vm2413, %v2389, %v1618
    %v2455 = vsel %vm2413, %v2390, %v1620
    %v2456 = vsel %vm2413, %v2391, %v1622
    %v2457 = vsel %vm2413, %v2392, %v1624
    %v2458 = vsel %vm2413, %v2393, %v1626
    %v2459 = vsel %vm2413, %v2394, %v1628
    %v2460 = vsel %vm2413, %v2395, %v1630
    %v2461 = vsel %vm2413, %v2396, %v1632
    %v2462 = vsel %vm2413, %v2397, %v1634
    %v2463 = vsel %vm2413, %v2398, %v1636
    %v2464 = vsel %vm2413, %v2399, %v1638
    %v2465 = vsel %vm2413, %v2400, %v1640
    %v2466 = vsel %vm2413, %v2401, %v1642
    %v2467 = vsel %vm2413, %v2402, %v1644
    %v2468 = vsel %vm2413, %v2403, %v1646
    %v2469 = vsel %vm2413, %v2404, %v1648
    %v2470 = vsel %vm2413, %v2405, %v1650
    %v2471 = vsel %vm2413, %v2406, %v1652
    %v2472 = vsel %vm2413, %v2407, %v1654
    %v2473 = vsel %vm2413, %v2408, %v1656
    %v2474 = vsel %vm2413, %v2409, %v1658
    %v2475 = vsel %vm2413, %v2410, %v1660
    %v2476 = vsel %vm2413, %v2411, %v1598
    %v2477 = vsel %vm2413, %v2412, %v1600
    %vm2478 = vcmask 457728
    %v2479 = vsel %vm2478, %v2414, %v1724
    %v2480 = vsel %vm2478, %v2415, %v1726
    %v2481 = vsel %vm2478, %v2416, %v1728
    %v2482 = vsel %vm2478, %v2417, %v1730
    %v2483 = vsel %vm2478, %v2418, %v1732
    %v2484 = vsel %vm2478, %v2419, %v1734
    %v2485 = vsel %vm2478, %v2420, %v1736
    %v2486 = vsel %vm2478, %v2421, %v1738
    %v2487 = vsel %vm2478, %v2422, %v1740
    %v2488 = vsel %vm2478, %v2423, %v1742
    %v2489 = vsel %vm2478, %v2424, %v1744
    %v2490 = vsel %vm2478, %v2425, %v1746
    %v2491 = vsel %vm2478, %v2426, %v1748
    %v2492 = vsel %vm2478, %v2427, %v1750
    %v2493 = vsel %vm2478, %v2428, %v1752
    %v2494 = vsel %vm2478, %v2429, %v1754
    %v2495 = vsel %vm2478, %v2430, %v1756
    %v2496 = vsel %vm2478, %v2431, %v1758
    %v2497 = vsel %vm2478, %v2432, %v1760
    %v2498 = vsel %vm2478, %v2433, %v1762
    %v2499 = vsel %vm2478, %v2434, %v1764
    %v2500 = vsel %vm2478, %v2435, %v1766
    %v2501 = vsel %vm2478, %v2436, %v1768
    %v2502 = vsel %vm2478, %v2437, %v1770
    %v2503 = vsel %vm2478, %v2438, %v1772
    %v2504 = vsel %vm2478, %v2439, %v1774
    %v2505 = vsel %vm2478, %v2440, %v1776
    %v2506 = vsel %vm2478, %v2441, %v1778
    %v2507 = vsel %vm2478, %v2442, %v1780
    %v2508 = vsel %vm2478, %v2443, %v1782
    %v2509 = vsel %vm2478, %v2444, %v1784
    %v2510 = vsel %vm2478, %v2445, %v1784
    %v2511 = vsel %vm2478, %v2446, %v1786
    %v2512 = vsel %vm2478, %v2447, %v1788
    %v2513 = vsel %vm2478, %v2448, %v1790
    %v2514 = vsel %vm2478, %v2449, %v1792
    %v2515 = vsel %vm2478, %v2450, %v1794
    %v2516 = vsel %vm2478, %v2451, %v1796
    %v2517 = vsel %vm2478, %v2452, %v1798
    %v2518 = vsel %vm2478, %v2453, %v1800
    %v2519 = vsel %vm2478, %v2454, %v1802
    %v2520 = vsel %vm2478, %v2455, %v1804
    %v2521 = vsel %vm2478, %v2456, %v1806
    %v2522 = vsel %vm2478, %v2457, %v1808
    %v2523 = vsel %vm2478, %v2458, %v1810
    %v2524 = vsel %vm2478, %v2459, %v1812
    %v2525 = vsel %vm2478, %v2460, %v1814
    %v2526 = vsel %vm2478, %v2461, %v1816
    %v2527 = vsel %vm2478, %v2462, %v1818
    %v2528 = vsel %vm2478, %v2463, %v1820
    %v2529 = vsel %vm2478, %v2464, %v1822
    %v2530 = vsel %vm2478, %v2465, %v1824
    %v2531 = vsel %vm2478, %v2466, %v1826
    %v2532 = vsel %vm2478, %v2467, %v1828
    %v2533 = vsel %vm2478, %v2468, %v1830
    %v2534 = vsel %vm2478, %v2469, %v1832
    %v2535 = vsel %vm2478, %v2470, %v1834
    %v2536 = vsel %vm2478, %v2471, %v1836
    %v2537 = vsel %vm2478, %v2472, %v1838
    %v2538 = vsel %vm2478, %v2473, %v1840
    %v2539 = vsel %vm2478, %v2474, %v1842
    %v2540 = vsel %vm2478, %v2475, %v1844
    %v2541 = vsel %vm2478, %v2476, %v1784
    %v2542 = vsel %vm2478, %v2477, %v1784
    %vm2543 = vcmask 523264
    %v2544 = vsel %vm2543, %v2479, %v1907
    %v2545 = vsel %vm2543, %v2480, %v1909
    %v2546 = vsel %vm2543, %v2481, %v1911
    %v2547 = vsel %vm2543, %v2482, %v1913
    %v2548 = vsel %vm2543, %v2483, %v1915
    %v2549 = vsel %vm2543, %v2484, %v1917
    %v2550 = vsel %vm2543, %v2485, %v1919
    %v2551 = vsel %vm2543, %v2486, %v1921
    %v2552 = vsel %vm2543, %v2487, %v1923
    %v2553 = vsel %vm2543, %v2488, %v1925
    %v2554 = vsel %vm2543, %v2489, %v1927
    %v2555 = vsel %vm2543, %v2490, %v1929
    %v2556 = vsel %vm2543, %v2491, %v1931
    %v2557 = vsel %vm2543, %v2492, %v1933
    %v2558 = vsel %vm2543, %v2493, %v1935
    %v2559 = vsel %vm2543, %v2494, %v1937
    %v2560 = vsel %vm2543, %v2495, %v1939
    %v2561 = vsel %vm2543, %v2496, %v1941
    %v2562 = vsel %vm2543, %v2497, %v1943
    %v2563 = vsel %vm2543, %v2498, %v1945
    %v2564 = vsel %vm2543, %v2499, %v1947
    %v2565 = vsel %vm2543, %v2500, %v1949
    %v2566 = vsel %vm2543, %v2501, %v1951
    %v2567 = vsel %vm2543, %v2502, %v1953
    %v2568 = vsel %vm2543, %v2503, %v1955
    %v2569 = vsel %vm2543, %v2504, %v1957
    %v2570 = vsel %vm2543, %v2505, %v1959
    %v2571 = vsel %vm2543, %v2506, %v1961
    %v2572 = vsel %vm2543, %v2507, %v1963
    %v2573 = vsel %vm2543, %v2508, %v1965
    %v2574 = vsel %vm2543, %v2509, %v1967
    %v2575 = vsel %vm2543, %v2510, %v1969
    %v2576 = vsel %vm2543, %v2511, %v1971
    %v2577 = vsel %vm2543, %v2512, %v1973
    %v2578 = vsel %vm2543, %v2513, %v1975
    %v2579 = vsel %vm2543, %v2514, %v1977
    %v2580 = vsel %vm2543, %v2515, %v1979
    %v2581 = vsel %vm2543, %v2516, %v1981
    %v2582 = vsel %vm2543, %v2517, %v1983
    %v2583 = vsel %vm2543, %v2518, %v1985
    %v2584 = vsel %vm2543, %v2519, %v1987
    %v2585 = vsel %vm2543, %v2520, %v1989
    %v2586 = vsel %vm2543, %v2521, %v1991
    %v2587 = vsel %vm2543, %v2522, %v1993
    %v2588 = vsel %vm2543, %v2523, %v1995
    %v2589 = vsel %vm2543, %v2524, %v1997
    %v2590 = vsel %vm2543, %v2525, %v1999
    %v2591 = vsel %vm2543, %v2526, %v2001
    %v2592 = vsel %vm2543, %v2527, %v2003
    %v2593 = vsel %vm2543, %v2528, %v2005
    %v2594 = vsel %vm2543, %v2529, %v2007
    %v2595 = vsel %vm2543, %v2530, %v2009
    %v2596 = vsel %vm2543, %v2531, %v2011
    %v2597 = vsel %vm2543, %v2532, %v2013
    %v2598 = vsel %vm2543, %v2533, %v2015
    %v2599 = vsel %vm2543, %v2534, %v2017
    %v2600 = vsel %vm2543, %v2535, %v2019
    %v2601 = vsel %vm2543, %v2536, %v2021
    %v2602 = vsel %vm2543, %v2537, %v2023
    %v2603 = vsel %vm2543, %v2538, %v2025
    %v2604 = vsel %vm2543, %v2539, %v2027
    %v2605 = vsel %vm2543, %v2540, %v2029
    %v2606 = vsel %vm2543, %v2541, %v1967
    %v2607 = vsel %vm2543, %v2542, %v1969
    %vm2608 = vcmask 588800
    %v2610 = vsel %vm2608, %v2544, 0
    %v2613 = vsel %vm2608, %v2545, 0
    %v2616 = vsel %vm2608, %v2546, 0
    %v2619 = vsel %vm2608, %v2547, 0
    %v2622 = vsel %vm2608, %v2548, 0
    %v2625 = vsel %vm2608, %v2549, 0
    %v2628 = vsel %vm2608, %v2550, 0
    %v2631 = vsel %vm2608, %v2551, 0
    %v2634 = vsel %vm2608, %v2552, 0
    %v2637 = vsel %vm2608, %v2553, 0
    %v2640 = vsel %vm2608, %v2554, 0
    %v2643 = vsel %vm2608, %v2555, 0
    %v2646 = vsel %vm2608, %v2556, 0
    %v2649 = vsel %vm2608, %v2557, 0
    %v2652 = vsel %vm2608, %v2558, 0
    %v2655 = vsel %vm2608, %v2559, 0
    %v2658 = vsel %vm2608, %v2560, 0
    %v2661 = vsel %vm2608, %v2561, 0
    %v2664 = vsel %vm2608, %v2562, 0
    %v2667 = vsel %vm2608, %v2563, 0
    %v2670 = vsel %vm2608, %v2564, 0
    %v2673 = vsel %vm2608, %v2565, 0
    %v2676 = vsel %vm2608, %v2566, 0
    %v2679 = vsel %vm2608, %v2567, 0
    %v2682 = vsel %vm2608, %v2568, 0
    %v2685 = vsel %vm2608, %v2569, 0
    %v2688 = vsel %vm2608, %v2570, 0
    %v2691 = vsel %vm2608, %v2571, 0
    %v2694 = vsel %vm2608, %v2572, 0
    %v2697 = vsel %vm2608, %v2573, 0
    %v2700 = vsel %vm2608, %v2574, 0
    %v2703 = vsel %vm2608, %v2575, 0
    %v2706 = vsel %vm2608, %v2576, 0
    %v2709 = vsel %vm2608, %v2577, 0
    %v2712 = vsel %vm2608, %v2578, 0
    %v2715 = vsel %vm2608, %v2579, 0
    %v2718 = vsel %vm2608, %v2580, 0
    %v2721 = vsel %vm2608, %v2581, 0
    %v2724 = vsel %vm2608, %v2582, 0
    %v2727 = vsel %vm2608, %v2583, 0
    %v2730 = vsel %vm2608, %v2584, 0
    %v2733 = vsel %vm2608, %v2585, 0
    %v2736 = vsel %vm2608, %v2586, 0
    %v2739 = vsel %vm2608, %v2587, 0
    %v2742 = vsel %vm2608, %v2588, 0
    %v2745 = vsel %vm2608, %v2589, 0
    %v2748 = vsel %vm2608, %v2590, 0
    %v2751 = vsel %vm2608, %v2591, 0
    %v2754 = vsel %vm2608, %v2592, 0
    %v2757 = vsel %vm2608, %v2593, 0
    %v2760 = vsel %vm2608, %v2594, 0
    %v2763 = vsel %vm2608, %v2595, 0
    %v2766 = vsel %vm2608, %v2596, 0
    %v2769 = vsel %vm2608, %v2597, 0
    %v2772 = vsel %vm2608, %v2598, 0
    %v2775 = vsel %vm2608, %v2599, 0
    %v2778 = vsel %vm2608, %v2600, 0
    %v2781 = vsel %vm2608, %v2601, 0
    %v2784 = vsel %vm2608, %v2602, 0
    %v2787 = vsel %vm2608, %v2603, 0
    %v2790 = vsel %vm2608, %v2604, 0
    %v2793 = vsel %vm2608, %v2605, 0
    %v2796 = vsel %vm2608, %v2606, 0
    %v2799 = vsel %vm2608, %v2607, 0
    %2801 = vmatpush.msra.mxu0 0.0
    %2802 = vmatpush.msra.mxu0 0.0
    %2803 = vmatpush.msra.mxu0 0.0
    %2804 = vmatpush.msra.mxu0 0.0
    %2805 = vmatpush.msra.mxu0 0.0
    %2806 = vmatpush.msra.mxu0 0.0
    %2807 = vmatpush.msra.mxu0 0.0
    %2808 = vmatpush.msra.mxu0 %v99
    %2809 = vmatpush.msra.mxu0 %v98
    %2810 = vmatpush.msra.mxu0 %v97
    %2811 = vmatpush.msra.mxu0 %v96
    %2812 = vmatpush.msra.mxu0 %v95
    %2813 = vmatpush.msra.mxu0 %v94
    %2814 = vmatpush.msra.mxu0 %v93
    %2815 = vmatpush.msra.mxu0 %v92
    %2816 = vmatpush.msra.mxu0 %v91
    %2817 = vmatmul.f32.gmra.mxu0 %v2610
    %v2818 = vpop.f32.mrf.mxu0
    %v2819 = vadd.f32 0.0, %v2818
    %2820 = vmatmul.f32.gmra.mxu0 %v2613
    %v2821 = vpop.f32.mrf.mxu0
    %v2822 = vadd.f32 0.0, %v2821
    %2823 = vmatmul.f32.gmra.mxu0 %v2616
    %v2824 = vpop.f32.mrf.mxu0
    %v2825 = vadd.f32 0.0, %v2824
    %2826 = vmatmul.f32.gmra.mxu0 %v2619
    %v2827 = vpop.f32.mrf.mxu0
    %v2828 = vadd.f32 0.0, %v2827
    %2829 = vmatmul.f32.gmra.mxu0 %v2622
    %v2830 = vpop.f32.mrf.mxu0
    %v2831 = vadd.f32 0.0, %v2830
    %2832 = vmatmul.f32.gmra.mxu0 %v2625
    %v2833 = vpop.f32.mrf.mxu0
    %v2834 = vadd.f32 0.0, %v2833
    %2835 = vmatmul.f32.gmra.mxu0 %v2628
    %v2836 = vpop.f32.mrf.mxu0
    %v2837 = vadd.f32 0.0, %v2836
    %2838 = vmatmul.f32.gmra.mxu0 %v2631
    %v2839 = vpop.f32.mrf.mxu0
    %v2840 = vadd.f32 0.0, %v2839
    %2841 = vmatmul.f32.gmra.mxu0 %v2634
    %v2842 = vpop.f32.mrf.mxu0
    %v2843 = vadd.f32 0.0, %v2842
    %2844 = vmatmul.f32.gmra.mxu0 %v2637
    %v2845 = vpop.f32.mrf.mxu0
    %v2846 = vadd.f32 0.0, %v2845
    %2847 = vmatmul.f32.gmra.mxu0 %v2640
    %v2848 = vpop.f32.mrf.mxu0
    %v2849 = vadd.f32 0.0, %v2848
    %2850 = vmatmul.f32.gmra.mxu0 %v2643
    %v2851 = vpop.f32.mrf.mxu0
    %v2852 = vadd.f32 0.0, %v2851
    %2853 = vmatmul.f32.gmra.mxu0 %v2646
    %v2854 = vpop.f32.mrf.mxu0
    %v2855 = vadd.f32 0.0, %v2854
    %2856 = vmatmul.f32.gmra.mxu0 %v2649
    %v2857 = vpop.f32.mrf.mxu0
    %v2858 = vadd.f32 0.0, %v2857
    %2859 = vmatmul.f32.gmra.mxu0 %v2652
    %v2860 = vpop.f32.mrf.mxu0
    %v2861 = vadd.f32 0.0, %v2860
    %2862 = vmatmul.f32.gmra.mxu0 %v2655
    %v2863 = vpop.f32.mrf.mxu0
    %v2864 = vadd.f32 0.0, %v2863
    %2865 = vmatmul.f32.gmra.mxu0 %v2658
    %v2866 = vpop.f32.mrf.mxu0
    %v2867 = vadd.f32 0.0, %v2866
    %2868 = vmatmul.f32.gmra.mxu0 %v2661
    %v2869 = vpop.f32.mrf.mxu0
    %v2870 = vadd.f32 0.0, %v2869
    %2871 = vmatmul.f32.gmra.mxu0 %v2664
    %v2872 = vpop.f32.mrf.mxu0
    %v2873 = vadd.f32 0.0, %v2872
    %2874 = vmatmul.f32.gmra.mxu0 %v2667
    %v2875 = vpop.f32.mrf.mxu0
    %v2876 = vadd.f32 0.0, %v2875
    %2877 = vmatmul.f32.gmra.mxu0 %v2670
    %v2878 = vpop.f32.mrf.mxu0
    %v2879 = vadd.f32 0.0, %v2878
    %2880 = vmatmul.f32.gmra.mxu0 %v2673
    %v2881 = vpop.f32.mrf.mxu0
    %v2882 = vadd.f32 0.0, %v2881
    %2883 = vmatmul.f32.gmra.mxu0 %v2676
    %v2884 = vpop.f32.mrf.mxu0
    %v2885 = vadd.f32 0.0, %v2884
    %2886 = vmatmul.f32.gmra.mxu0 %v2679
    %v2887 = vpop.f32.mrf.mxu0
    %v2888 = vadd.f32 0.0, %v2887
    %2889 = vmatmul.f32.gmra.mxu0 %v2682
    %v2890 = vpop.f32.mrf.mxu0
    %v2891 = vadd.f32 0.0, %v2890
    %2892 = vmatmul.f32.gmra.mxu0 %v2685
    %v2893 = vpop.f32.mrf.mxu0
    %v2894 = vadd.f32 0.0, %v2893
    %2895 = vmatmul.f32.gmra.mxu0 %v2688
    %v2896 = vpop.f32.mrf.mxu0
    %v2897 = vadd.f32 0.0, %v2896
    %2898 = vmatmul.f32.gmra.mxu0 %v2691
    %v2899 = vpop.f32.mrf.mxu0
    %v2900 = vadd.f32 0.0, %v2899
    %2901 = vmatmul.f32.gmra.mxu0 %v2694
    %v2902 = vpop.f32.mrf.mxu0
    %v2903 = vadd.f32 0.0, %v2902
    %2904 = vmatmul.f32.gmra.mxu0 %v2697
    %v2905 = vpop.f32.mrf.mxu0
    %v2906 = vadd.f32 0.0, %v2905
    %2907 = vmatmul.f32.gmra.mxu0 %v2700
    %v2908 = vpop.f32.mrf.mxu0
    %v2909 = vadd.f32 0.0, %v2908
    %2910 = vmatmul.f32.gmra.mxu0 %v2703
    %v2911 = vpop.f32.mrf.mxu0
    %v2912 = vadd.f32 0.0, %v2911
    %2913 = vmatmul.f32.gmra.mxu0 %v2706
    %v2914 = vpop.f32.mrf.mxu0
    %v2915 = vadd.f32 0.0, %v2914
    %2916 = vmatmul.f32.gmra.mxu0 %v2709
    %v2917 = vpop.f32.mrf.mxu0
    %v2918 = vadd.f32 0.0, %v2917
    %2919 = vmatmul.f32.gmra.mxu0 %v2712
    %v2920 = vpop.f32.mrf.mxu0
    %v2921 = vadd.f32 0.0, %v2920
    %2922 = vmatmul.f32.gmra.mxu0 %v2715
    %v2923 = vpop.f32.mrf.mxu0
    %v2924 = vadd.f32 0.0, %v2923
    %2925 = vmatmul.f32.gmra.mxu0 %v2718
    %v2926 = vpop.f32.mrf.mxu0
    %v2927 = vadd.f32 0.0, %v2926
    %2928 = vmatmul.f32.gmra.mxu0 %v2721
    %v2929 = vpop.f32.mrf.mxu0
    %v2930 = vadd.f32 0.0, %v2929
    %2931 = vmatmul.f32.gmra.mxu0 %v2724
    %v2932 = vpop.f32.mrf.mxu0
    %v2933 = vadd.f32 0.0, %v2932
    %2934 = vmatmul.f32.gmra.mxu0 %v2727
    %v2935 = vpop.f32.mrf.mxu0
    %v2936 = vadd.f32 0.0, %v2935
    %2937 = vmatmul.f32.gmra.mxu0 %v2730
    %v2938 = vpop.f32.mrf.mxu0
    %v2939 = vadd.f32 0.0, %v2938
    %2940 = vmatmul.f32.gmra.mxu0 %v2733
    %v2941 = vpop.f32.mrf.mxu0
    %v2942 = vadd.f32 0.0, %v2941
    %2943 = vmatmul.f32.gmra.mxu0 %v2736
    %v2944 = vpop.f32.mrf.mxu0
    %v2945 = vadd.f32 0.0, %v2944
    %2946 = vmatmul.f32.gmra.mxu0 %v2739
    %v2947 = vpop.f32.mrf.mxu0
    %v2948 = vadd.f32 0.0, %v2947
    %2949 = vmatmul.f32.gmra.mxu0 %v2742
    %v2950 = vpop.f32.mrf.mxu0
    %v2951 = vadd.f32 0.0, %v2950
    %2952 = vmatmul.f32.gmra.mxu0 %v2745
    %v2953 = vpop.f32.mrf.mxu0
    %v2954 = vadd.f32 0.0, %v2953
    %2955 = vmatmul.f32.gmra.mxu0 %v2748
    %v2956 = vpop.f32.mrf.mxu0
    %v2957 = vadd.f32 0.0, %v2956
    %2958 = vmatmul.f32.gmra.mxu0 %v2751
    %v2959 = vpop.f32.mrf.mxu0
    %v2960 = vadd.f32 0.0, %v2959
    %2961 = vmatmul.f32.gmra.mxu0 %v2754
    %v2962 = vpop.f32.mrf.mxu0
    %v2963 = vadd.f32 0.0, %v2962
    %2964 = vmatmul.f32.gmra.mxu0 %v2757
    %v2965 = vpop.f32.mrf.mxu0
    %v2966 = vadd.f32 0.0, %v2965
    %2967 = vmatmul.f32.gmra.mxu0 %v2760
    %v2968 = vpop.f32.mrf.mxu0
    %v2969 = vadd.f32 0.0, %v2968
    %2970 = vmatmul.f32.gmra.mxu0 %v2763
    %v2971 = vpop.f32.mrf.mxu0
    %v2972 = vadd.f32 0.0, %v2971
    %2973 = vmatmul.f32.gmra.mxu0 %v2766
    %v2974 = vpop.f32.mrf.mxu0
    %v2975 = vadd.f32 0.0, %v2974
    %2976 = vmatmul.f32.gmra.mxu0 %v2769
    %v2977 = vpop.f32.mrf.mxu0
    %v2978 = vadd.f32 0.0, %v2977
    %2979 = vmatmul.f32.gmra.mxu0 %v2772
    %v2980 = vpop.f32.mrf.mxu0
    %v2981 = vadd.f32 0.0, %v2980
    %2982 = vmatmul.f32.gmra.mxu0 %v2775
    %v2983 = vpop.f32.mrf.mxu0
    %v2984 = vadd.f32 0.0, %v2983
    %2985 = vmatmul.f32.gmra.mxu0 %v2778
    %v2986 = vpop.f32.mrf.mxu0
    %v2987 = vadd.f32 0.0, %v2986
    %2988 = vmatmul.f32.gmra.mxu0 %v2781
    %v2989 = vpop.f32.mrf.mxu0
    %v2990 = vadd.f32 0.0, %v2989
    %2991 = vmatmul.f32.gmra.mxu0 %v2784
    %v2992 = vpop.f32.mrf.mxu0
    %v2993 = vadd.f32 0.0, %v2992
    %2994 = vmatmul.f32.gmra.mxu0 %v2787
    %v2995 = vpop.f32.mrf.mxu0
    %v2996 = vadd.f32 0.0, %v2995
    %2997 = vmatmul.f32.gmra.mxu0 %v2790
    %v2998 = vpop.f32.mrf.mxu0
    %v2999 = vadd.f32 0.0, %v2998
    %3000 = vmatmul.f32.gmra.mxu0 %v2793
    %v3001 = vpop.f32.mrf.mxu0
    %v3002 = vadd.f32 0.0, %v3001
    %3003 = vmatmul.f32.gmra.mxu0 %v2796
    %v3004 = vpop.f32.mrf.mxu0
    %v3005 = vadd.f32 0.0, %v3004
    %3006 = vmatmul.f32.gmra.mxu0 %v2799
    %v3007 = vpop.f32.mrf.mxu0
    %v3008 = vadd.f32 0.0, %v3007
    %3009 = vdwg.mxu0
    %v3010 = vld [vmem:[%s2] sm:$0x1]
    %v3011 = vld [vmem:[%s3] sm:$0x1]
    %v3012 = vadd.f32 %v2819, %v2822
    %v3013 = vadd.f32 %v3012, %v2825
    %v3014 = vadd.f32 %v3013, %v2828
    %v3015 = vadd.f32 %v3014, %v2831
    %v3016 = vadd.f32 %v3015, %v2834
    %v3017 = vadd.f32 %v3016, %v2837
    %v3018 = vadd.f32 %v3017, %v2840
    %v3019 = vadd.f32 %v3018, %v2843
    %v3020 = vadd.f32 %v3019, %v2846
    %v3021 = vadd.f32 %v3020, %v2849
    %v3022 = vadd.f32 %v3021, %v2852
    %v3023 = vadd.f32 %v3022, %v2855
    %v3024 = vadd.f32 %v3023, %v2858
    %v3025 = vadd.f32 %v3024, %v2861
    %v3026 = vadd.f32 %v3025, %v2864
    %v3027 = vadd.f32 %v3026, %v2867
    %v3028 = vadd.f32 %v3027, %v2870
    %v3029 = vadd.f32 %v3028, %v2873
    %v3030 = vadd.f32 %v3029, %v2876
    %v3031 = vadd.f32 %v3030, %v2879
    %v3032 = vadd.f32 %v3031, %v2882
    %v3033 = vadd.f32 %v3032, %v2885
    %v3034 = vadd.f32 %v3033, %v2888
    %v3035 = vadd.f32 %v3034, %v2891
    %v3036 = vadd.f32 %v3035, %v2894
    %v3037 = vadd.f32 %v3036, %v2897
    %v3038 = vadd.f32 %v3037, %v2900
    %v3039 = vadd.f32 %v3038, %v2903
    %v3040 = vadd.f32 %v3039, %v2906
    %v3041 = vadd.f32 %v3040, %v2909
    %v3042 = vadd.f32 %v3041, %v2912
    %v3043 = vadd.f32 %v3042, %v2915
    %v3044 = vadd.f32 %v3043, %v2918
    %v3045 = vadd.f32 %v3044, %v2921
    %v3046 = vadd.f32 %v3045, %v2924
    %v3047 = vadd.f32 %v3046, %v2927
    %v3048 = vadd.f32 %v3047, %v2930
    %v3049 = vadd.f32 %v3048, %v2933
    %v3050 = vadd.f32 %v3049, %v2936
    %v3051 = vadd.f32 %v3050, %v2939
    %v3052 = vadd.f32 %v3051, %v2942
    %v3053 = vadd.f32 %v3052, %v2945
    %v3054 = vadd.f32 %v3053, %v2948
    %v3055 = vadd.f32 %v3054, %v2951
    %v3056 = vadd.f32 %v3055, %v2954
    %v3057 = vadd.f32 %v3056, %v2957
    %v3058 = vadd.f32 %v3057, %v2960
    %v3059 = vadd.f32 %v3058, %v2963
    %v3060 = vadd.f32 %v3059, %v2966
    %v3061 = vadd.f32 %v3060, %v2969
    %v3062 = vadd.f32 %v3061, %v2972
    %v3063 = vadd.f32 %v3062, %v2975
    %v3064 = vadd.f32 %v3063, %v2978
    %v3065 = vadd.f32 %v3064, %v2981
    %v3066 = vadd.f32 %v3065, %v2984
    %v3067 = vadd.f32 %v3066, %v2987
    %v3068 = vadd.f32 %v3067, %v2990
    %v3069 = vadd.f32 %v3068, %v2993
    %v3070 = vadd.f32 %v3069, %v2996
    %v3071 = vadd.f32 %v3070, %v2999
    %v3072 = vadd.f32 %v3071, %v3002
    %v3073 = vadd.f32 %v3072, %v3005
    %v3074 = vadd.f32 %v3073, %v3008
    %v3075 = vrot.slane %v3074, 4
    %v3076 = vadd.f32 %v3074, %v3075
    %v3077 = vrot.slane %v3076, 2
    %v3078 = vadd.f32 %v3076, %v3077
    %v3079 = vrot.slane %v3078, 1
    %v3080 = vadd.f32 %v3078, %v3079
    %v3081 = vmul.f32 %v3080, 0.001953125
    %v3082 = vmul.f32 %v2819, %v2819
    %v3083 = vmul.f32 %v2822, %v2822
    %v3084 = vmul.f32 %v2825, %v2825
    %v3085 = vmul.f32 %v2828, %v2828
    %v3086 = vmul.f32 %v2831, %v2831
    %v3087 = vmul.f32 %v2834, %v2834
    %v3088 = vmul.f32 %v2837, %v2837
    %v3089 = vmul.f32 %v2840, %v2840
    %v3090 = vmul.f32 %v2843, %v2843
    %v3091 = vmul.f32 %v2846, %v2846
    %v3092 = vmul.f32 %v2849, %v2849
    %v3093 = vmul.f32 %v2852, %v2852
    %v3094 = vmul.f32 %v2855, %v2855
    %v3095 = vmul.f32 %v2858, %v2858
    %v3096 = vmul.f32 %v2861, %v2861
    %v3097 = vmul.f32 %v2864, %v2864
    %v3098 = vmul.f32 %v2867, %v2867
    %v3099 = vmul.f32 %v2870, %v2870
    %v3100 = vmul.f32 %v2873, %v2873
    %v3101 = vmul.f32 %v2876, %v2876
    %v3102 = vmul.f32 %v2879, %v2879
    %v3103 = vmul.f32 %v2882, %v2882
    %v3104 = vmul.f32 %v2885, %v2885
    %v3105 = vmul.f32 %v2888, %v2888
    %v3106 = vmul.f32 %v2891, %v2891
    %v3107 = vmul.f32 %v2894, %v2894
    %v3108 = vmul.f32 %v2897, %v2897
    %v3109 = vmul.f32 %v2900, %v2900
    %v3110 = vmul.f32 %v2903, %v2903
    %v3111 = vmul.f32 %v2906, %v2906
    %v3112 = vmul.f32 %v2909, %v2909
    %v3113 = vmul.f32 %v2912, %v2912
    %v3114 = vmul.f32 %v2915, %v2915
    %v3115 = vmul.f32 %v2918, %v2918
    %v3116 = vmul.f32 %v2921, %v2921
    %v3117 = vmul.f32 %v2924, %v2924
    %v3118 = vmul.f32 %v2927, %v2927
    %v3119 = vmul.f32 %v2930, %v2930
    %v3120 = vmul.f32 %v2933, %v2933
    %v3121 = vmul.f32 %v2936, %v2936
    %v3122 = vmul.f32 %v2939, %v2939
    %v3123 = vmul.f32 %v2942, %v2942
    %v3124 = vmul.f32 %v2945, %v2945
    %v3125 = vmul.f32 %v2948, %v2948
    %v3126 = vmul.f32 %v2951, %v2951
    %v3127 = vmul.f32 %v2954, %v2954
    %v3128 = vmul.f32 %v2957, %v2957
    %v3129 = vmul.f32 %v2960, %v2960
    %v3130 = vmul.f32 %v2963, %v2963
    %v3131 = vmul.f32 %v2966, %v2966
    %v3132 = vmul.f32 %v2969, %v2969
    %v3133 = vmul.f32 %v2972, %v2972
    %v3134 = vmul.f32 %v2975, %v2975
    %v3135 = vmul.f32 %v2978, %v2978
    %v3136 = vmul.f32 %v2981, %v2981
    %v3137 = vmul.f32 %v2984, %v2984
    %v3138 = vmul.f32 %v2987, %v2987
    %v3139 = vmul.f32 %v2990, %v2990
    %v3140 = vmul.f32 %v2993, %v2993
    %v3141 = vmul.f32 %v2996, %v2996
    %v3142 = vmul.f32 %v2999, %v2999
    %v3143 = vmul.f32 %v3002, %v3002
    %v3144 = vmul.f32 %v3005, %v3005
    %v3145 = vmul.f32 %v3008, %v3008
    %v3146 = vadd.f32 %v3082, %v3083
    %v3147 = vadd.f32 %v3146, %v3084
    %v3148 = vadd.f32 %v3147, %v3085
    %v3149 = vadd.f32 %v3148, %v3086
    %v3150 = vadd.f32 %v3149, %v3087
    %v3151 = vadd.f32 %v3150, %v3088
    %v3152 = vadd.f32 %v3151, %v3089
    %v3153 = vadd.f32 %v3152, %v3090
    %v3154 = vadd.f32 %v3153, %v3091
    %v3155 = vadd.f32 %v3154, %v3092
    %v3156 = vadd.f32 %v3155, %v3093
    %v3157 = vadd.f32 %v3156, %v3094
    %v3158 = vadd.f32 %v3157, %v3095
    %v3159 = vadd.f32 %v3158, %v3096
    %v3160 = vadd.f32 %v3159, %v3097
    %v3161 = vadd.f32 %v3160, %v3098
    %v3162 = vadd.f32 %v3161, %v3099
    %v3163 = vadd.f32 %v3162, %v3100
    %v3164 = vadd.f32 %v3163, %v3101
    %v3165 = vadd.f32 %v3164, %v3102
    %v3166 = vadd.f32 %v3165, %v3103
    %v3167 = vadd.f32 %v3166, %v3104
    %v3168 = vadd.f32 %v3167, %v3105
    %v3169 = vadd.f32 %v3168, %v3106
    %v3170 = vadd.f32 %v3169, %v3107
    %v3171 = vadd.f32 %v3170, %v3108
    %v3172 = vadd.f32 %v3171, %v3109
    %v3173 = vadd.f32 %v3172, %v3110
    %v3174 = vadd.f32 %v3173, %v3111
    %v3175 = vadd.f32 %v3174, %v3112
    %v3176 = vadd.f32 %v3175, %v3113
    %v3177 = vadd.f32 %v3176, %v3114
    %v3178 = vadd.f32 %v3177, %v3115
    %v3179 = vadd.f32 %v3178, %v3116
    %v3180 = vadd.f32 %v3179, %v3117
    %v3181 = vadd.f32 %v3180, %v3118
    %v3182 = vadd.f32 %v3181, %v3119
    %v3183 = vadd.f32 %v3182, %v3120
    %v3184 = vadd.f32 %v3183, %v3121
    %v3185 = vadd.f32 %v3184, %v3122
    %v3186 = vadd.f32 %v3185, %v3123
    %v3187 = vadd.f32 %v3186, %v3124
    %v3188 = vadd.f32 %v3187, %v3125
    %v3189 = vadd.f32 %v3188, %v3126
    %v3190 = vadd.f32 %v3189, %v3127
    %v3191 = vadd.f32 %v3190, %v3128
    %v3192 = vadd.f32 %v3191, %v3129
    %v3193 = vadd.f32 %v3192, %v3130
    %v3194 = vadd.f32 %v3193, %v3131
    %v3195 = vadd.f32 %v3194, %v3132
    %v3196 = vadd.f32 %v3195, %v3133
    %v3197 = vadd.f32 %v3196, %v3134
    %v3198 = vadd.f32 %v3197, %v3135
    %v3199 = vadd.f32 %v3198, %v3136
    %v3200 = vadd.f32 %v3199, %v3137
    %v3201 = vadd.f32 %v3200, %v3138
    %v3202 = vadd.f32 %v3201, %v3139
    %v3203 = vadd.f32 %v3202, %v3140
    %v3204 = vadd.f32 %v3203, %v3141
    %v3205 = vadd.f32 %v3204, %v3142
    %v3206 = vadd.f32 %v3205, %v3143
    %v3207 = vadd.f32 %v3206, %v3144
    %v3208 = vadd.f32 %v3207, %v3145
    %v3209 = vrot.slane %v3208, 4
    %v3210 = vadd.f32 %v3208, %v3209
    %v3211 = vrot.slane %v3210, 2
    %v3212 = vadd.f32 %v3210, %v3211
    %v3213 = vrot.slane %v3212, 1
    %v3214 = vadd.f32 %v3212, %v3213
    %v3215 = vmul.f32 %v3214, 0.001953125
    %v3216 = vmul.f32 %v3081, %v3081
    %v3217 = vsub.f32 %v3215, %v3216
    %v3218 = vadd.f32 %v3217, 1e-05
    %v3219 = vrsqrt.pop %v3218
    %v3220 = vmul.f32 %v3219, %v3218
    %v3221 = vmul.f32 %v3220, %v3219
    %v3222 = vmul.f32 0.5, %v3221
    %v3223 = vsub.f32 1.5, %v3222
    %v3224 = vmul.f32 %v3219, %v3223
    %vm3225 = vweird.f32 %v3218
    %vm3226 = vweird.f32 %v3219
    %vm3227 = vmor %vm3225, %vm3226
    %v3228 = vsel %vm3227, %v3219, %v3224
    %v3229 = vmul.f32 %v3010, %v3228
    %v3231 = vperm.slane %v3229, 0
    %v3233 = vmul.f32 %v2819, %v3231
    %v3234 = vmul.f32 %v2822, %v3231
    %v3235 = vmul.f32 %v2825, %v3231
    %v3236 = vmul.f32 %v2828, %v3231
    %v3237 = vmul.f32 %v2831, %v3231
    %v3238 = vmul.f32 %v2834, %v3231
    %v3239 = vmul.f32 %v2837, %v3231
    %v3240 = vmul.f32 %v2840, %v3231
    %v3241 = vmul.f32 %v2843, %v3231
    %v3242 = vmul.f32 %v2846, %v3231
    %v3243 = vmul.f32 %v2849, %v3231
    %v3244 = vmul.f32 %v2852, %v3231
    %v3245 = vmul.f32 %v2855, %v3231
    %v3246 = vmul.f32 %v2858, %v3231
    %v3247 = vmul.f32 %v2861, %v3231
    %v3248 = vmul.f32 %v2864, %v3231
    %v3249 = vmul.f32 %v2867, %v3231
    %v3250 = vmul.f32 %v2870, %v3231
    %v3251 = vmul.f32 %v2873, %v3231
    %v3252 = vmul.f32 %v2876, %v3231
    %v3253 = vmul.f32 %v2879, %v3231
    %v3254 = vmul.f32 %v2882, %v3231
    %v3255 = vmul.f32 %v2885, %v3231
    %v3256 = vmul.f32 %v2888, %v3231
    %v3257 = vmul.f32 %v2891, %v3231
    %v3258 = vmul.f32 %v2894, %v3231
    %v3259 = vmul.f32 %v2897, %v3231
    %v3260 = vmul.f32 %v2900, %v3231
    %v3261 = vmul.f32 %v2903, %v3231
    %v3262 = vmul.f32 %v2906, %v3231
    %v3263 = vmul.f32 %v2909, %v3231
    %v3264 = vmul.f32 %v2912, %v3231
    %v3265 = vmul.f32 %v2915, %v3231
    %v3266 = vmul.f32 %v2918, %v3231
    %v3267 = vmul.f32 %v2921, %v3231
    %v3268 = vmul.f32 %v2924, %v3231
    %v3269 = vmul.f32 %v2927, %v3231
    %v3270 = vmul.f32 %v2930, %v3231
    %v3271 = vmul.f32 %v2933, %v3231
    %v3272 = vmul.f32 %v2936, %v3231
    %v3273 = vmul.f32 %v2939, %v3231
    %v3274 = vmul.f32 %v2942, %v3231
    %v3275 = vmul.f32 %v2945, %v3231
    %v3276 = vmul.f32 %v2948, %v3231
    %v3277 = vmul.f32 %v2951, %v3231
    %v3278 = vmul.f32 %v2954, %v3231
    %v3279 = vmul.f32 %v2957, %v3231
    %v3280 = vmul.f32 %v2960, %v3231
    %v3281 = vmul.f32 %v2963, %v3231
    %v3282 = vmul.f32 %v2966, %v3231
    %v3283 = vmul.f32 %v2969, %v3231
    %v3284 = vmul.f32 %v2972, %v3231
    %v3285 = vmul.f32 %v2975, %v3231
    %v3286 = vmul.f32 %v2978, %v3231
    %v3287 = vmul.f32 %v2981, %v3231
    %v3288 = vmul.f32 %v2984, %v3231
    %v3289 = vmul.f32 %v2987, %v3231
    %v3290 = vmul.f32 %v2990, %v3231
    %v3291 = vmul.f32 %v2993, %v3231
    %v3292 = vmul.f32 %v2996, %v3231
    %v3293 = vmul.f32 %v2999, %v3231
    %v3294 = vmul.f32 %v3002, %v3231
    %v3295 = vmul.f32 %v3005, %v3231
    %v3296 = vmul.f32 %v3008, %v3231
    %v3297 = vmul.f32 %v3081, %v3229
    %v3298 = vsub.f32 %v3011, %v3297
    %v3300 = vperm.slane %v3298, 0
    %v3302 = vadd.f32 %v3233, %v3300
    %v3303 = vadd.f32 %v3234, %v3300
    %v3304 = vadd.f32 %v3235, %v3300
    %v3305 = vadd.f32 %v3236, %v3300
    %v3306 = vadd.f32 %v3237, %v3300
    %v3307 = vadd.f32 %v3238, %v3300
    %v3308 = vadd.f32 %v3239, %v3300
    %v3309 = vadd.f32 %v3240, %v3300
    %v3310 = vadd.f32 %v3241, %v3300
    %v3311 = vadd.f32 %v3242, %v3300
    %v3312 = vadd.f32 %v3243, %v3300
    %v3313 = vadd.f32 %v3244, %v3300
    %v3314 = vadd.f32 %v3245, %v3300
    %v3315 = vadd.f32 %v3246, %v3300
    %v3316 = vadd.f32 %v3247, %v3300
    %v3317 = vadd.f32 %v3248, %v3300
    %v3318 = vadd.f32 %v3249, %v3300
    %v3319 = vadd.f32 %v3250, %v3300
    %v3320 = vadd.f32 %v3251, %v3300
    %v3321 = vadd.f32 %v3252, %v3300
    %v3322 = vadd.f32 %v3253, %v3300
    %v3323 = vadd.f32 %v3254, %v3300
    %v3324 = vadd.f32 %v3255, %v3300
    %v3325 = vadd.f32 %v3256, %v3300
    %v3326 = vadd.f32 %v3257, %v3300
    %v3327 = vadd.f32 %v3258, %v3300
    %v3328 = vadd.f32 %v3259, %v3300
    %v3329 = vadd.f32 %v3260, %v3300
    %v3330 = vadd.f32 %v3261, %v3300
    %v3331 = vadd.f32 %v3262, %v3300
    %v3332 = vadd.f32 %v3263, %v3300
    %v3333 = vadd.f32 %v3264, %v3300
    %v3334 = vadd.f32 %v3265, %v3300
    %v3335 = vadd.f32 %v3266, %v3300
    %v3336 = vadd.f32 %v3267, %v3300
    %v3337 = vadd.f32 %v3268, %v3300
    %v3338 = vadd.f32 %v3269, %v3300
    %v3339 = vadd.f32 %v3270, %v3300
    %v3340 = vadd.f32 %v3271, %v3300
    %v3341 = vadd.f32 %v3272, %v3300
    %v3342 = vadd.f32 %v3273, %v3300
    %v3343 = vadd.f32 %v3274, %v3300
    %v3344 = vadd.f32 %v3275, %v3300
    %v3345 = vadd.f32 %v3276, %v3300
    %v3346 = vadd.f32 %v3277, %v3300
    %v3347 = vadd.f32 %v3278, %v3300
    %v3348 = vadd.f32 %v3279, %v3300
    %v3349 = vadd.f32 %v3280, %v3300
    %v3350 = vadd.f32 %v3281, %v3300
    %v3351 = vadd.f32 %v3282, %v3300
    %v3352 = vadd.f32 %v3283, %v3300
    %v3353 = vadd.f32 %v3284, %v3300
    %v3354 = vadd.f32 %v3285, %v3300
    %v3355 = vadd.f32 %v3286, %v3300
    %v3356 = vadd.f32 %v3287, %v3300
    %v3357 = vadd.f32 %v3288, %v3300
    %v3358 = vadd.f32 %v3289, %v3300
    %v3359 = vadd.f32 %v3290, %v3300
    %v3360 = vadd.f32 %v3291, %v3300
    %v3361 = vadd.f32 %v3292, %v3300
    %v3362 = vadd.f32 %v3293, %v3300
    %v3363 = vadd.f32 %v3294, %v3300
    %v3364 = vadd.f32 %v3295, %v3300
    %v3365 = vadd.f32 %v3296, %v3300
    %v3366 = vmax.f32 %v3302, 0.0
    %v3367 = vmax.f32 %v3303, 0.0
    %v3368 = vmax.f32 %v3304, 0.0
    %v3369 = vmax.f32 %v3305, 0.0
    %v3370 = vmax.f32 %v3306, 0.0
    %v3371 = vmax.f32 %v3307, 0.0
    %v3372 = vmax.f32 %v3308, 0.0
    %v3373 = vmax.f32 %v3309, 0.0
    %v3374 = vmax.f32 %v3310, 0.0
    %v3375 = vmax.f32 %v3311, 0.0
    %v3376 = vmax.f32 %v3312, 0.0
    %v3377 = vmax.f32 %v3313, 0.0
    %v3378 = vmax.f32 %v3314, 0.0
    %v3379 = vmax.f32 %v3315, 0.0
    %v3380 = vmax.f32 %v3316, 0.0
    %v3381 = vmax.f32 %v3317, 0.0
    %v3382 = vmax.f32 %v3318, 0.0
    %v3383 = vmax.f32 %v3319, 0.0
    %v3384 = vmax.f32 %v3320, 0.0
    %v3385 = vmax.f32 %v3321, 0.0
    %v3386 = vmax.f32 %v3322, 0.0
    %v3387 = vmax.f32 %v3323, 0.0
    %v3388 = vmax.f32 %v3324, 0.0
    %v3389 = vmax.f32 %v3325, 0.0
    %v3390 = vmax.f32 %v3326, 0.0
    %v3391 = vmax.f32 %v3327, 0.0
    %v3392 = vmax.f32 %v3328, 0.0
    %v3393 = vmax.f32 %v3329, 0.0
    %v3394 = vmax.f32 %v3330, 0.0
    %v3395 = vmax.f32 %v3331, 0.0
    %v3396 = vmax.f32 %v3332, 0.0
    %v3397 = vmax.f32 %v3333, 0.0
    %v3398 = vmax.f32 %v3334, 0.0
    %v3399 = vmax.f32 %v3335, 0.0
    %v3400 = vmax.f32 %v3336, 0.0
    %v3401 = vmax.f32 %v3337, 0.0
    %v3402 = vmax.f32 %v3338, 0.0
    %v3403 = vmax.f32 %v3339, 0.0
    %v3404 = vmax.f32 %v3340, 0.0
    %v3405 = vmax.f32 %v3341, 0.0
    %v3406 = vmax.f32 %v3342, 0.0
    %v3407 = vmax.f32 %v3343, 0.0
    %v3408 = vmax.f32 %v3344, 0.0
    %v3409 = vmax.f32 %v3345, 0.0
    %v3410 = vmax.f32 %v3346, 0.0
    %v3411 = vmax.f32 %v3347, 0.0
    %v3412 = vmax.f32 %v3348, 0.0
    %v3413 = vmax.f32 %v3349, 0.0
    %v3414 = vmax.f32 %v3350, 0.0
    %v3415 = vmax.f32 %v3351, 0.0
    %v3416 = vmax.f32 %v3352, 0.0
    %v3417 = vmax.f32 %v3353, 0.0
    %v3418 = vmax.f32 %v3354, 0.0
    %v3419 = vmax.f32 %v3355, 0.0
    %v3420 = vmax.f32 %v3356, 0.0
    %v3421 = vmax.f32 %v3357, 0.0
    %v3422 = vmax.f32 %v3358, 0.0
    %v3423 = vmax.f32 %v3359, 0.0
    %v3424 = vmax.f32 %v3360, 0.0
    %v3425 = vmax.f32 %v3361, 0.0
    %v3426 = vmax.f32 %v3362, 0.0
    %v3427 = vmax.f32 %v3363, 0.0
    %v3428 = vmax.f32 %v3364, 0.0
    %v3429 = vmax.f32 %v3365, 0.0
    %v3430 = vld [vmem:[%s4] sm:$0xff]
    %v3431 = vld [vmem:[%s4 + $0x8] sm:$0xff]
    %v3432 = vld [vmem:[%s4 + $0x10] sm:$0xff]
    %v3433 = vld [vmem:[%s4 + $0x18] sm:$0xff]
    %v3434 = vld [vmem:[%s4 + $0x20] sm:$0xff]
    %v3435 = vld [vmem:[%s4 + $0x28] sm:$0xff]
    %v3436 = vld [vmem:[%s4 + $0x30] sm:$0xff]
    %v3437 = vld [vmem:[%s4 + $0x38] sm:$0xff]
    %v3438 = vld [vmem:[%s4 + $0x40] sm:$0xff]
    %v3499 = vrot.slane %v3366, 7
    %v3500 = vrot.slane %v3367, 7
    %v3501 = vsel %vm161, %v3499, %v3500
    %v3502 = vrot.slane %v3368, 7
    %v3503 = vrot.slane %v3369, 7
    %v3504 = vsel %vm161, %v3502, %v3503
    %v3505 = vrot.slane %v3370, 7
    %v3506 = vrot.slane %v3371, 7
    %v3507 = vsel %vm161, %v3505, %v3506
    %v3508 = vrot.slane %v3372, 7
    %v3509 = vrot.slane %v3373, 7
    %v3510 = vsel %vm161, %v3508, %v3509
    %v3511 = vrot.slane %v3374, 7
    %v3512 = vrot.slane %v3375, 7
    %v3513 = vsel %vm161, %v3511, %v3512
    %v3514 = vrot.slane %v3376, 7
    %v3515 = vrot.slane %v3377, 7
    %v3516 = vsel %vm161, %v3514, %v3515
    %v3517 = vrot.slane %v3378, 7
    %v3518 = vrot.slane %v3379, 7
    %v3519 = vsel %vm161, %v3517, %v3518
    %v3520 = vrot.slane %v3380, 7
    %v3521 = vrot.slane %v3381, 7
    %v3522 = vsel %vm161, %v3520, %v3521
    %v3523 = vrot.slane %v3382, 7
    %v3524 = vrot.slane %v3383, 7
    %v3525 = vsel %vm161, %v3523, %v3524
    %v3526 = vrot.slane %v3384, 7
    %v3527 = vrot.slane %v3385, 7
    %v3528 = vsel %vm161, %v3526, %v3527
    %v3529 = vrot.slane %v3386, 7
    %v3530 = vrot.slane %v3387, 7
    %v3531 = vsel %vm161, %v3529, %v3530
    %v3532 = vrot.slane %v3388, 7
    %v3533 = vrot.slane %v3389, 7
    %v3534 = vsel %vm161, %v3532, %v3533
    %v3535 = vrot.slane %v3390, 7
    %v3536 = vrot.slane %v3391, 7
    %v3537 = vsel %vm161, %v3535, %v3536
    %v3538 = vrot.slane %v3392, 7
    %v3539 = vrot.slane %v3393, 7
    %v3540 = vsel %vm161, %v3538, %v3539
    %v3541 = vrot.slane %v3394, 7
    %v3542 = vrot.slane %v3395, 7
    %v3543 = vsel %vm161, %v3541, %v3542
    %v3544 = vrot.slane %v3398, 7
    %v3545 = vrot.slane %v3399, 7
    %v3546 = vsel %vm161, %v3544, %v3545
    %v3547 = vrot.slane %v3400, 7
    %v3548 = vrot.slane %v3401, 7
    %v3549 = vsel %vm161, %v3547, %v3548
    %v3550 = vrot.slane %v3402, 7
    %v3551 = vrot.slane %v3403, 7
    %v3552 = vsel %vm161, %v3550, %v3551
    %v3553 = vrot.slane %v3404, 7
    %v3554 = vrot.slane %v3405, 7
    %v3555 = vsel %vm161, %v3553, %v3554
    %v3556 = vrot.slane %v3406, 7
    %v3557 = vrot.slane %v3407, 7
    %v3558 = vsel %vm161, %v3556, %v3557
    %v3559 = vrot.slane %v3408, 7
    %v3560 = vrot.slane %v3409, 7
    %v3561 = vsel %vm161, %v3559, %v3560
    %v3562 = vrot.slane %v3410, 7
    %v3563 = vrot.slane %v3411, 7
    %v3564 = vsel %vm161, %v3562, %v3563
    %v3565 = vrot.slane %v3412, 7
    %v3566 = vrot.slane %v3413, 7
    %v3567 = vsel %vm161, %v3565, %v3566
    %v3568 = vrot.slane %v3414, 7
    %v3569 = vrot.slane %v3415, 7
    %v3570 = vsel %vm161, %v3568, %v3569
    %v3571 = vrot.slane %v3416, 7
    %v3572 = vrot.slane %v3417, 7
    %v3573 = vsel %vm161, %v3571, %v3572
    %v3574 = vrot.slane %v3418, 7
    %v3575 = vrot.slane %v3419, 7
    %v3576 = vsel %vm161, %v3574, %v3575
    %v3577 = vrot.slane %v3420, 7
    %v3578 = vrot.slane %v3421, 7
    %v3579 = vsel %vm161, %v3577, %v3578
    %v3580 = vrot.slane %v3422, 7
    %v3581 = vrot.slane %v3423, 7
    %v3582 = vsel %vm161, %v3580, %v3581
    %v3583 = vrot.slane %v3424, 7
    %v3584 = vrot.slane %v3425, 7
    %v3585 = vsel %vm161, %v3583, %v3584
    %v3586 = vrot.slane %v3426, 7
    %v3587 = vrot.slane %v3427, 7
    %v3588 = vsel %vm161, %v3586, %v3587
    %v3649 = vsel %vm161, 0.0, %v3499
    %v3650 = vsel %vm161, 0.0, %v3502
    %v3651 = vsel %vm161, 0.0, %v3505
    %v3652 = vsel %vm161, 0.0, %v3508
    %v3653 = vsel %vm161, 0.0, %v3511
    %v3654 = vsel %vm161, 0.0, %v3514
    %v3655 = vsel %vm161, 0.0, %v3517
    %v3656 = vsel %vm161, 0.0, %v3520
    %v3657 = vsel %vm161, 0.0, %v3523
    %v3658 = vsel %vm161, 0.0, %v3526
    %v3659 = vsel %vm161, 0.0, %v3529
    %v3660 = vsel %vm161, 0.0, %v3532
    %v3661 = vsel %vm161, 0.0, %v3535
    %v3662 = vsel %vm161, 0.0, %v3538
    %v3663 = vsel %vm161, 0.0, %v3541
    %v3664 = vsel %vm161, 0.0, %v3544
    %v3665 = vsel %vm161, 0.0, %v3547
    %v3666 = vsel %vm161, 0.0, %v3550
    %v3667 = vsel %vm161, 0.0, %v3553
    %v3668 = vsel %vm161, 0.0, %v3556
    %v3669 = vsel %vm161, 0.0, %v3559
    %v3670 = vsel %vm161, 0.0, %v3562
    %v3671 = vsel %vm161, 0.0, %v3565
    %v3672 = vsel %vm161, 0.0, %v3568
    %v3673 = vsel %vm161, 0.0, %v3571
    %v3674 = vsel %vm161, 0.0, %v3574
    %v3675 = vsel %vm161, 0.0, %v3577
    %v3676 = vsel %vm161, 0.0, %v3580
    %v3677 = vsel %vm161, 0.0, %v3583
    %v3678 = vsel %vm161, 0.0, %v3586
    %v3679 = vrot.slane %v3366, 1
    %v3680 = vrot.slane %v3367, 1
    %v3681 = vsel %vm347, %v3679, %v3680
    %v3682 = vrot.slane %v3368, 1
    %v3683 = vrot.slane %v3369, 1
    %v3684 = vsel %vm347, %v3682, %v3683
    %v3685 = vrot.slane %v3370, 1
    %v3686 = vrot.slane %v3371, 1
    %v3687 = vsel %vm347, %v3685, %v3686
    %v3688 = vrot.slane %v3372, 1
    %v3689 = vrot.slane %v3373, 1
    %v3690 = vsel %vm347, %v3688, %v3689
    %v3691 = vrot.slane %v3374, 1
    %v3692 = vrot.slane %v3375, 1
    %v3693 = vsel %vm347, %v3691, %v3692
    %v3694 = vrot.slane %v3376, 1
    %v3695 = vrot.slane %v3377, 1
    %v3696 = vsel %vm347, %v3694, %v3695
    %v3697 = vrot.slane %v3378, 1
    %v3698 = vrot.slane %v3379, 1
    %v3699 = vsel %vm347, %v3697, %v3698
    %v3700 = vrot.slane %v3380, 1
    %v3701 = vrot.slane %v3381, 1
    %v3702 = vsel %vm347, %v3700, %v3701
    %v3703 = vrot.slane %v3382, 1
    %v3704 = vrot.slane %v3383, 1
    %v3705 = vsel %vm347, %v3703, %v3704
    %v3706 = vrot.slane %v3384, 1
    %v3707 = vrot.slane %v3385, 1
    %v3708 = vsel %vm347, %v3706, %v3707
    %v3709 = vrot.slane %v3386, 1
    %v3710 = vrot.slane %v3387, 1
    %v3711 = vsel %vm347, %v3709, %v3710
    %v3712 = vrot.slane %v3388, 1
    %v3713 = vrot.slane %v3389, 1
    %v3714 = vsel %vm347, %v3712, %v3713
    %v3715 = vrot.slane %v3390, 1
    %v3716 = vrot.slane %v3391, 1
    %v3717 = vsel %vm347, %v3715, %v3716
    %v3718 = vrot.slane %v3392, 1
    %v3719 = vrot.slane %v3393, 1
    %v3720 = vsel %vm347, %v3718, %v3719
    %v3721 = vrot.slane %v3394, 1
    %v3722 = vrot.slane %v3395, 1
    %v3723 = vsel %vm347, %v3721, %v3722
    %v3724 = vrot.slane %v3398, 1
    %v3725 = vrot.slane %v3399, 1
    %v3726 = vsel %vm347, %v3724, %v3725
    %v3727 = vrot.slane %v3400, 1
    %v3728 = vrot.slane %v3401, 1
    %v3729 = vsel %vm347, %v3727, %v3728
    %v3730 = vrot.slane %v3402, 1
    %v3731 = vrot.slane %v3403, 1
    %v3732 = vsel %vm347, %v3730, %v3731
    %v3733 = vrot.slane %v3404, 1
    %v3734 = vrot.slane %v3405, 1
    %v3735 = vsel %vm347, %v3733, %v3734
    %v3736 = vrot.slane %v3406, 1
    %v3737 = vrot.slane %v3407, 1
    %v3738 = vsel %vm347, %v3736, %v3737
    %v3739 = vrot.slane %v3408, 1
    %v3740 = vrot.slane %v3409, 1
    %v3741 = vsel %vm347, %v3739, %v3740
    %v3742 = vrot.slane %v3410, 1
    %v3743 = vrot.slane %v3411, 1
    %v3744 = vsel %vm347, %v3742, %v3743
    %v3745 = vrot.slane %v3412, 1
    %v3746 = vrot.slane %v3413, 1
    %v3747 = vsel %vm347, %v3745, %v3746
    %v3748 = vrot.slane %v3414, 1
    %v3749 = vrot.slane %v3415, 1
    %v3750 = vsel %vm347, %v3748, %v3749
    %v3751 = vrot.slane %v3416, 1
    %v3752 = vrot.slane %v3417, 1
    %v3753 = vsel %vm347, %v3751, %v3752
    %v3754 = vrot.slane %v3418, 1
    %v3755 = vrot.slane %v3419, 1
    %v3756 = vsel %vm347, %v3754, %v3755
    %v3757 = vrot.slane %v3420, 1
    %v3758 = vrot.slane %v3421, 1
    %v3759 = vsel %vm347, %v3757, %v3758
    %v3760 = vrot.slane %v3422, 1
    %v3761 = vrot.slane %v3423, 1
    %v3762 = vsel %vm347, %v3760, %v3761
    %v3763 = vrot.slane %v3424, 1
    %v3764 = vrot.slane %v3425, 1
    %v3765 = vsel %vm347, %v3763, %v3764
    %v3766 = vrot.slane %v3426, 1
    %v3767 = vrot.slane %v3427, 1
    %v3768 = vsel %vm347, %v3766, %v3767
    %v3799 = vsel %vm347, %v3680, 0.0
    %v3800 = vsel %vm347, %v3683, 0.0
    %v3801 = vsel %vm347, %v3686, 0.0
    %v3802 = vsel %vm347, %v3689, 0.0
    %v3803 = vsel %vm347, %v3692, 0.0
    %v3804 = vsel %vm347, %v3695, 0.0
    %v3805 = vsel %vm347, %v3698, 0.0
    %v3806 = vsel %vm347, %v3701, 0.0
    %v3807 = vsel %vm347, %v3704, 0.0
    %v3808 = vsel %vm347, %v3707, 0.0
    %v3809 = vsel %vm347, %v3710, 0.0
    %v3810 = vsel %vm347, %v3713, 0.0
    %v3811 = vsel %vm347, %v3716, 0.0
    %v3812 = vsel %vm347, %v3719, 0.0
    %v3813 = vsel %vm347, %v3722, 0.0
    %v3814 = vsel %vm347, %v3725, 0.0
    %v3815 = vsel %vm347, %v3728, 0.0
    %v3816 = vsel %vm347, %v3731, 0.0
    %v3817 = vsel %vm347, %v3734, 0.0
    %v3818 = vsel %vm347, %v3737, 0.0
    %v3819 = vsel %vm347, %v3740, 0.0
    %v3820 = vsel %vm347, %v3743, 0.0
    %v3821 = vsel %vm347, %v3746, 0.0
    %v3822 = vsel %vm347, %v3749, 0.0
    %v3823 = vsel %vm347, %v3752, 0.0
    %v3824 = vsel %vm347, %v3755, 0.0
    %v3825 = vsel %vm347, %v3758, 0.0
    %v3826 = vsel %vm347, %v3761, 0.0
    %v3827 = vsel %vm347, %v3764, 0.0
    %v3828 = vsel %vm347, %v3767, 0.0
    %v3833 = vrot.slane %v3396, 7
    %v3834 = vrot.slane %v3397, 7
    %v3835 = vsel %vm161, %v3833, %v3834
    %v3836 = vrot.slane %v3428, 7
    %v3837 = vrot.slane %v3429, 7
    %v3838 = vsel %vm161, %v3836, %v3837
    %v3841 = vsel %vm161, 0.0, %v3833
    %v3842 = vsel %vm161, 0.0, %v3836
    %v3843 = vrot.slane %v3396, 1
    %v3844 = vrot.slane %v3397, 1
    %v3845 = vsel %vm347, %v3843, %v3844
    %v3846 = vrot.slane %v3428, 1
    %v3847 = vrot.slane %v3429, 1
    %v3848 = vsel %vm347, %v3846, %v3847
    %v3851 = vsel %vm347, %v3844, 0.0
    %v3852 = vsel %vm347, %v3847, 0.0
    %3853 = vrot.lane.b32.xlu0 %v3366, 8
    %v3854 = vpop.permute.xlu0 %3853
    %3855 = vrot.lane.b32.xlu0 %v3367, 8
    %v3856 = vpop.permute.xlu0 %3855
    %3857 = vrot.lane.b32.xlu0 %v3368, 8
    %v3858 = vpop.permute.xlu0 %3857
    %3859 = vrot.lane.b32.xlu0 %v3369, 8
    %v3860 = vpop.permute.xlu0 %3859
    %3861 = vrot.lane.b32.xlu0 %v3370, 8
    %v3862 = vpop.permute.xlu0 %3861
    %3863 = vrot.lane.b32.xlu0 %v3371, 8
    %v3864 = vpop.permute.xlu0 %3863
    %3865 = vrot.lane.b32.xlu0 %v3372, 8
    %v3866 = vpop.permute.xlu0 %3865
    %3867 = vrot.lane.b32.xlu0 %v3373, 8
    %v3868 = vpop.permute.xlu0 %3867
    %3869 = vrot.lane.b32.xlu0 %v3374, 8
    %v3870 = vpop.permute.xlu0 %3869
    %3871 = vrot.lane.b32.xlu0 %v3375, 8
    %v3872 = vpop.permute.xlu0 %3871
    %3873 = vrot.lane.b32.xlu0 %v3376, 8
    %v3874 = vpop.permute.xlu0 %3873
    %3875 = vrot.lane.b32.xlu0 %v3377, 8
    %v3876 = vpop.permute.xlu0 %3875
    %3877 = vrot.lane.b32.xlu0 %v3378, 8
    %v3878 = vpop.permute.xlu0 %3877
    %3879 = vrot.lane.b32.xlu0 %v3379, 8
    %v3880 = vpop.permute.xlu0 %3879
    %3881 = vrot.lane.b32.xlu0 %v3380, 8
    %v3882 = vpop.permute.xlu0 %3881
    %3883 = vrot.lane.b32.xlu0 %v3381, 8
    %v3884 = vpop.permute.xlu0 %3883
    %3885 = vrot.lane.b32.xlu0 %v3382, 8
    %v3886 = vpop.permute.xlu0 %3885
    %3887 = vrot.lane.b32.xlu0 %v3383, 8
    %v3888 = vpop.permute.xlu0 %3887
    %3889 = vrot.lane.b32.xlu0 %v3384, 8
    %v3890 = vpop.permute.xlu0 %3889
    %3891 = vrot.lane.b32.xlu0 %v3385, 8
    %v3892 = vpop.permute.xlu0 %3891
    %3893 = vrot.lane.b32.xlu0 %v3386, 8
    %v3894 = vpop.permute.xlu0 %3893
    %3895 = vrot.lane.b32.xlu0 %v3387, 8
    %v3896 = vpop.permute.xlu0 %3895
    %3897 = vrot.lane.b32.xlu0 %v3388, 8
    %v3898 = vpop.permute.xlu0 %3897
    %3899 = vrot.lane.b32.xlu0 %v3389, 8
    %v3900 = vpop.permute.xlu0 %3899
    %3901 = vrot.lane.b32.xlu0 %v3390, 8
    %v3902 = vpop.permute.xlu0 %3901
    %3903 = vrot.lane.b32.xlu0 %v3391, 8
    %v3904 = vpop.permute.xlu0 %3903
    %3905 = vrot.lane.b32.xlu0 %v3392, 8
    %v3906 = vpop.permute.xlu0 %3905
    %3907 = vrot.lane.b32.xlu0 %v3393, 8
    %v3908 = vpop.permute.xlu0 %3907
    %3909 = vrot.lane.b32.xlu0 %v3394, 8
    %v3910 = vpop.permute.xlu0 %3909
    %3911 = vrot.lane.b32.xlu0 %v3395, 8
    %v3912 = vpop.permute.xlu0 %3911
    %3913 = vrot.lane.b32.xlu0 %v3398, 8
    %v3914 = vpop.permute.xlu0 %3913
    %3915 = vrot.lane.b32.xlu0 %v3399, 8
    %v3916 = vpop.permute.xlu0 %3915
    %3917 = vrot.lane.b32.xlu0 %v3400, 8
    %v3918 = vpop.permute.xlu0 %3917
    %3919 = vrot.lane.b32.xlu0 %v3401, 8
    %v3920 = vpop.permute.xlu0 %3919
    %3921 = vrot.lane.b32.xlu0 %v3402, 8
    %v3922 = vpop.permute.xlu0 %3921
    %3923 = vrot.lane.b32.xlu0 %v3403, 8
    %v3924 = vpop.permute.xlu0 %3923
    %3925 = vrot.lane.b32.xlu0 %v3404, 8
    %v3926 = vpop.permute.xlu0 %3925
    %3927 = vrot.lane.b32.xlu0 %v3405, 8
    %v3928 = vpop.permute.xlu0 %3927
    %3929 = vrot.lane.b32.xlu0 %v3406, 8
    %v3930 = vpop.permute.xlu0 %3929
    %3931 = vrot.lane.b32.xlu0 %v3407, 8
    %v3932 = vpop.permute.xlu0 %3931
    %3933 = vrot.lane.b32.xlu0 %v3408, 8
    %v3934 = vpop.permute.xlu0 %3933
    %3935 = vrot.lane.b32.xlu0 %v3409, 8
    %v3936 = vpop.permute.xlu0 %3935
    %3937 = vrot.lane.b32.xlu0 %v3410, 8
    %v3938 = vpop.permute.xlu0 %3937
    %3939 = vrot.lane.b32.xlu0 %v3411, 8
    %v3940 = vpop.permute.xlu0 %3939
    %3941 = vrot.lane.b32.xlu0 %v3412, 8
    %v3942 = vpop.permute.xlu0 %3941
    %3943 = vrot.lane.b32.xlu0 %v3413, 8
    %v3944 = vpop.permute.xlu0 %3943
    %3945 = vrot.lane.b32.xlu0 %v3414, 8
    %v3946 = vpop.permute.xlu0 %3945
    %3947 = vrot.lane.b32.xlu0 %v3415, 8
    %v3948 = vpop.permute.xlu0 %3947
    %3949 = vrot.lane.b32.xlu0 %v3416, 8
    %v3950 = vpop.permute.xlu0 %3949
    %3951 = vrot.lane.b32.xlu0 %v3417, 8
    %v3952 = vpop.permute.xlu0 %3951
    %3953 = vrot.lane.b32.xlu0 %v3418, 8
    %v3954 = vpop.permute.xlu0 %3953
    %3955 = vrot.lane.b32.xlu0 %v3419, 8
    %v3956 = vpop.permute.xlu0 %3955
    %3957 = vrot.lane.b32.xlu0 %v3420, 8
    %v3958 = vpop.permute.xlu0 %3957
    %3959 = vrot.lane.b32.xlu0 %v3421, 8
    %v3960 = vpop.permute.xlu0 %3959
    %3961 = vrot.lane.b32.xlu0 %v3422, 8
    %v3962 = vpop.permute.xlu0 %3961
    %3963 = vrot.lane.b32.xlu0 %v3423, 8
    %v3964 = vpop.permute.xlu0 %3963
    %3965 = vrot.lane.b32.xlu0 %v3424, 8
    %v3966 = vpop.permute.xlu0 %3965
    %3967 = vrot.lane.b32.xlu0 %v3425, 8
    %v3968 = vpop.permute.xlu0 %3967
    %3969 = vrot.lane.b32.xlu0 %v3426, 8
    %v3970 = vpop.permute.xlu0 %3969
    %3971 = vrot.lane.b32.xlu0 %v3427, 8
    %v3972 = vpop.permute.xlu0 %3971
    %4063 = vrot.lane.b32.xlu0 %v3681, 16
    %v4064 = vpop.permute.xlu0 %4063
    %4065 = vrot.lane.b32.xlu0 %v3799, 16
    %v4066 = vpop.permute.xlu0 %4065
    %4067 = vrot.lane.b32.xlu0 %v3684, 16
    %v4068 = vpop.permute.xlu0 %4067
    %4069 = vrot.lane.b32.xlu0 %v3800, 16
    %v4070 = vpop.permute.xlu0 %4069
    %4071 = vrot.lane.b32.xlu0 %v3687, 16
    %v4072 = vpop.permute.xlu0 %4071
    %4073 = vrot.lane.b32.xlu0 %v3801, 16
    %v4074 = vpop.permute.xlu0 %4073
    %4075 = vrot.lane.b32.xlu0 %v3690, 16
    %v4076 = vpop.permute.xlu0 %4075
    %4077 = vrot.lane.b32.xlu0 %v3802, 16
    %v4078 = vpop.permute.xlu0 %4077
    %4079 = vrot.lane.b32.xlu0 %v3693, 16
    %v4080 = vpop.permute.xlu0 %4079
    %4081 = vrot.lane.b32.xlu0 %v3803, 16
    %v4082 = vpop.permute.xlu0 %4081
    %4083 = vrot.lane.b32.xlu0 %v3696, 16
    %v4084 = vpop.permute.xlu0 %4083
    %4085 = vrot.lane.b32.xlu0 %v3804, 16
    %v4086 = vpop.permute.xlu0 %4085
    %4087 = vrot.lane.b32.xlu0 %v3699, 16
    %v4088 = vpop.permute.xlu0 %4087
    %4089 = vrot.lane.b32.xlu0 %v3805, 16
    %v4090 = vpop.permute.xlu0 %4089
    %4091 = vrot.lane.b32.xlu0 %v3702, 16
    %v4092 = vpop.permute.xlu0 %4091
    %4093 = vrot.lane.b32.xlu0 %v3806, 16
    %v4094 = vpop.permute.xlu0 %4093
    %4095 = vrot.lane.b32.xlu0 %v3705, 16
    %v4096 = vpop.permute.xlu0 %4095
    %4097 = vrot.lane.b32.xlu0 %v3807, 16
    %v4098 = vpop.permute.xlu0 %4097
    %4099 = vrot.lane.b32.xlu0 %v3708, 16
    %v4100 = vpop.permute.xlu0 %4099
    %4101 = vrot.lane.b32.xlu0 %v3808, 16
    %v4102 = vpop.permute.xlu0 %4101
    %4103 = vrot.lane.b32.xlu0 %v3711, 16
    %v4104 = vpop.permute.xlu0 %4103
    %4105 = vrot.lane.b32.xlu0 %v3809, 16
    %v4106 = vpop.permute.xlu0 %4105
    %4107 = vrot.lane.b32.xlu0 %v3714, 16
    %v4108 = vpop.permute.xlu0 %4107
    %4109 = vrot.lane.b32.xlu0 %v3810, 16
    %v4110 = vpop.permute.xlu0 %4109
    %4111 = vrot.lane.b32.xlu0 %v3717, 16
    %v4112 = vpop.permute.xlu0 %4111
    %4113 = vrot.lane.b32.xlu0 %v3811, 16
    %v4114 = vpop.permute.xlu0 %4113
    %4115 = vrot.lane.b32.xlu0 %v3720, 16
    %v4116 = vpop.permute.xlu0 %4115
    %4117 = vrot.lane.b32.xlu0 %v3812, 16
    %v4118 = vpop.permute.xlu0 %4117
    %4119 = vrot.lane.b32.xlu0 %v3723, 16
    %v4120 = vpop.permute.xlu0 %4119
    %4121 = vrot.lane.b32.xlu0 %v3813, 16
    %v4122 = vpop.permute.xlu0 %4121
    %4123 = vrot.lane.b32.xlu0 %v3726, 16
    %v4124 = vpop.permute.xlu0 %4123
    %4125 = vrot.lane.b32.xlu0 %v3814, 16
    %v4126 = vpop.permute.xlu0 %4125
    %4127 = vrot.lane.b32.xlu0 %v3729, 16
    %v4128 = vpop.permute.xlu0 %4127
    %4129 = vrot.lane.b32.xlu0 %v3815, 16
    %v4130 = vpop.permute.xlu0 %4129
    %4131 = vrot.lane.b32.xlu0 %v3732, 16
    %v4132 = vpop.permute.xlu0 %4131
    %4133 = vrot.lane.b32.xlu0 %v3816, 16
    %v4134 = vpop.permute.xlu0 %4133
    %4135 = vrot.lane.b32.xlu0 %v3735, 16
    %v4136 = vpop.permute.xlu0 %4135
    %4137 = vrot.lane.b32.xlu0 %v3817, 16
    %v4138 = vpop.permute.xlu0 %4137
    %4139 = vrot.lane.b32.xlu0 %v3738, 16
    %v4140 = vpop.permute.xlu0 %4139
    %4141 = vrot.lane.b32.xlu0 %v3818, 16
    %v4142 = vpop.permute.xlu0 %4141
    %4143 = vrot.lane.b32.xlu0 %v3741, 16
    %v4144 = vpop.permute.xlu0 %4143
    %4145 = vrot.lane.b32.xlu0 %v3819, 16
    %v4146 = vpop.permute.xlu0 %4145
    %4147 = vrot.lane.b32.xlu0 %v3744, 16
    %v4148 = vpop.permute.xlu0 %4147
    %4149 = vrot.lane.b32.xlu0 %v3820, 16
    %v4150 = vpop.permute.xlu0 %4149
    %4151 = vrot.lane.b32.xlu0 %v3747, 16
    %v4152 = vpop.permute.xlu0 %4151
    %4153 = vrot.lane.b32.xlu0 %v3821, 16
    %v4154 = vpop.permute.xlu0 %4153
    %4155 = vrot.lane.b32.xlu0 %v3750, 16
    %v4156 = vpop.permute.xlu0 %4155
    %4157 = vrot.lane.b32.xlu0 %v3822, 16
    %v4158 = vpop.permute.xlu0 %4157
    %4159 = vrot.lane.b32.xlu0 %v3753, 16
    %v4160 = vpop.permute.xlu0 %4159
    %4161 = vrot.lane.b32.xlu0 %v3823, 16
    %v4162 = vpop.permute.xlu0 %4161
    %4163 = vrot.lane.b32.xlu0 %v3756, 16
    %v4164 = vpop.permute.xlu0 %4163
    %4165 = vrot.lane.b32.xlu0 %v3824, 16
    %v4166 = vpop.permute.xlu0 %4165
    %4167 = vrot.lane.b32.xlu0 %v3759, 16
    %v4168 = vpop.permute.xlu0 %4167
    %4169 = vrot.lane.b32.xlu0 %v3825, 16
    %v4170 = vpop.permute.xlu0 %4169
    %4171 = vrot.lane.b32.xlu0 %v3762, 16
    %v4172 = vpop.permute.xlu0 %4171
    %4173 = vrot.lane.b32.xlu0 %v3826, 16
    %v4174 = vpop.permute.xlu0 %4173
    %4175 = vrot.lane.b32.xlu0 %v3765, 16
    %v4176 = vpop.permute.xlu0 %4175
    %4177 = vrot.lane.b32.xlu0 %v3827, 16
    %v4178 = vpop.permute.xlu0 %4177
    %4179 = vrot.lane.b32.xlu0 %v3768, 16
    %v4180 = vpop.permute.xlu0 %4179
    %4181 = vrot.lane.b32.xlu0 %v3828, 16
    %v4182 = vpop.permute.xlu0 %4181
    %4275 = vrot.lane.b32.xlu0 %v3649, 24
    %v4276 = vpop.permute.xlu0 %4275
    %4277 = vrot.lane.b32.xlu0 %v3501, 24
    %v4278 = vpop.permute.xlu0 %4277
    %4279 = vrot.lane.b32.xlu0 %v3650, 24
    %v4280 = vpop.permute.xlu0 %4279
    %4281 = vrot.lane.b32.xlu0 %v3504, 24
    %v4282 = vpop.permute.xlu0 %4281
    %4283 = vrot.lane.b32.xlu0 %v3651, 24
    %v4284 = vpop.permute.xlu0 %4283
    %4285 = vrot.lane.b32.xlu0 %v3507, 24
    %v4286 = vpop.permute.xlu0 %4285
    %4287 = vrot.lane.b32.xlu0 %v3652, 24
    %v4288 = vpop.permute.xlu0 %4287
    %4289 = vrot.lane.b32.xlu0 %v3510, 24
    %v4290 = vpop.permute.xlu0 %4289
    %4291 = vrot.lane.b32.xlu0 %v3653, 24
    %v4292 = vpop.permute.xlu0 %4291
    %4293 = vrot.lane.b32.xlu0 %v3513, 24
    %v4294 = vpop.permute.xlu0 %4293
    %4295 = vrot.lane.b32.xlu0 %v3654, 24
    %v4296 = vpop.permute.xlu0 %4295
    %4297 = vrot.lane.b32.xlu0 %v3516, 24
    %v4298 = vpop.permute.xlu0 %4297
    %4299 = vrot.lane.b32.xlu0 %v3655, 24
    %v4300 = vpop.permute.xlu0 %4299
    %4301 = vrot.lane.b32.xlu0 %v3519, 24
    %v4302 = vpop.permute.xlu0 %4301
    %4303 = vrot.lane.b32.xlu0 %v3656, 24
    %v4304 = vpop.permute.xlu0 %4303
    %4305 = vrot.lane.b32.xlu0 %v3522, 24
    %v4306 = vpop.permute.xlu0 %4305
    %4307 = vrot.lane.b32.xlu0 %v3657, 24
    %v4308 = vpop.permute.xlu0 %4307
    %4309 = vrot.lane.b32.xlu0 %v3525, 24
    %v4310 = vpop.permute.xlu0 %4309
    %4311 = vrot.lane.b32.xlu0 %v3658, 24
    %v4312 = vpop.permute.xlu0 %4311
    %4313 = vrot.lane.b32.xlu0 %v3528, 24
    %v4314 = vpop.permute.xlu0 %4313
    %4315 = vrot.lane.b32.xlu0 %v3659, 24
    %v4316 = vpop.permute.xlu0 %4315
    %4317 = vrot.lane.b32.xlu0 %v3531, 24
    %v4318 = vpop.permute.xlu0 %4317
    %4319 = vrot.lane.b32.xlu0 %v3660, 24
    %v4320 = vpop.permute.xlu0 %4319
    %4321 = vrot.lane.b32.xlu0 %v3534, 24
    %v4322 = vpop.permute.xlu0 %4321
    %4323 = vrot.lane.b32.xlu0 %v3661, 24
    %v4324 = vpop.permute.xlu0 %4323
    %4325 = vrot.lane.b32.xlu0 %v3537, 24
    %v4326 = vpop.permute.xlu0 %4325
    %4327 = vrot.lane.b32.xlu0 %v3662, 24
    %v4328 = vpop.permute.xlu0 %4327
    %4329 = vrot.lane.b32.xlu0 %v3540, 24
    %v4330 = vpop.permute.xlu0 %4329
    %4331 = vrot.lane.b32.xlu0 %v3663, 24
    %v4332 = vpop.permute.xlu0 %4331
    %4333 = vrot.lane.b32.xlu0 %v3543, 24
    %v4334 = vpop.permute.xlu0 %4333
    %4335 = vrot.lane.b32.xlu0 %v3841, 24
    %v4336 = vpop.permute.xlu0 %4335
    %4337 = vrot.lane.b32.xlu0 %v3835, 24
    %v4338 = vpop.permute.xlu0 %4337
    %4339 = vrot.lane.b32.xlu0 %v3664, 24
    %v4340 = vpop.permute.xlu0 %4339
    %4341 = vrot.lane.b32.xlu0 %v3546, 24
    %v4342 = vpop.permute.xlu0 %4341
    %4343 = vrot.lane.b32.xlu0 %v3665, 24
    %v4344 = vpop.permute.xlu0 %4343
    %4345 = vrot.lane.b32.xlu0 %v3549, 24
    %v4346 = vpop.permute.xlu0 %4345
    %4347 = vrot.lane.b32.xlu0 %v3666, 24
    %v4348 = vpop.permute.xlu0 %4347
    %4349 = vrot.lane.b32.xlu0 %v3552, 24
    %v4350 = vpop.permute.xlu0 %4349
    %4351 = vrot.lane.b32.xlu0 %v3667, 24
    %v4352 = vpop.permute.xlu0 %4351
    %4353 = vrot.lane.b32.xlu0 %v3555, 24
    %v4354 = vpop.permute.xlu0 %4353
    %4355 = vrot.lane.b32.xlu0 %v3668, 24
    %v4356 = vpop.permute.xlu0 %4355
    %4357 = vrot.lane.b32.xlu0 %v3558, 24
    %v4358 = vpop.permute.xlu0 %4357
    %4359 = vrot.lane.b32.xlu0 %v3669, 24
    %v4360 = vpop.permute.xlu0 %4359
    %4361 = vrot.lane.b32.xlu0 %v3561, 24
    %v4362 = vpop.permute.xlu0 %4361
    %4363 = vrot.lane.b32.xlu0 %v3670, 24
    %v4364 = vpop.permute.xlu0 %4363
    %4365 = vrot.lane.b32.xlu0 %v3564, 24
    %v4366 = vpop.permute.xlu0 %4365
    %4367 = vrot.lane.b32.xlu0 %v3671, 24
    %v4368 = vpop.permute.xlu0 %4367
    %4369 = vrot.lane.b32.xlu0 %v3567, 24
    %v4370 = vpop.permute.xlu0 %4369
    %4371 = vrot.lane.b32.xlu0 %v3672, 24
    %v4372 = vpop.permute.xlu0 %4371
    %4373 = vrot.lane.b32.xlu0 %v3570, 24
    %v4374 = vpop.permute.xlu0 %4373
    %4375 = vrot.lane.b32.xlu0 %v3673, 24
    %v4376 = vpop.permute.xlu0 %4375
    %4377 = vrot.lane.b32.xlu0 %v3573, 24
    %v4378 = vpop.permute.xlu0 %4377
    %4379 = vrot.lane.b32.xlu0 %v3674, 24
    %v4380 = vpop.permute.xlu0 %4379
    %4381 = vrot.lane.b32.xlu0 %v3576, 24
    %v4382 = vpop.permute.xlu0 %4381
    %4383 = vrot.lane.b32.xlu0 %v3675, 24
    %v4384 = vpop.permute.xlu0 %4383
    %4385 = vrot.lane.b32.xlu0 %v3579, 24
    %v4386 = vpop.permute.xlu0 %4385
    %4387 = vrot.lane.b32.xlu0 %v3676, 24
    %v4388 = vpop.permute.xlu0 %4387
    %4389 = vrot.lane.b32.xlu0 %v3582, 24
    %v4390 = vpop.permute.xlu0 %4389
    %4391 = vrot.lane.b32.xlu0 %v3677, 24
    %v4392 = vpop.permute.xlu0 %4391
    %4393 = vrot.lane.b32.xlu0 %v3585, 24
    %v4394 = vpop.permute.xlu0 %4393
    %4395 = vrot.lane.b32.xlu0 %v3678, 24
    %v4396 = vpop.permute.xlu0 %4395
    %4397 = vrot.lane.b32.xlu0 %v3588, 24
    %v4398 = vpop.permute.xlu0 %4397
    %4399 = vrot.lane.b32.xlu0 %v3842, 24
    %v4400 = vpop.permute.xlu0 %4399
    %4401 = vrot.lane.b32.xlu0 %v3838, 24
    %v4402 = vpop.permute.xlu0 %4401
    %4467 = vrot.lane.b32.xlu0 %v3366, 32
    %v4468 = vpop.permute.xlu0 %4467
    %4469 = vrot.lane.b32.xlu0 %v3367, 32
    %v4470 = vpop.permute.xlu0 %4469
    %4471 = vrot.lane.b32.xlu0 %v3368, 32
    %v4472 = vpop.permute.xlu0 %4471
    %4473 = vrot.lane.b32.xlu0 %v3369, 32
    %v4474 = vpop.permute.xlu0 %4473
    %4475 = vrot.lane.b32.xlu0 %v3370, 32
    %v4476 = vpop.permute.xlu0 %4475
    %4477 = vrot.lane.b32.xlu0 %v3371, 32
    %v4478 = vpop.permute.xlu0 %4477
    %4479 = vrot.lane.b32.xlu0 %v3372, 32
    %v4480 = vpop.permute.xlu0 %4479
    %4481 = vrot.lane.b32.xlu0 %v3373, 32
    %v4482 = vpop.permute.xlu0 %4481
    %4483 = vrot.lane.b32.xlu0 %v3374, 32
    %v4484 = vpop.permute.xlu0 %4483
    %4485 = vrot.lane.b32.xlu0 %v3375, 32
    %v4486 = vpop.permute.xlu0 %4485
    %4487 = vrot.lane.b32.xlu0 %v3376, 32
    %v4488 = vpop.permute.xlu0 %4487
    %4489 = vrot.lane.b32.xlu0 %v3377, 32
    %v4490 = vpop.permute.xlu0 %4489
    %4491 = vrot.lane.b32.xlu0 %v3378, 32
    %v4492 = vpop.permute.xlu0 %4491
    %4493 = vrot.lane.b32.xlu0 %v3379, 32
    %v4494 = vpop.permute.xlu0 %4493
    %4495 = vrot.lane.b32.xlu0 %v3380, 32
    %v4496 = vpop.permute.xlu0 %4495
    %4497 = vrot.lane.b32.xlu0 %v3381, 32
    %v4498 = vpop.permute.xlu0 %4497
    %4499 = vrot.lane.b32.xlu0 %v3382, 32
    %v4500 = vpop.permute.xlu0 %4499
    %4501 = vrot.lane.b32.xlu0 %v3383, 32
    %v4502 = vpop.permute.xlu0 %4501
    %4503 = vrot.lane.b32.xlu0 %v3384, 32
    %v4504 = vpop.permute.xlu0 %4503
    %4505 = vrot.lane.b32.xlu0 %v3385, 32
    %v4506 = vpop.permute.xlu0 %4505
    %4507 = vrot.lane.b32.xlu0 %v3386, 32
    %v4508 = vpop.permute.xlu0 %4507
    %4509 = vrot.lane.b32.xlu0 %v3387, 32
    %v4510 = vpop.permute.xlu0 %4509
    %4511 = vrot.lane.b32.xlu0 %v3388, 32
    %v4512 = vpop.permute.xlu0 %4511
    %4513 = vrot.lane.b32.xlu0 %v3389, 32
    %v4514 = vpop.permute.xlu0 %4513
    %4515 = vrot.lane.b32.xlu0 %v3390, 32
    %v4516 = vpop.permute.xlu0 %4515
    %4517 = vrot.lane.b32.xlu0 %v3391, 32
    %v4518 = vpop.permute.xlu0 %4517
    %4519 = vrot.lane.b32.xlu0 %v3392, 32
    %v4520 = vpop.permute.xlu0 %4519
    %4521 = vrot.lane.b32.xlu0 %v3393, 32
    %v4522 = vpop.permute.xlu0 %4521
    %4523 = vrot.lane.b32.xlu0 %v3394, 32
    %v4524 = vpop.permute.xlu0 %4523
    %4525 = vrot.lane.b32.xlu0 %v3395, 32
    %v4526 = vpop.permute.xlu0 %4525
    %4527 = vrot.lane.b32.xlu0 %v3396, 32
    %v4528 = vpop.permute.xlu0 %4527
    %4529 = vrot.lane.b32.xlu0 %v3397, 32
    %v4530 = vpop.permute.xlu0 %4529
    %4531 = vrot.lane.b32.xlu0 %v3398, 32
    %v4532 = vpop.permute.xlu0 %4531
    %4533 = vrot.lane.b32.xlu0 %v3399, 32
    %v4534 = vpop.permute.xlu0 %4533
    %4535 = vrot.lane.b32.xlu0 %v3400, 32
    %v4536 = vpop.permute.xlu0 %4535
    %4537 = vrot.lane.b32.xlu0 %v3401, 32
    %v4538 = vpop.permute.xlu0 %4537
    %4539 = vrot.lane.b32.xlu0 %v3402, 32
    %v4540 = vpop.permute.xlu0 %4539
    %4541 = vrot.lane.b32.xlu0 %v3403, 32
    %v4542 = vpop.permute.xlu0 %4541
    %4543 = vrot.lane.b32.xlu0 %v3404, 32
    %v4544 = vpop.permute.xlu0 %4543
    %4545 = vrot.lane.b32.xlu0 %v3405, 32
    %v4546 = vpop.permute.xlu0 %4545
    %4547 = vrot.lane.b32.xlu0 %v3406, 32
    %v4548 = vpop.permute.xlu0 %4547
    %4549 = vrot.lane.b32.xlu0 %v3407, 32
    %v4550 = vpop.permute.xlu0 %4549
    %4551 = vrot.lane.b32.xlu0 %v3408, 32
    %v4552 = vpop.permute.xlu0 %4551
    %4553 = vrot.lane.b32.xlu0 %v3409, 32
    %v4554 = vpop.permute.xlu0 %4553
    %4555 = vrot.lane.b32.xlu0 %v3410, 32
    %v4556 = vpop.permute.xlu0 %4555
    %4557 = vrot.lane.b32.xlu0 %v3411, 32
    %v4558 = vpop.permute.xlu0 %4557
    %4559 = vrot.lane.b32.xlu0 %v3412, 32
    %v4560 = vpop.permute.xlu0 %4559
    %4561 = vrot.lane.b32.xlu0 %v3413, 32
    %v4562 = vpop.permute.xlu0 %4561
    %4563 = vrot.lane.b32.xlu0 %v3414, 32
    %v4564 = vpop.permute.xlu0 %4563
    %4565 = vrot.lane.b32.xlu0 %v3415, 32
    %v4566 = vpop.permute.xlu0 %4565
    %4567 = vrot.lane.b32.xlu0 %v3416, 32
    %v4568 = vpop.permute.xlu0 %4567
    %4569 = vrot.lane.b32.xlu0 %v3417, 32
    %v4570 = vpop.permute.xlu0 %4569
    %4571 = vrot.lane.b32.xlu0 %v3418, 32
    %v4572 = vpop.permute.xlu0 %4571
    %4573 = vrot.lane.b32.xlu0 %v3419, 32
    %v4574 = vpop.permute.xlu0 %4573
    %4575 = vrot.lane.b32.xlu0 %v3420, 32
    %v4576 = vpop.permute.xlu0 %4575
    %4577 = vrot.lane.b32.xlu0 %v3421, 32
    %v4578 = vpop.permute.xlu0 %4577
    %4579 = vrot.lane.b32.xlu0 %v3422, 32
    %v4580 = vpop.permute.xlu0 %4579
    %4581 = vrot.lane.b32.xlu0 %v3423, 32
    %v4582 = vpop.permute.xlu0 %4581
    %4583 = vrot.lane.b32.xlu0 %v3424, 32
    %v4584 = vpop.permute.xlu0 %4583
    %4585 = vrot.lane.b32.xlu0 %v3425, 32
    %v4586 = vpop.permute.xlu0 %4585
    %4587 = vrot.lane.b32.xlu0 %v3426, 32
    %v4588 = vpop.permute.xlu0 %4587
    %4589 = vrot.lane.b32.xlu0 %v3427, 32
    %v4590 = vpop.permute.xlu0 %4589
    %4591 = vrot.lane.b32.xlu0 %v3428, 32
    %v4592 = vpop.permute.xlu0 %4591
    %4593 = vrot.lane.b32.xlu0 %v3429, 32
    %v4594 = vpop.permute.xlu0 %4593
    %4661 = vrot.lane.b32.xlu0 %v3681, 40
    %v4662 = vpop.permute.xlu0 %4661
    %4663 = vrot.lane.b32.xlu0 %v3799, 40
    %v4664 = vpop.permute.xlu0 %4663
    %4665 = vrot.lane.b32.xlu0 %v3684, 40
    %v4666 = vpop.permute.xlu0 %4665
    %4667 = vrot.lane.b32.xlu0 %v3800, 40
    %v4668 = vpop.permute.xlu0 %4667
    %4669 = vrot.lane.b32.xlu0 %v3687, 40
    %v4670 = vpop.permute.xlu0 %4669
    %4671 = vrot.lane.b32.xlu0 %v3801, 40
    %v4672 = vpop.permute.xlu0 %4671
    %4673 = vrot.lane.b32.xlu0 %v3690, 40
    %v4674 = vpop.permute.xlu0 %4673
    %4675 = vrot.lane.b32.xlu0 %v3802, 40
    %v4676 = vpop.permute.xlu0 %4675
    %4677 = vrot.lane.b32.xlu0 %v3693, 40
    %v4678 = vpop.permute.xlu0 %4677
    %4679 = vrot.lane.b32.xlu0 %v3803, 40
    %v4680 = vpop.permute.xlu0 %4679
    %4681 = vrot.lane.b32.xlu0 %v3696, 40
    %v4682 = vpop.permute.xlu0 %4681
    %4683 = vrot.lane.b32.xlu0 %v3804, 40
    %v4684 = vpop.permute.xlu0 %4683
    %4685 = vrot.lane.b32.xlu0 %v3699, 40
    %v4686 = vpop.permute.xlu0 %4685
    %4687 = vrot.lane.b32.xlu0 %v3805, 40
    %v4688 = vpop.permute.xlu0 %4687
    %4689 = vrot.lane.b32.xlu0 %v3702, 40
    %v4690 = vpop.permute.xlu0 %4689
    %4691 = vrot.lane.b32.xlu0 %v3806, 40
    %v4692 = vpop.permute.xlu0 %4691
    %4693 = vrot.lane.b32.xlu0 %v3705, 40
    %v4694 = vpop.permute.xlu0 %4693
    %4695 = vrot.lane.b32.xlu0 %v3807, 40
    %v4696 = vpop.permute.xlu0 %4695
    %4697 = vrot.lane.b32.xlu0 %v3708, 40
    %v4698 = vpop.permute.xlu0 %4697
    %4699 = vrot.lane.b32.xlu0 %v3808, 40
    %v4700 = vpop.permute.xlu0 %4699
    %4701 = vrot.lane.b32.xlu0 %v3711, 40
    %v4702 = vpop.permute.xlu0 %4701
    %4703 = vrot.lane.b32.xlu0 %v3809, 40
    %v4704 = vpop.permute.xlu0 %4703
    %4705 = vrot.lane.b32.xlu0 %v3714, 40
    %v4706 = vpop.permute.xlu0 %4705
    %4707 = vrot.lane.b32.xlu0 %v3810, 40
    %v4708 = vpop.permute.xlu0 %4707
    %4709 = vrot.lane.b32.xlu0 %v3717, 40
    %v4710 = vpop.permute.xlu0 %4709
    %4711 = vrot.lane.b32.xlu0 %v3811, 40
    %v4712 = vpop.permute.xlu0 %4711
    %4713 = vrot.lane.b32.xlu0 %v3720, 40
    %v4714 = vpop.permute.xlu0 %4713
    %4715 = vrot.lane.b32.xlu0 %v3812, 40
    %v4716 = vpop.permute.xlu0 %4715
    %4717 = vrot.lane.b32.xlu0 %v3723, 40
    %v4718 = vpop.permute.xlu0 %4717
    %4719 = vrot.lane.b32.xlu0 %v3813, 40
    %v4720 = vpop.permute.xlu0 %4719
    %4721 = vrot.lane.b32.xlu0 %v3845, 40
    %v4722 = vpop.permute.xlu0 %4721
    %4723 = vrot.lane.b32.xlu0 %v3851, 40
    %v4724 = vpop.permute.xlu0 %4723
    %4725 = vrot.lane.b32.xlu0 %v3726, 40
    %v4726 = vpop.permute.xlu0 %4725
    %4727 = vrot.lane.b32.xlu0 %v3814, 40
    %v4728 = vpop.permute.xlu0 %4727
    %4729 = vrot.lane.b32.xlu0 %v3729, 40
    %v4730 = vpop.permute.xlu0 %4729
    %4731 = vrot.lane.b32.xlu0 %v3815, 40
    %v4732 = vpop.permute.xlu0 %4731
    %4733 = vrot.lane.b32.xlu0 %v3732, 40
    %v4734 = vpop.permute.xlu0 %4733
    %4735 = vrot.lane.b32.xlu0 %v3816, 40
    %v4736 = vpop.permute.xlu0 %4735
    %4737 = vrot.lane.b32.xlu0 %v3735, 40
    %v4738 = vpop.permute.xlu0 %4737
    %4739 = vrot.lane.b32.xlu0 %v3817, 40
    %v4740 = vpop.permute.xlu0 %4739
    %4741 = vrot.lane.b32.xlu0 %v3738, 40
    %v4742 = vpop.permute.xlu0 %4741
    %4743 = vrot.lane.b32.xlu0 %v3818, 40
    %v4744 = vpop.permute.xlu0 %4743
    %4745 = vrot.lane.b32.xlu0 %v3741, 40
    %v4746 = vpop.permute.xlu0 %4745
    %4747 = vrot.lane.b32.xlu0 %v3819, 40
    %v4748 = vpop.permute.xlu0 %4747
    %4749 = vrot.lane.b32.xlu0 %v3744, 40
    %v4750 = vpop.permute.xlu0 %4749
    %4751 = vrot.lane.b32.xlu0 %v3820, 40
    %v4752 = vpop.permute.xlu0 %4751
    %4753 = vrot.lane.b32.xlu0 %v3747, 40
    %v4754 = vpop.permute.xlu0 %4753
    %4755 = vrot.lane.b32.xlu0 %v3821, 40
    %v4756 = vpop.permute.xlu0 %4755
    %4757 = vrot.lane.b32.xlu0 %v3750, 40
    %v4758 = vpop.permute.xlu0 %4757
    %4759 = vrot.lane.b32.xlu0 %v3822, 40
    %v4760 = vpop.permute.xlu0 %4759
    %4761 = vrot.lane.b32.xlu0 %v3753, 40
    %v4762 = vpop.permute.xlu0 %4761
    %4763 = vrot.lane.b32.xlu0 %v3823, 40
    %v4764 = vpop.permute.xlu0 %4763
    %4765 = vrot.lane.b32.xlu0 %v3756, 40
    %v4766 = vpop.permute.xlu0 %4765
    %4767 = vrot.lane.b32.xlu0 %v3824, 40
    %v4768 = vpop.permute.xlu0 %4767
    %4769 = vrot.lane.b32.xlu0 %v3759, 40
    %v4770 = vpop.permute.xlu0 %4769
    %4771 = vrot.lane.b32.xlu0 %v3825, 40
    %v4772 = vpop.permute.xlu0 %4771
    %4773 = vrot.lane.b32.xlu0 %v3762, 40
    %v4774 = vpop.permute.xlu0 %4773
    %4775 = vrot.lane.b32.xlu0 %v3826, 40
    %v4776 = vpop.permute.xlu0 %4775
    %4777 = vrot.lane.b32.xlu0 %v3765, 40
    %v4778 = vpop.permute.xlu0 %4777
    %4779 = vrot.lane.b32.xlu0 %v3827, 40
    %v4780 = vpop.permute.xlu0 %4779
    %4781 = vrot.lane.b32.xlu0 %v3768, 40
    %v4782 = vpop.permute.xlu0 %4781
    %4783 = vrot.lane.b32.xlu0 %v3828, 40
    %v4784 = vpop.permute.xlu0 %4783
    %4785 = vrot.lane.b32.xlu0 %v3848, 40
    %v4786 = vpop.permute.xlu0 %4785
    %4787 = vrot.lane.b32.xlu0 %v3852, 40
    %v4788 = vpop.permute.xlu0 %4787
    %4853 = vrot.lane.b32.xlu0 %v3650, 48
    %v4854 = vpop.permute.xlu0 %4853
    %4855 = vrot.lane.b32.xlu0 %v3504, 48
    %v4856 = vpop.permute.xlu0 %4855
    %4857 = vrot.lane.b32.xlu0 %v3651, 48
    %v4858 = vpop.permute.xlu0 %4857
    %4859 = vrot.lane.b32.xlu0 %v3507, 48
    %v4860 = vpop.permute.xlu0 %4859
    %4861 = vrot.lane.b32.xlu0 %v3652, 48
    %v4862 = vpop.permute.xlu0 %4861
    %4863 = vrot.lane.b32.xlu0 %v3510, 48
    %v4864 = vpop.permute.xlu0 %4863
    %4865 = vrot.lane.b32.xlu0 %v3653, 48
    %v4866 = vpop.permute.xlu0 %4865
    %4867 = vrot.lane.b32.xlu0 %v3513, 48
    %v4868 = vpop.permute.xlu0 %4867
    %4869 = vrot.lane.b32.xlu0 %v3654, 48
    %v4870 = vpop.permute.xlu0 %4869
    %4871 = vrot.lane.b32.xlu0 %v3516, 48
    %v4872 = vpop.permute.xlu0 %4871
    %4873 = vrot.lane.b32.xlu0 %v3655, 48
    %v4874 = vpop.permute.xlu0 %4873
    %4875 = vrot.lane.b32.xlu0 %v3519, 48
    %v4876 = vpop.permute.xlu0 %4875
    %4877 = vrot.lane.b32.xlu0 %v3656, 48
    %v4878 = vpop.permute.xlu0 %4877
    %4879 = vrot.lane.b32.xlu0 %v3522, 48
    %v4880 = vpop.permute.xlu0 %4879
    %4881 = vrot.lane.b32.xlu0 %v3657, 48
    %v4882 = vpop.permute.xlu0 %4881
    %4883 = vrot.lane.b32.xlu0 %v3525, 48
    %v4884 = vpop.permute.xlu0 %4883
    %4885 = vrot.lane.b32.xlu0 %v3658, 48
    %v4886 = vpop.permute.xlu0 %4885
    %4887 = vrot.lane.b32.xlu0 %v3528, 48
    %v4888 = vpop.permute.xlu0 %4887
    %4889 = vrot.lane.b32.xlu0 %v3659, 48
    %v4890 = vpop.permute.xlu0 %4889
    %4891 = vrot.lane.b32.xlu0 %v3531, 48
    %v4892 = vpop.permute.xlu0 %4891
    %4893 = vrot.lane.b32.xlu0 %v3660, 48
    %v4894 = vpop.permute.xlu0 %4893
    %4895 = vrot.lane.b32.xlu0 %v3534, 48
    %v4896 = vpop.permute.xlu0 %4895
    %4897 = vrot.lane.b32.xlu0 %v3661, 48
    %v4898 = vpop.permute.xlu0 %4897
    %4899 = vrot.lane.b32.xlu0 %v3537, 48
    %v4900 = vpop.permute.xlu0 %4899
    %4901 = vrot.lane.b32.xlu0 %v3662, 48
    %v4902 = vpop.permute.xlu0 %4901
    %4903 = vrot.lane.b32.xlu0 %v3540, 48
    %v4904 = vpop.permute.xlu0 %4903
    %4905 = vrot.lane.b32.xlu0 %v3663, 48
    %v4906 = vpop.permute.xlu0 %4905
    %4907 = vrot.lane.b32.xlu0 %v3543, 48
    %v4908 = vpop.permute.xlu0 %4907
    %4909 = vrot.lane.b32.xlu0 %v3841, 48
    %v4910 = vpop.permute.xlu0 %4909
    %4911 = vrot.lane.b32.xlu0 %v3835, 48
    %v4912 = vpop.permute.xlu0 %4911
    %4913 = vrot.lane.b32.xlu0 %v3665, 48
    %v4914 = vpop.permute.xlu0 %4913
    %4915 = vrot.lane.b32.xlu0 %v3549, 48
    %v4916 = vpop.permute.xlu0 %4915
    %4917 = vrot.lane.b32.xlu0 %v3666, 48
    %v4918 = vpop.permute.xlu0 %4917
    %4919 = vrot.lane.b32.xlu0 %v3552, 48
    %v4920 = vpop.permute.xlu0 %4919
    %4921 = vrot.lane.b32.xlu0 %v3667, 48
    %v4922 = vpop.permute.xlu0 %4921
    %4923 = vrot.lane.b32.xlu0 %v3555, 48
    %v4924 = vpop.permute.xlu0 %4923
    %4925 = vrot.lane.b32.xlu0 %v3668, 48
    %v4926 = vpop.permute.xlu0 %4925
    %4927 = vrot.lane.b32.xlu0 %v3558, 48
    %v4928 = vpop.permute.xlu0 %4927
    %4929 = vrot.lane.b32.xlu0 %v3669, 48
    %v4930 = vpop.permute.xlu0 %4929
    %4931 = vrot.lane.b32.xlu0 %v3561, 48
    %v4932 = vpop.permute.xlu0 %4931
    %4933 = vrot.lane.b32.xlu0 %v3670, 48
    %v4934 = vpop.permute.xlu0 %4933
    %4935 = vrot.lane.b32.xlu0 %v3564, 48
    %v4936 = vpop.permute.xlu0 %4935
    %4937 = vrot.lane.b32.xlu0 %v3671, 48
    %v4938 = vpop.permute.xlu0 %4937
    %4939 = vrot.lane.b32.xlu0 %v3567, 48
    %v4940 = vpop.permute.xlu0 %4939
    %4941 = vrot.lane.b32.xlu0 %v3672, 48
    %v4942 = vpop.permute.xlu0 %4941
    %4943 = vrot.lane.b32.xlu0 %v3570, 48
    %v4944 = vpop.permute.xlu0 %4943
    %4945 = vrot.lane.b32.xlu0 %v3673, 48
    %v4946 = vpop.permute.xlu0 %4945
    %4947 = vrot.lane.b32.xlu0 %v3573, 48
    %v4948 = vpop.permute.xlu0 %4947
    %4949 = vrot.lane.b32.xlu0 %v3674, 48
    %v4950 = vpop.permute.xlu0 %4949
    %4951 = vrot.lane.b32.xlu0 %v3576, 48
    %v4952 = vpop.permute.xlu0 %4951
    %4953 = vrot.lane.b32.xlu0 %v3675, 48
    %v4954 = vpop.permute.xlu0 %4953
    %4955 = vrot.lane.b32.xlu0 %v3579, 48
    %v4956 = vpop.permute.xlu0 %4955
    %4957 = vrot.lane.b32.xlu0 %v3676, 48
    %v4958 = vpop.permute.xlu0 %4957
    %4959 = vrot.lane.b32.xlu0 %v3582, 48
    %v4960 = vpop.permute.xlu0 %4959
    %4961 = vrot.lane.b32.xlu0 %v3677, 48
    %v4962 = vpop.permute.xlu0 %4961
    %4963 = vrot.lane.b32.xlu0 %v3585, 48
    %v4964 = vpop.permute.xlu0 %4963
    %4965 = vrot.lane.b32.xlu0 %v3678, 48
    %v4966 = vpop.permute.xlu0 %4965
    %4967 = vrot.lane.b32.xlu0 %v3588, 48
    %v4968 = vpop.permute.xlu0 %4967
    %4969 = vrot.lane.b32.xlu0 %v3842, 48
    %v4970 = vpop.permute.xlu0 %4969
    %4971 = vrot.lane.b32.xlu0 %v3838, 48
    %v4972 = vpop.permute.xlu0 %4971
    %5033 = vrot.lane.b32.xlu0 %v3368, 56
    %v5034 = vpop.permute.xlu0 %5033
    %5035 = vrot.lane.b32.xlu0 %v3369, 56
    %v5036 = vpop.permute.xlu0 %5035
    %5037 = vrot.lane.b32.xlu0 %v3370, 56
    %v5038 = vpop.permute.xlu0 %5037
    %5039 = vrot.lane.b32.xlu0 %v3371, 56
    %v5040 = vpop.permute.xlu0 %5039
    %5041 = vrot.lane.b32.xlu0 %v3372, 56
    %v5042 = vpop.permute.xlu0 %5041
    %5043 = vrot.lane.b32.xlu0 %v3373, 56
    %v5044 = vpop.permute.xlu0 %5043
    %5045 = vrot.lane.b32.xlu0 %v3374, 56
    %v5046 = vpop.permute.xlu0 %5045
    %5047 = vrot.lane.b32.xlu0 %v3375, 56
    %v5048 = vpop.permute.xlu0 %5047
    %5049 = vrot.lane.b32.xlu0 %v3376, 56
    %v5050 = vpop.permute.xlu0 %5049
    %5051 = vrot.lane.b32.xlu0 %v3377, 56
    %v5052 = vpop.permute.xlu0 %5051
    %5053 = vrot.lane.b32.xlu0 %v3378, 56
    %v5054 = vpop.permute.xlu0 %5053
    %5055 = vrot.lane.b32.xlu0 %v3379, 56
    %v5056 = vpop.permute.xlu0 %5055
    %5057 = vrot.lane.b32.xlu0 %v3380, 56
    %v5058 = vpop.permute.xlu0 %5057
    %5059 = vrot.lane.b32.xlu0 %v3381, 56
    %v5060 = vpop.permute.xlu0 %5059
    %5061 = vrot.lane.b32.xlu0 %v3382, 56
    %v5062 = vpop.permute.xlu0 %5061
    %5063 = vrot.lane.b32.xlu0 %v3383, 56
    %v5064 = vpop.permute.xlu0 %5063
    %5065 = vrot.lane.b32.xlu0 %v3384, 56
    %v5066 = vpop.permute.xlu0 %5065
    %5067 = vrot.lane.b32.xlu0 %v3385, 56
    %v5068 = vpop.permute.xlu0 %5067
    %5069 = vrot.lane.b32.xlu0 %v3386, 56
    %v5070 = vpop.permute.xlu0 %5069
    %5071 = vrot.lane.b32.xlu0 %v3387, 56
    %v5072 = vpop.permute.xlu0 %5071
    %5073 = vrot.lane.b32.xlu0 %v3388, 56
    %v5074 = vpop.permute.xlu0 %5073
    %5075 = vrot.lane.b32.xlu0 %v3389, 56
    %v5076 = vpop.permute.xlu0 %5075
    %5077 = vrot.lane.b32.xlu0 %v3390, 56
    %v5078 = vpop.permute.xlu0 %5077
    %5079 = vrot.lane.b32.xlu0 %v3391, 56
    %v5080 = vpop.permute.xlu0 %5079
    %5081 = vrot.lane.b32.xlu0 %v3392, 56
    %v5082 = vpop.permute.xlu0 %5081
    %5083 = vrot.lane.b32.xlu0 %v3393, 56
    %v5084 = vpop.permute.xlu0 %5083
    %5085 = vrot.lane.b32.xlu0 %v3394, 56
    %v5086 = vpop.permute.xlu0 %5085
    %5087 = vrot.lane.b32.xlu0 %v3395, 56
    %v5088 = vpop.permute.xlu0 %5087
    %5089 = vrot.lane.b32.xlu0 %v3396, 56
    %v5090 = vpop.permute.xlu0 %5089
    %5091 = vrot.lane.b32.xlu0 %v3397, 56
    %v5092 = vpop.permute.xlu0 %5091
    %5093 = vrot.lane.b32.xlu0 %v3400, 56
    %v5094 = vpop.permute.xlu0 %5093
    %5095 = vrot.lane.b32.xlu0 %v3401, 56
    %v5096 = vpop.permute.xlu0 %5095
    %5097 = vrot.lane.b32.xlu0 %v3402, 56
    %v5098 = vpop.permute.xlu0 %5097
    %5099 = vrot.lane.b32.xlu0 %v3403, 56
    %v5100 = vpop.permute.xlu0 %5099
    %5101 = vrot.lane.b32.xlu0 %v3404, 56
    %v5102 = vpop.permute.xlu0 %5101
    %5103 = vrot.lane.b32.xlu0 %v3405, 56
    %v5104 = vpop.permute.xlu0 %5103
    %5105 = vrot.lane.b32.xlu0 %v3406, 56
    %v5106 = vpop.permute.xlu0 %5105
    %5107 = vrot.lane.b32.xlu0 %v3407, 56
    %v5108 = vpop.permute.xlu0 %5107
    %5109 = vrot.lane.b32.xlu0 %v3408, 56
    %v5110 = vpop.permute.xlu0 %5109
    %5111 = vrot.lane.b32.xlu0 %v3409, 56
    %v5112 = vpop.permute.xlu0 %5111
    %5113 = vrot.lane.b32.xlu0 %v3410, 56
    %v5114 = vpop.permute.xlu0 %5113
    %5115 = vrot.lane.b32.xlu0 %v3411, 56
    %v5116 = vpop.permute.xlu0 %5115
    %5117 = vrot.lane.b32.xlu0 %v3412, 56
    %v5118 = vpop.permute.xlu0 %5117
    %5119 = vrot.lane.b32.xlu0 %v3413, 56
    %v5120 = vpop.permute.xlu0 %5119
    %5121 = vrot.lane.b32.xlu0 %v3414, 56
    %v5122 = vpop.permute.xlu0 %5121
    %5123 = vrot.lane.b32.xlu0 %v3415, 56
    %v5124 = vpop.permute.xlu0 %5123
    %5125 = vrot.lane.b32.xlu0 %v3416, 56
    %v5126 = vpop.permute.xlu0 %5125
    %5127 = vrot.lane.b32.xlu0 %v3417, 56
    %v5128 = vpop.permute.xlu0 %5127
    %5129 = vrot.lane.b32.xlu0 %v3418, 56
    %v5130 = vpop.permute.xlu0 %5129
    %5131 = vrot.lane.b32.xlu0 %v3419, 56
    %v5132 = vpop.permute.xlu0 %5131
    %5133 = vrot.lane.b32.xlu0 %v3420, 56
    %v5134 = vpop.permute.xlu0 %5133
    %5135 = vrot.lane.b32.xlu0 %v3421, 56
    %v5136 = vpop.permute.xlu0 %5135
    %5137 = vrot.lane.b32.xlu0 %v3422, 56
    %v5138 = vpop.permute.xlu0 %5137
    %5139 = vrot.lane.b32.xlu0 %v3423, 56
    %v5140 = vpop.permute.xlu0 %5139
    %5141 = vrot.lane.b32.xlu0 %v3424, 56
    %v5142 = vpop.permute.xlu0 %5141
    %5143 = vrot.lane.b32.xlu0 %v3425, 56
    %v5144 = vpop.permute.xlu0 %5143
    %5145 = vrot.lane.b32.xlu0 %v3426, 56
    %v5146 = vpop.permute.xlu0 %5145
    %5147 = vrot.lane.b32.xlu0 %v3427, 56
    %v5148 = vpop.permute.xlu0 %5147
    %5149 = vrot.lane.b32.xlu0 %v3428, 56
    %v5150 = vpop.permute.xlu0 %5149
    %5151 = vrot.lane.b32.xlu0 %v3429, 56
    %v5152 = vpop.permute.xlu0 %5151
    %5213 = vrot.lane.b32.xlu0 %v3684, 64
    %v5214 = vpop.permute.xlu0 %5213
    %5215 = vrot.lane.b32.xlu0 %v3800, 64
    %v5216 = vpop.permute.xlu0 %5215
    %5217 = vrot.lane.b32.xlu0 %v3687, 64
    %v5218 = vpop.permute.xlu0 %5217
    %5219 = vrot.lane.b32.xlu0 %v3801, 64
    %v5220 = vpop.permute.xlu0 %5219
    %5221 = vrot.lane.b32.xlu0 %v3690, 64
    %v5222 = vpop.permute.xlu0 %5221
    %5223 = vrot.lane.b32.xlu0 %v3802, 64
    %v5224 = vpop.permute.xlu0 %5223
    %5225 = vrot.lane.b32.xlu0 %v3693, 64
    %v5226 = vpop.permute.xlu0 %5225
    %5227 = vrot.lane.b32.xlu0 %v3803, 64
    %v5228 = vpop.permute.xlu0 %5227
    %5229 = vrot.lane.b32.xlu0 %v3696, 64
    %v5230 = vpop.permute.xlu0 %5229
    %5231 = vrot.lane.b32.xlu0 %v3804, 64
    %v5232 = vpop.permute.xlu0 %5231
    %5233 = vrot.lane.b32.xlu0 %v3699, 64
    %v5234 = vpop.permute.xlu0 %5233
    %5235 = vrot.lane.b32.xlu0 %v3805, 64
    %v5236 = vpop.permute.xlu0 %5235
    %5237 = vrot.lane.b32.xlu0 %v3702, 64
    %v5238 = vpop.permute.xlu0 %5237
    %5239 = vrot.lane.b32.xlu0 %v3806, 64
    %v5240 = vpop.permute.xlu0 %5239
    %5241 = vrot.lane.b32.xlu0 %v3705, 64
    %v5242 = vpop.permute.xlu0 %5241
    %5243 = vrot.lane.b32.xlu0 %v3807, 64
    %v5244 = vpop.permute.xlu0 %5243
    %5245 = vrot.lane.b32.xlu0 %v3708, 64
    %v5246 = vpop.permute.xlu0 %5245
    %5247 = vrot.lane.b32.xlu0 %v3808, 64
    %v5248 = vpop.permute.xlu0 %5247
    %5249 = vrot.lane.b32.xlu0 %v3711, 64
    %v5250 = vpop.permute.xlu0 %5249
    %5251 = vrot.lane.b32.xlu0 %v3809, 64
    %v5252 = vpop.permute.xlu0 %5251
    %5253 = vrot.lane.b32.xlu0 %v3714, 64
    %v5254 = vpop.permute.xlu0 %5253
    %5255 = vrot.lane.b32.xlu0 %v3810, 64
    %v5256 = vpop.permute.xlu0 %5255
    %5257 = vrot.lane.b32.xlu0 %v3717, 64
    %v5258 = vpop.permute.xlu0 %5257
    %5259 = vrot.lane.b32.xlu0 %v3811, 64
    %v5260 = vpop.permute.xlu0 %5259
    %5261 = vrot.lane.b32.xlu0 %v3720, 64
    %v5262 = vpop.permute.xlu0 %5261
    %5263 = vrot.lane.b32.xlu0 %v3812, 64
    %v5264 = vpop.permute.xlu0 %5263
    %5265 = vrot.lane.b32.xlu0 %v3723, 64
    %v5266 = vpop.permute.xlu0 %5265
    %5267 = vrot.lane.b32.xlu0 %v3813, 64
    %v5268 = vpop.permute.xlu0 %5267
    %5269 = vrot.lane.b32.xlu0 %v3845, 64
    %v5270 = vpop.permute.xlu0 %5269
    %5271 = vrot.lane.b32.xlu0 %v3851, 64
    %v5272 = vpop.permute.xlu0 %5271
    %5273 = vrot.lane.b32.xlu0 %v3729, 64
    %v5274 = vpop.permute.xlu0 %5273
    %5275 = vrot.lane.b32.xlu0 %v3815, 64
    %v5276 = vpop.permute.xlu0 %5275
    %5277 = vrot.lane.b32.xlu0 %v3732, 64
    %v5278 = vpop.permute.xlu0 %5277
    %5279 = vrot.lane.b32.xlu0 %v3816, 64
    %v5280 = vpop.permute.xlu0 %5279
    %5281 = vrot.lane.b32.xlu0 %v3735, 64
    %v5282 = vpop.permute.xlu0 %5281
    %5283 = vrot.lane.b32.xlu0 %v3817, 64
    %v5284 = vpop.permute.xlu0 %5283
    %5285 = vrot.lane.b32.xlu0 %v3738, 64
    %v5286 = vpop.permute.xlu0 %5285
    %5287 = vrot.lane.b32.xlu0 %v3818, 64
    %v5288 = vpop.permute.xlu0 %5287
    %5289 = vrot.lane.b32.xlu0 %v3741, 64
    %v5290 = vpop.permute.xlu0 %5289
    %5291 = vrot.lane.b32.xlu0 %v3819, 64
    %v5292 = vpop.permute.xlu0 %5291
    %5293 = vrot.lane.b32.xlu0 %v3744, 64
    %v5294 = vpop.permute.xlu0 %5293
    %5295 = vrot.lane.b32.xlu0 %v3820, 64
    %v5296 = vpop.permute.xlu0 %5295
    %5297 = vrot.lane.b32.xlu0 %v3747, 64
    %v5298 = vpop.permute.xlu0 %5297
    %5299 = vrot.lane.b32.xlu0 %v3821, 64
    %v5300 = vpop.permute.xlu0 %5299
    %5301 = vrot.lane.b32.xlu0 %v3750, 64
    %v5302 = vpop.permute.xlu0 %5301
    %5303 = vrot.lane.b32.xlu0 %v3822, 64
    %v5304 = vpop.permute.xlu0 %5303
    %5305 = vrot.lane.b32.xlu0 %v3753, 64
    %v5306 = vpop.permute.xlu0 %5305
    %5307 = vrot.lane.b32.xlu0 %v3823, 64
    %v5308 = vpop.permute.xlu0 %5307
    %5309 = vrot.lane.b32.xlu0 %v3756, 64
    %v5310 = vpop.permute.xlu0 %5309
    %5311 = vrot.lane.b32.xlu0 %v3824, 64
    %v5312 = vpop.permute.xlu0 %5311
    %5313 = vrot.lane.b32.xlu0 %v3759, 64
    %v5314 = vpop.permute.xlu0 %5313
    %5315 = vrot.lane.b32.xlu0 %v3825, 64
    %v5316 = vpop.permute.xlu0 %5315
    %5317 = vrot.lane.b32.xlu0 %v3762, 64
    %v5318 = vpop.permute.xlu0 %5317
    %5319 = vrot.lane.b32.xlu0 %v3826, 64
    %v5320 = vpop.permute.xlu0 %5319
    %5321 = vrot.lane.b32.xlu0 %v3765, 64
    %v5322 = vpop.permute.xlu0 %5321
    %5323 = vrot.lane.b32.xlu0 %v3827, 64
    %v5324 = vpop.permute.xlu0 %5323
    %5325 = vrot.lane.b32.xlu0 %v3768, 64
    %v5326 = vpop.permute.xlu0 %5325
    %5327 = vrot.lane.b32.xlu0 %v3828, 64
    %v5328 = vpop.permute.xlu0 %5327
    %5329 = vrot.lane.b32.xlu0 %v3848, 64
    %v5330 = vpop.permute.xlu0 %5329
    %5331 = vrot.lane.b32.xlu0 %v3852, 64
    %v5332 = vpop.permute.xlu0 %5331
    %v5393 = vsel %vm2092, %v3649, %v3854
    %v5394 = vsel %vm2092, %v3501, %v3856
    %v5395 = vsel %vm2092, %v3650, %v3858
    %v5396 = vsel %vm2092, %v3504, %v3860
    %v5397 = vsel %vm2092, %v3651, %v3862
    %v5398 = vsel %vm2092, %v3507, %v3864
    %v5399 = vsel %vm2092, %v3652, %v3866
    %v5400 = vsel %vm2092, %v3510, %v3868
    %v5401 = vsel %vm2092, %v3653, %v3870
    %v5402 = vsel %vm2092, %v3513, %v3872
    %v5403 = vsel %vm2092, %v3654, %v3874
    %v5404 = vsel %vm2092, %v3516, %v3876
    %v5405 = vsel %vm2092, %v3655, %v3878
    %v5406 = vsel %vm2092, %v3519, %v3880
    %v5407 = vsel %vm2092, %v3656, %v3882
    %v5408 = vsel %vm2092, %v3522, %v3884
    %v5409 = vsel %vm2092, %v3657, %v3886
    %v5410 = vsel %vm2092, %v3525, %v3888
    %v5411 = vsel %vm2092, %v3658, %v3890
    %v5412 = vsel %vm2092, %v3528, %v3892
    %v5413 = vsel %vm2092, %v3659, %v3894
    %v5414 = vsel %vm2092, %v3531, %v3896
    %v5415 = vsel %vm2092, %v3660, %v3898
    %v5416 = vsel %vm2092, %v3534, %v3900
    %v5417 = vsel %vm2092, %v3661, %v3902
    %v5418 = vsel %vm2092, %v3537, %v3904
    %v5419 = vsel %vm2092, %v3662, %v3906
    %v5420 = vsel %vm2092, %v3540, %v3908
    %v5421 = vsel %vm2092, %v3663, %v3910
    %v5422 = vsel %vm2092, %v3543, %v3912
    %v5423 = vsel %vm2092, %v3664, %v3914
    %v5424 = vsel %vm2092, %v3546, %v3916
    %v5425 = vsel %vm2092, %v3665, %v3918
    %v5426 = vsel %vm2092, %v3549, %v3920
    %v5427 = vsel %vm2092, %v3666, %v3922
    %v5428 = vsel %vm2092, %v3552, %v3924
    %v5429 = vsel %vm2092, %v3667, %v3926
    %v5430 = vsel %vm2092, %v3555, %v3928
    %v5431 = vsel %vm2092, %v3668, %v3930
    %v5432 = vsel %vm2092, %v3558, %v3932
    %v5433 = vsel %vm2092, %v3669, %v3934
    %v5434 = vsel %vm2092, %v3561, %v3936
    %v5435 = vsel %vm2092, %v3670, %v3938
    %v5436 = vsel %vm2092, %v3564, %v3940
    %v5437 = vsel %vm2092, %v3671, %v3942
    %v5438 = vsel %vm2092, %v3567, %v3944
    %v5439 = vsel %vm2092, %v3672, %v3946
    %v5440 = vsel %vm2092, %v3570, %v3948
    %v5441 = vsel %vm2092, %v3673, %v3950
    %v5442 = vsel %vm2092, %v3573, %v3952
    %v5443 = vsel %vm2092, %v3674, %v3954
    %v5444 = vsel %vm2092, %v3576, %v3956
    %v5445 = vsel %vm2092, %v3675, %v3958
    %v5446 = vsel %vm2092, %v3579, %v3960
    %v5447 = vsel %vm2092, %v3676, %v3962
    %v5448 = vsel %vm2092, %v3582, %v3964
    %v5449 = vsel %vm2092, %v3677, %v3966
    %v5450 = vsel %vm2092, %v3585, %v3968
    %v5451 = vsel %vm2092, %v3678, %v3970
    %v5452 = vsel %vm2092, %v3588, %v3972
    %v5453 = vsel %vm2155, %v5393, %v4064
    %v5454 = vsel %vm2155, %v5394, %v4066
    %v5455 = vsel %vm2155, %v5395, %v4068
    %v5456 = vsel %vm2155, %v5396, %v4070
    %v5457 = vsel %vm2155, %v5397, %v4072
    %v5458 = vsel %vm2155, %v5398, %v4074
    %v5459 = vsel %vm2155, %v5399, %v4076
    %v5460 = vsel %vm2155, %v5400, %v4078
    %v5461 = vsel %vm2155, %v5401, %v4080
    %v5462 = vsel %vm2155, %v5402, %v4082
    %v5463 = vsel %vm2155, %v5403, %v4084
    %v5464 = vsel %vm2155, %v5404, %v4086
    %v5465 = vsel %vm2155, %v5405, %v4088
    %v5466 = vsel %vm2155, %v5406, %v4090
    %v5467 = vsel %vm2155, %v5407, %v4092
    %v5468 = vsel %vm2155, %v5408, %v4094
    %v5469 = vsel %vm2155, %v5409, %v4096
    %v5470 = vsel %vm2155, %v5410, %v4098
    %v5471 = vsel %vm2155, %v5411, %v4100
    %v5472 = vsel %vm2155, %v5412, %v4102
    %v5473 = vsel %vm2155, %v5413, %v4104
    %v5474 = vsel %vm2155, %v5414, %v4106
    %v5475 = vsel %vm2155, %v5415, %v4108
    %v5476 = vsel %vm2155, %v5416, %v4110
    %v5477 = vsel %vm2155, %v5417, %v4112
    %v5478 = vsel %vm2155, %v5418, %v4114
    %v5479 = vsel %vm2155, %v5419, %v4116
    %v5480 = vsel %vm2155, %v5420, %v4118
    %v5481 = vsel %vm2155, %v5421, %v4120
    %v5482 = vsel %vm2155, %v5422, %v4122
    %v5483 = vsel %vm2155, %v5423, %v4124
    %v5484 = vsel %vm2155, %v5424, %v4126
    %v5485 = vsel %vm2155, %v5425, %v4128
    %v5486 = vsel %vm2155, %v5426, %v4130
    %v5487 = vsel %vm2155, %v5427, %v4132
    %v5488 = vsel %vm2155, %v5428, %v4134
    %v5489 = vsel %vm2155, %v5429, %v4136
    %v5490 = vsel %vm2155, %v5430, %v4138
    %v5491 = vsel %vm2155, %v5431, %v4140
    %v5492 = vsel %vm2155, %v5432, %v4142
    %v5493 = vsel %vm2155, %v5433, %v4144
    %v5494 = vsel %vm2155, %v5434, %v4146
    %v5495 = vsel %vm2155, %v5435, %v4148
    %v5496 = vsel %vm2155, %v5436, %v4150
    %v5497 = vsel %vm2155, %v5437, %v4152
    %v5498 = vsel %vm2155, %v5438, %v4154
    %v5499 = vsel %vm2155, %v5439, %v4156
    %v5500 = vsel %vm2155, %v5440, %v4158
    %v5501 = vsel %vm2155, %v5441, %v4160
    %v5502 = vsel %vm2155, %v5442, %v4162
    %v5503 = vsel %vm2155, %v5443, %v4164
    %v5504 = vsel %vm2155, %v5444, %v4166
    %v5505 = vsel %vm2155, %v5445, %v4168
    %v5506 = vsel %vm2155, %v5446, %v4170
    %v5507 = vsel %vm2155, %v5447, %v4172
    %v5508 = vsel %vm2155, %v5448, %v4174
    %v5509 = vsel %vm2155, %v5449, %v4176
    %v5510 = vsel %vm2155, %v5450, %v4178
    %v5511 = vsel %vm2155, %v5451, %v4180
    %v5512 = vsel %vm2155, %v5452, %v4182
    %v5513 = vsel %vm2218, %v2156, %v4276
    %v5514 = vsel %vm2218, %v2157, %v4278
    %v5515 = vsel %vm2218, %v5453, %v4280
    %v5516 = vsel %vm2218, %v5454, %v4282
    %v5517 = vsel %vm2218, %v5455, %v4284
    %v5518 = vsel %vm2218, %v5456, %v4286
    %v5519 = vsel %vm2218, %v5457, %v4288
    %v5520 = vsel %vm2218, %v5458, %v4290
    %v5521 = vsel %vm2218, %v5459, %v4292
    %v5522 = vsel %vm2218, %v5460, %v4294
    %v5523 = vsel %vm2218, %v5461, %v4296
    %v5524 = vsel %vm2218, %v5462, %v4298
    %v5525 = vsel %vm2218, %v5463, %v4300
    %v5526 = vsel %vm2218, %v5464, %v4302
    %v5527 = vsel %vm2218, %v5465, %v4304
    %v5528 = vsel %vm2218, %v5466, %v4306
    %v5529 = vsel %vm2218, %v5467, %v4308
    %v5530 = vsel %vm2218, %v5468, %v4310
    %v5531 = vsel %vm2218, %v5469, %v4312
    %v5532 = vsel %vm2218, %v5470, %v4314
    %v5533 = vsel %vm2218, %v5471, %v4316
    %v5534 = vsel %vm2218, %v5472, %v4318
    %v5535 = vsel %vm2218, %v5473, %v4320
    %v5536 = vsel %vm2218, %v5474, %v4322
    %v5537 = vsel %vm2218, %v5475, %v4324
    %v5538 = vsel %vm2218, %v5476, %v4326
    %v5539 = vsel %vm2218, %v5477, %v4328
    %v5540 = vsel %vm2218, %v5478, %v4330
    %v5541 = vsel %vm2218, %v5479, %v4332
    %v5542 = vsel %vm2218, %v5480, %v4334
    %v5543 = vsel %vm2218, %v5481, %v4336
    %v5544 = vsel %vm2218, %v5482, %v4338
    %v5545 = vsel %vm2218, %v2156, %v4340
    %v5546 = vsel %vm2218, %v2157, %v4342
    %v5547 = vsel %vm2218, %v5483, %v4344
    %v5548 = vsel %vm2218, %v5484, %v4346
    %v5549 = vsel %vm2218, %v5485, %v4348
    %v5550 = vsel %vm2218, %v5486, %v4350
    %v5551 = vsel %vm2218, %v5487, %v4352
    %v5552 = vsel %vm2218, %v5488, %v4354
    %v5553 = vsel %vm2218, %v5489, %v4356
    %v5554 = vsel %vm2218, %v5490, %v4358
    %v5555 = vsel %vm2218, %v5491, %v4360
    %v5556 = vsel %vm2218, %v5492, %v4362
    %v5557 = vsel %vm2218, %v5493, %v4364
    %v5558 = vsel %vm2218, %v5494, %v4366
    %v5559 = vsel %vm2218, %v5495, %v4368
    %v5560 = vsel %vm2218, %v5496, %v4370
    %v5561 = vsel %vm2218, %v5497, %v4372
    %v5562 = vsel %vm2218, %v5498, %v4374
    %v5563 = vsel %vm2218, %v5499, %v4376
    %v5564 = vsel %vm2218, %v5500, %v4378
    %v5565 = vsel %vm2218, %v5501, %v4380
    %v5566 = vsel %vm2218, %v5502, %v4382
    %v5567 = vsel %vm2218, %v5503, %v4384
    %v5568 = vsel %vm2218, %v5504, %v4386
    %v5569 = vsel %vm2218, %v5505, %v4388
    %v5570 = vsel %vm2218, %v5506, %v4390
    %v5571 = vsel %vm2218, %v5507, %v4392
    %v5572 = vsel %vm2218, %v5508, %v4394
    %v5573 = vsel %vm2218, %v5509, %v4396
    %v5574 = vsel %vm2218, %v5510, %v4398
    %v5575 = vsel %vm2218, %v5511, %v4400
    %v5576 = vsel %vm2218, %v5512, %v4402
    %v5577 = vsel %vm2283, %v5513, %v4468
    %v5578 = vsel %vm2283, %v5514, %v4470
    %v5579 = vsel %vm2283, %v5515, %v4472
    %v5580 = vsel %vm2283, %v5516, %v4474
    %v5581 = vsel %vm2283, %v5517, %v4476
    %v5582 = vsel %vm2283, %v5518, %v4478
    %v5583 = vsel %vm2283, %v5519, %v4480
    %v5584 = vsel %vm2283, %v5520, %v4482
    %v5585 = vsel %vm2283, %v5521, %v4484
    %v5586 = vsel %vm2283, %v5522, %v4486
    %v5587 = vsel %vm2283, %v5523, %v4488
    %v5588 = vsel %vm2283, %v5524, %v4490
    %v5589 = vsel %vm2283, %v5525, %v4492
    %v5590 = vsel %vm2283, %v5526, %v4494
    %v5591 = vsel %vm2283, %v5527, %v4496
    %v5592 = vsel %vm2283, %v5528, %v4498
    %v5593 = vsel %vm2283, %v5529, %v4500
    %v5594 = vsel %vm2283, %v5530, %v4502
    %v5595 = vsel %vm2283, %v5531, %v4504
    %v5596 = vsel %vm2283, %v5532, %v4506
    %v5597 = vsel %vm2283, %v5533, %v4508
    %v5598 = vsel %vm2283, %v5534, %v4510
    %v5599 = vsel %vm2283, %v5535, %v4512
    %v5600 = vsel %vm2283, %v5536, %v4514
    %v5601 = vsel %vm2283, %v5537, %v4516
    %v5602 = vsel %vm2283, %v5538, %v4518
    %v5603 = vsel %vm2283, %v5539, %v4520
    %v5604 = vsel %vm2283, %v5540, %v4522
    %v5605 = vsel %vm2283, %v5541, %v4524
    %v5606 = vsel %vm2283, %v5542, %v4526
    %v5607 = vsel %vm2283, %v5543, %v4528
    %v5608 = vsel %vm2283, %v5544, %v4530
    %v5609 = vsel %vm2283, %v5545, %v4532
    %v5610 = vsel %vm2283, %v5546, %v4534
    %v5611 = vsel %vm2283, %v5547, %v4536
    %v5612 = vsel %vm2283, %v5548, %v4538
    %v5613 = vsel %vm2283, %v5549, %v4540
    %v5614 = vsel %vm2283, %v5550, %v4542
    %v5615 = vsel %vm2283, %v5551, %v4544
    %v5616 = vsel %vm2283, %v5552, %v4546
    %v5617 = vsel %vm2283, %v5553, %v4548
    %v5618 = vsel %vm2283, %v5554, %v4550
    %v5619 = vsel %vm2283, %v5555, %v4552
    %v5620 = vsel %vm2283, %v5556, %v4554
    %v5621 = vsel %vm2283, %v5557, %v4556
    %v5622 = vsel %vm2283, %v5558, %v4558
    %v5623 = vsel %vm2283, %v5559, %v4560
    %v5624 = vsel %vm2283, %v5560, %v4562
    %v5625 = vsel %vm2283, %v5561, %v4564
    %v5626 = vsel %vm2283, %v5562, %v4566
    %v5627 = vsel %vm2283, %v5563, %v4568
    %v5628 = vsel %vm2283, %v5564, %v4570
    %v5629 = vsel %vm2283, %v5565, %v4572
    %v5630 = vsel %vm2283, %v5566, %v4574
    %v5631 = vsel %vm2283, %v5567, %v4576
    %v5632 = vsel %vm2283, %v5568, %v4578
    %v5633 = vsel %vm2283, %v5569, %v4580
    %v5634 = vsel %vm2283, %v5570, %v4582
    %v5635 = vsel %vm2283, %v5571, %v4584
    %v5636 = vsel %vm2283, %v5572, %v4586
    %v5637 = vsel %vm2283, %v5573, %v4588
    %v5638 = vsel %vm2283, %v5574, %v4590
    %v5639 = vsel %vm2283, %v5575, %v4592
    %v5640 = vsel %vm2283, %v5576, %v4594
    %v5641 = vsel %vm2348, %v5577, %v4662
    %v5642 = vsel %vm2348, %v5578, %v4664
    %v5643 = vsel %vm2348, %v5579, %v4666
    %v5644 = vsel %vm2348, %v5580, %v4668
    %v5645 = vsel %vm2348, %v5581, %v4670
    %v5646 = vsel %vm2348, %v5582, %v4672
    %v5647 = vsel %vm2348, %v5583, %v4674
    %v5648 = vsel %vm2348, %v5584, %v4676
    %v5649 = vsel %vm2348, %v5585, %v4678
    %v5650 = vsel %vm2348, %v5586, %v4680
    %v5651 = vsel %vm2348, %v5587, %v4682
    %v5652 = vsel %vm2348, %v5588, %v4684
    %v5653 = vsel %vm2348, %v5589, %v4686
    %v5654 = vsel %vm2348, %v5590, %v4688
    %v5655 = vsel %vm2348, %v5591, %v4690
    %v5656 = vsel %vm2348, %v5592, %v4692
    %v5657 = vsel %vm2348, %v5593, %v4694
    %v5658 = vsel %vm2348, %v5594, %v4696
    %v5659 = vsel %vm2348, %v5595, %v4698
    %v5660 = vsel %vm2348, %v5596, %v4700
    %v5661 = vsel %vm2348, %v5597, %v4702
    %v5662 = vsel %vm2348, %v5598, %v4704
    %v5663 = vsel %vm2348, %v5599, %v4706
    %v5664 = vsel %vm2348, %v5600, %v4708
    %v5665 = vsel %vm2348, %v5601, %v4710
    %v5666 = vsel %vm2348, %v5602, %v4712
    %v5667 = vsel %vm2348, %v5603, %v4714
    %v5668 = vsel %vm2348, %v5604, %v4716
    %v5669 = vsel %vm2348, %v5605, %v4718
    %v5670 = vsel %vm2348, %v5606, %v4720
    %v5671 = vsel %vm2348, %v5607, %v4722
    %v5672 = vsel %vm2348, %v5608, %v4724
    %v5673 = vsel %vm2348, %v5609, %v4726
    %v5674 = vsel %vm2348, %v5610, %v4728
    %v5675 = vsel %vm2348, %v5611, %v4730
    %v5676 = vsel %vm2348, %v5612, %v4732
    %v5677 = vsel %vm2348, %v5613, %v4734
    %v5678 = vsel %vm2348, %v5614, %v4736
    %v5679 = vsel %vm2348, %v5615, %v4738
    %v5680 = vsel %vm2348, %v5616, %v4740
    %v5681 = vsel %vm2348, %v5617, %v4742
    %v5682 = vsel %vm2348, %v5618, %v4744
    %v5683 = vsel %vm2348, %v5619, %v4746
    %v5684 = vsel %vm2348, %v5620, %v4748
    %v5685 = vsel %vm2348, %v5621, %v4750
    %v5686 = vsel %vm2348, %v5622, %v4752
    %v5687 = vsel %vm2348, %v5623, %v4754
    %v5688 = vsel %vm2348, %v5624, %v4756
    %v5689 = vsel %vm2348, %v5625, %v4758
    %v5690 = vsel %vm2348, %v5626, %v4760
    %v5691 = vsel %vm2348, %v5627, %v4762
    %v5692 = vsel %vm2348, %v5628, %v4764
    %v5693 = vsel %vm2348, %v5629, %v4766
    %v5694 = vsel %vm2348, %v5630, %v4768
    %v5695 = vsel %vm2348, %v5631, %v4770
    %v5696 = vsel %vm2348, %v5632, %v4772
    %v5697 = vsel %vm2348, %v5633, %v4774
    %v5698 = vsel %vm2348, %v5634, %v4776
    %v5699 = vsel %vm2348, %v5635, %v4778
    %v5700 = vsel %vm2348, %v5636, %v4780
    %v5701 = vsel %vm2348, %v5637, %v4782
    %v5702 = vsel %vm2348, %v5638, %v4784
    %v5703 = vsel %vm2348, %v5639, %v4786
    %v5704 = vsel %vm2348, %v5640, %v4788
    %v5705 = vsel %vm2413, %v5641, %v4854
    %v5706 = vsel %vm2413, %v5642, %v4856
    %v5707 = vsel %vm2413, %v5643, %v4858
    %v5708 = vsel %vm2413, %v5644, %v4860
    %v5709 = vsel %vm2413, %v5645, %v4862
    %v5710 = vsel %vm2413, %v5646, %v4864
    %v5711 = vsel %vm2413, %v5647, %v4866
    %v5712 = vsel %vm2413, %v5648, %v4868
    %v5713 = vsel %vm2413, %v5649, %v4870
    %v5714 = vsel %vm2413, %v5650, %v4872
    %v5715 = vsel %vm2413, %v5651, %v4874
    %v5716 = vsel %vm2413, %v5652, %v4876
    %v5717 = vsel %vm2413, %v5653, %v4878
    %v5718 = vsel %vm2413, %v5654, %v4880
    %v5719 = vsel %vm2413, %v5655, %v4882
    %v5720 = vsel %vm2413, %v5656, %v4884
    %v5721 = vsel %vm2413, %v5657, %v4886
    %v5722 = vsel %vm2413, %v5658, %v4888
    %v5723 = vsel %vm2413, %v5659, %v4890
    %v5724 = vsel %vm2413, %v5660, %v4892
    %v5725 = vsel %vm2413, %v5661, %v4894
    %v5726 = vsel %vm2413, %v5662, %v4896
    %v5727 = vsel %vm2413, %v5663, %v4898
    %v5728 = vsel %vm2413, %v5664, %v4900
    %v5729 = vsel %vm2413, %v5665, %v4902
    %v5730 = vsel %vm2413, %v5666, %v4904
    %v5731 = vsel %vm2413, %v5667, %v4906
    %v5732 = vsel %vm2413, %v5668, %v4908
    %v5733 = vsel %vm2413, %v5669, %v4910
    %v5734 = vsel %vm2413, %v5670, %v4912
    %v5735 = vsel %vm2413, %v5671, %v1598
    %v5736 = vsel %vm2413, %v5672, %v1600
    %v5737 = vsel %vm2413, %v5673, %v4914
    %v5738 = vsel %vm2413, %v5674, %v4916
    %v5739 = vsel %vm2413, %v5675, %v4918
    %v5740 = vsel %vm2413, %v5676, %v4920
    %v5741 = vsel %vm2413, %v5677, %v4922
    %v5742 = vsel %vm2413, %v5678, %v4924
    %v5743 = vsel %vm2413, %v5679, %v4926
    %v5744 = vsel %vm2413, %v5680, %v4928
    %v5745 = vsel %vm2413, %v5681, %v4930
    %v5746 = vsel %vm2413, %v5682, %v4932
    %v5747 = vsel %vm2413, %v5683, %v4934
    %v5748 = vsel %vm2413, %v5684, %v4936
    %v5749 = vsel %vm2413, %v5685, %v4938
    %v5750 = vsel %vm2413, %v5686, %v4940
    %v5751 = vsel %vm2413, %v5687, %v4942
    %v5752 = vsel %vm2413, %v5688, %v4944
    %v5753 = vsel %vm2413, %v5689, %v4946
    %v5754 = vsel %vm2413, %v5690, %v4948
    %v5755 = vsel %vm2413, %v5691, %v4950
    %v5756 = vsel %vm2413, %v5692, %v4952
    %v5757 = vsel %vm2413, %v5693, %v4954
    %v5758 = vsel %vm2413, %v5694, %v4956
    %v5759 = vsel %vm2413, %v5695, %v4958
    %v5760 = vsel %vm2413, %v5696, %v4960
    %v5761 = vsel %vm2413, %v5697, %v4962
    %v5762 = vsel %vm2413, %v5698, %v4964
    %v5763 = vsel %vm2413, %v5699, %v4966
    %v5764 = vsel %vm2413, %v5700, %v4968
    %v5765 = vsel %vm2413, %v5701, %v4970
    %v5766 = vsel %vm2413, %v5702, %v4972
    %v5767 = vsel %vm2413, %v5703, %v1598
    %v5768 = vsel %vm2413, %v5704, %v1600
    %v5769 = vsel %vm2478, %v5705, %v5034
    %v5770 = vsel %vm2478, %v5706, %v5036
    %v5771 = vsel %vm2478, %v5707, %v5038
    %v5772 = vsel %vm2478, %v5708, %v5040
    %v5773 = vsel %vm2478, %v5709, %v5042
    %v5774 = vsel %vm2478, %v5710, %v5044
    %v5775 = vsel %vm2478, %v5711, %v5046
    %v5776 = vsel %vm2478, %v5712, %v5048
    %v5777 = vsel %vm2478, %v5713, %v5050
    %v5778 = vsel %vm2478, %v5714, %v5052
    %v5779 = vsel %vm2478, %v5715, %v5054
    %v5780 = vsel %vm2478, %v5716, %v5056
    %v5781 = vsel %vm2478, %v5717, %v5058
    %v5782 = vsel %vm2478, %v5718, %v5060
    %v5783 = vsel %vm2478, %v5719, %v5062
    %v5784 = vsel %vm2478, %v5720, %v5064
    %v5785 = vsel %vm2478, %v5721, %v5066
    %v5786 = vsel %vm2478, %v5722, %v5068
    %v5787 = vsel %vm2478, %v5723, %v5070
    %v5788 = vsel %vm2478, %v5724, %v5072
    %v5789 = vsel %vm2478, %v5725, %v5074
    %v5790 = vsel %vm2478, %v5726, %v5076
    %v5791 = vsel %vm2478, %v5727, %v5078
    %v5792 = vsel %vm2478, %v5728, %v5080
    %v5793 = vsel %vm2478, %v5729, %v5082
    %v5794 = vsel %vm2478, %v5730, %v5084
    %v5795 = vsel %vm2478, %v5731, %v5086
    %v5796 = vsel %vm2478, %v5732, %v5088
    %v5797 = vsel %vm2478, %v5733, %v5090
    %v5798 = vsel %vm2478, %v5734, %v5092
    %v5799 = vsel %vm2478, %v5735, %v1784
    %v5800 = vsel %vm2478, %v5736, %v1784
    %v5801 = vsel %vm2478, %v5737, %v5094
    %v5802 = vsel %vm2478, %v5738, %v5096
    %v5803 = vsel %vm2478, %v5739, %v5098
    %v5804 = vsel %vm2478, %v5740, %v5100
    %v5805 = vsel %vm2478, %v5741, %v5102
    %v5806 = vsel %vm2478, %v5742, %v5104
    %v5807 = vsel %vm2478, %v5743, %v5106
    %v5808 = vsel %vm2478, %v5744, %v5108
    %v5809 = vsel %vm2478, %v5745, %v5110
    %v5810 = vsel %vm2478, %v5746, %v5112
    %v5811 = vsel %vm2478, %v5747, %v5114
    %v5812 = vsel %vm2478, %v5748, %v5116
    %v5813 = vsel %vm2478, %v5749, %v5118
    %v5814 = vsel %vm2478, %v5750, %v5120
    %v5815 = vsel %vm2478, %v5751, %v5122
    %v5816 = vsel %vm2478, %v5752, %v5124
    %v5817 = vsel %vm2478, %v5753, %v5126
    %v5818 = vsel %vm2478, %v5754, %v5128
    %v5819 = vsel %vm2478, %v5755, %v5130
    %v5820 = vsel %vm2478, %v5756, %v5132
    %v5821 = vsel %vm2478, %v5757, %v5134
    %v5822 = vsel %vm2478, %v5758, %v5136
    %v5823 = vsel %vm2478, %v5759, %v5138
    %v5824 = vsel %vm2478, %v5760, %v5140
    %v5825 = vsel %vm2478, %v5761, %v5142
    %v5826 = vsel %vm2478, %v5762, %v5144
    %v5827 = vsel %vm2478, %v5763, %v5146
    %v5828 = vsel %vm2478, %v5764, %v5148
    %v5829 = vsel %vm2478, %v5765, %v5150
    %v5830 = vsel %vm2478, %v5766, %v5152
    %v5831 = vsel %vm2478, %v5767, %v1784
    %v5832 = vsel %vm2478, %v5768, %v1784
    %v5833 = vsel %vm2543, %v5769, %v5214
    %v5834 = vsel %vm2543, %v5770, %v5216
    %v5835 = vsel %vm2543, %v5771, %v5218
    %v5836 = vsel %vm2543, %v5772, %v5220
    %v5837 = vsel %vm2543, %v5773, %v5222
    %v5838 = vsel %vm2543, %v5774, %v5224
    %v5839 = vsel %vm2543, %v5775, %v5226
    %v5840 = vsel %vm2543, %v5776, %v5228
    %v5841 = vsel %vm2543, %v5777, %v5230
    %v5842 = vsel %vm2543, %v5778, %v5232
    %v5843 = vsel %vm2543, %v5779, %v5234
    %v5844 = vsel %vm2543, %v5780, %v5236
    %v5845 = vsel %vm2543, %v5781, %v5238
    %v5846 = vsel %vm2543, %v5782, %v5240
    %v5847 = vsel %vm2543, %v5783, %v5242
    %v5848 = vsel %vm2543, %v5784, %v5244
    %v5849 = vsel %vm2543, %v5785, %v5246
    %v5850 = vsel %vm2543, %v5786, %v5248
    %v5851 = vsel %vm2543, %v5787, %v5250
    %v5852 = vsel %vm2543, %v5788, %v5252
    %v5853 = vsel %vm2543, %v5789, %v5254
    %v5854 = vsel %vm2543, %v5790, %v5256
    %v5855 = vsel %vm2543, %v5791, %v5258
    %v5856 = vsel %vm2543, %v5792, %v5260
    %v5857 = vsel %vm2543, %v5793, %v5262
    %v5858 = vsel %vm2543, %v5794, %v5264
    %v5859 = vsel %vm2543, %v5795, %v5266
    %v5860 = vsel %vm2543, %v5796, %v5268
    %v5861 = vsel %vm2543, %v5797, %v5270
    %v5862 = vsel %vm2543, %v5798, %v5272
    %v5863 = vsel %vm2543, %v5799, %v1967
    %v5864 = vsel %vm2543, %v5800, %v1969
    %v5865 = vsel %vm2543, %v5801, %v5274
    %v5866 = vsel %vm2543, %v5802, %v5276
    %v5867 = vsel %vm2543, %v5803, %v5278
    %v5868 = vsel %vm2543, %v5804, %v5280
    %v5869 = vsel %vm2543, %v5805, %v5282
    %v5870 = vsel %vm2543, %v5806, %v5284
    %v5871 = vsel %vm2543, %v5807, %v5286
    %v5872 = vsel %vm2543, %v5808, %v5288
    %v5873 = vsel %vm2543, %v5809, %v5290
    %v5874 = vsel %vm2543, %v5810, %v5292
    %v5875 = vsel %vm2543, %v5811, %v5294
    %v5876 = vsel %vm2543, %v5812, %v5296
    %v5877 = vsel %vm2543, %v5813, %v5298
    %v5878 = vsel %vm2543, %v5814, %v5300
    %v5879 = vsel %vm2543, %v5815, %v5302
    %v5880 = vsel %vm2543, %v5816, %v5304
    %v5881 = vsel %vm2543, %v5817, %v5306
    %v5882 = vsel %vm2543, %v5818, %v5308
    %v5883 = vsel %vm2543, %v5819, %v5310
    %v5884 = vsel %vm2543, %v5820, %v5312
    %v5885 = vsel %vm2543, %v5821, %v5314
    %v5886 = vsel %vm2543, %v5822, %v5316
    %v5887 = vsel %vm2543, %v5823, %v5318
    %v5888 = vsel %vm2543, %v5824, %v5320
    %v5889 = vsel %vm2543, %v5825, %v5322
    %v5890 = vsel %vm2543, %v5826, %v5324
    %v5891 = vsel %vm2543, %v5827, %v5326
    %v5892 = vsel %vm2543, %v5828, %v5328
    %v5893 = vsel %vm2543, %v5829, %v5330
    %v5894 = vsel %vm2543, %v5830, %v5332
    %v5895 = vsel %vm2543, %v5831, %v1967
    %v5896 = vsel %vm2543, %v5832, %v1969
    %v5898 = vsel %vm2608, %v5833, 0
    %v5901 = vsel %vm2608, %v5834, 0
    %v5904 = vsel %vm2608, %v5835, 0
    %v5907 = vsel %vm2608, %v5836, 0
    %v5910 = vsel %vm2608, %v5837, 0
    %v5913 = vsel %vm2608, %v5838, 0
    %v5916 = vsel %vm2608, %v5839, 0
    %v5919 = vsel %vm2608, %v5840, 0
    %v5922 = vsel %vm2608, %v5841, 0
    %v5925 = vsel %vm2608, %v5842, 0
    %v5928 = vsel %vm2608, %v5843, 0
    %v5931 = vsel %vm2608, %v5844, 0
    %v5934 = vsel %vm2608, %v5845, 0
    %v5937 = vsel %vm2608, %v5846, 0
    %v5940 = vsel %vm2608, %v5847, 0
    %v5943 = vsel %vm2608, %v5848, 0
    %v5946 = vsel %vm2608, %v5849, 0
    %v5949 = vsel %vm2608, %v5850, 0
    %v5952 = vsel %vm2608, %v5851, 0
    %v5955 = vsel %vm2608, %v5852, 0
    %v5958 = vsel %vm2608, %v5853, 0
    %v5961 = vsel %vm2608, %v5854, 0
    %v5964 = vsel %vm2608, %v5855, 0
    %v5967 = vsel %vm2608, %v5856, 0
    %v5970 = vsel %vm2608, %v5857, 0
    %v5973 = vsel %vm2608, %v5858, 0
    %v5976 = vsel %vm2608, %v5859, 0
    %v5979 = vsel %vm2608, %v5860, 0
    %v5982 = vsel %vm2608, %v5861, 0
    %v5985 = vsel %vm2608, %v5862, 0
    %v5988 = vsel %vm2608, %v5863, 0
    %v5991 = vsel %vm2608, %v5864, 0
    %v5994 = vsel %vm2608, %v5865, 0
    %v5997 = vsel %vm2608, %v5866, 0
    %v6000 = vsel %vm2608, %v5867, 0
    %v6003 = vsel %vm2608, %v5868, 0
    %v6006 = vsel %vm2608, %v5869, 0
    %v6009 = vsel %vm2608, %v5870, 0
    %v6012 = vsel %vm2608, %v5871, 0
    %v6015 = vsel %vm2608, %v5872, 0
    %v6018 = vsel %vm2608, %v5873, 0
    %v6021 = vsel %vm2608, %v5874, 0
    %v6024 = vsel %vm2608, %v5875, 0
    %v6027 = vsel %vm2608, %v5876, 0
    %v6030 = vsel %vm2608, %v5877, 0
    %v6033 = vsel %vm2608, %v5878, 0
    %v6036 = vsel %vm2608, %v5879, 0
    %v6039 = vsel %vm2608, %v5880, 0
    %v6042 = vsel %vm2608, %v5881, 0
    %v6045 = vsel %vm2608, %v5882, 0
    %v6048 = vsel %vm2608, %v5883, 0
    %v6051 = vsel %vm2608, %v5884, 0
    %v6054 = vsel %vm2608, %v5885, 0
    %v6057 = vsel %vm2608, %v5886, 0
    %v6060 = vsel %vm2608, %v5887, 0
    %v6063 = vsel %vm2608, %v5888, 0
    %v6066 = vsel %vm2608, %v5889, 0
    %v6069 = vsel %vm2608, %v5890, 0
    %v6072 = vsel %vm2608, %v5891, 0
    %v6075 = vsel %vm2608, %v5892, 0
    %v6078 = vsel %vm2608, %v5893, 0
    %v6081 = vsel %vm2608, %v5894, 0
    %v6084 = vsel %vm2608, %v5895, 0
    %v6087 = vsel %vm2608, %v5896, 0
    %6089 = vmatpush.msra.mxu0 0.0
    %6090 = vmatpush.msra.mxu0 0.0
    %6091 = vmatpush.msra.mxu0 0.0
    %6092 = vmatpush.msra.mxu0 0.0
    %6093 = vmatpush.msra.mxu0 0.0
    %6094 = vmatpush.msra.mxu0 0.0
    %6095 = vmatpush.msra.mxu0 0.0
    %6096 = vmatpush.msra.mxu0 %v3438
    %6097 = vmatpush.msra.mxu0 %v3437
    %6098 = vmatpush.msra.mxu0 %v3436
    %6099 = vmatpush.msra.mxu0 %v3435
    %6100 = vmatpush.msra.mxu0 %v3434
    %6101 = vmatpush.msra.mxu0 %v3433
    %6102 = vmatpush.msra.mxu0 %v3432
    %6103 = vmatpush.msra.mxu0 %v3431
    %6104 = vmatpush.msra.mxu0 %v3430
    %6105 = vmatmul.f32.gmra.mxu0 %v5898
    %v6106 = vpop.f32.mrf.mxu0
    %v6107 = vadd.f32 0.0, %v6106
    %6108 = vmatmul.f32.gmra.mxu0 %v5901
    %v6109 = vpop.f32.mrf.mxu0
    %v6110 = vadd.f32 0.0, %v6109
    %6111 = vmatmul.f32.gmra.mxu0 %v5904
    %v6112 = vpop.f32.mrf.mxu0
    %v6113 = vadd.f32 0.0, %v6112
    %6114 = vmatmul.f32.gmra.mxu0 %v5907
    %v6115 = vpop.f32.mrf.mxu0
    %v6116 = vadd.f32 0.0, %v6115
    %6117 = vmatmul.f32.gmra.mxu0 %v5910
    %v6118 = vpop.f32.mrf.mxu0
    %v6119 = vadd.f32 0.0, %v6118
    %6120 = vmatmul.f32.gmra.mxu0 %v5913
    %v6121 = vpop.f32.mrf.mxu0
    %v6122 = vadd.f32 0.0, %v6121
    %6123 = vmatmul.f32.gmra.mxu0 %v5916
    %v6124 = vpop.f32.mrf.mxu0
    %v6125 = vadd.f32 0.0, %v6124
    %6126 = vmatmul.f32.gmra.mxu0 %v5919
    %v6127 = vpop.f32.mrf.mxu0
    %v6128 = vadd.f32 0.0, %v6127
    %6129 = vmatmul.f32.gmra.mxu0 %v5922
    %v6130 = vpop.f32.mrf.mxu0
    %v6131 = vadd.f32 0.0, %v6130
    %6132 = vmatmul.f32.gmra.mxu0 %v5925
    %v6133 = vpop.f32.mrf.mxu0
    %v6134 = vadd.f32 0.0, %v6133
    %6135 = vmatmul.f32.gmra.mxu0 %v5928
    %v6136 = vpop.f32.mrf.mxu0
    %v6137 = vadd.f32 0.0, %v6136
    %6138 = vmatmul.f32.gmra.mxu0 %v5931
    %v6139 = vpop.f32.mrf.mxu0
    %v6140 = vadd.f32 0.0, %v6139
    %6141 = vmatmul.f32.gmra.mxu0 %v5934
    %v6142 = vpop.f32.mrf.mxu0
    %v6143 = vadd.f32 0.0, %v6142
    %6144 = vmatmul.f32.gmra.mxu0 %v5937
    %v6145 = vpop.f32.mrf.mxu0
    %v6146 = vadd.f32 0.0, %v6145
    %6147 = vmatmul.f32.gmra.mxu0 %v5940
    %v6148 = vpop.f32.mrf.mxu0
    %v6149 = vadd.f32 0.0, %v6148
    %6150 = vmatmul.f32.gmra.mxu0 %v5943
    %v6151 = vpop.f32.mrf.mxu0
    %v6152 = vadd.f32 0.0, %v6151
    %6153 = vmatmul.f32.gmra.mxu0 %v5946
    %v6154 = vpop.f32.mrf.mxu0
    %v6155 = vadd.f32 0.0, %v6154
    %6156 = vmatmul.f32.gmra.mxu0 %v5949
    %v6157 = vpop.f32.mrf.mxu0
    %v6158 = vadd.f32 0.0, %v6157
    %6159 = vmatmul.f32.gmra.mxu0 %v5952
    %v6160 = vpop.f32.mrf.mxu0
    %v6161 = vadd.f32 0.0, %v6160
    %6162 = vmatmul.f32.gmra.mxu0 %v5955
    %v6163 = vpop.f32.mrf.mxu0
    %v6164 = vadd.f32 0.0, %v6163
    %6165 = vmatmul.f32.gmra.mxu0 %v5958
    %v6166 = vpop.f32.mrf.mxu0
    %v6167 = vadd.f32 0.0, %v6166
    %6168 = vmatmul.f32.gmra.mxu0 %v5961
    %v6169 = vpop.f32.mrf.mxu0
    %v6170 = vadd.f32 0.0, %v6169
    %6171 = vmatmul.f32.gmra.mxu0 %v5964
    %v6172 = vpop.f32.mrf.mxu0
    %v6173 = vadd.f32 0.0, %v6172
    %6174 = vmatmul.f32.gmra.mxu0 %v5967
    %v6175 = vpop.f32.mrf.mxu0
    %v6176 = vadd.f32 0.0, %v6175
    %6177 = vmatmul.f32.gmra.mxu0 %v5970
    %v6178 = vpop.f32.mrf.mxu0
    %v6179 = vadd.f32 0.0, %v6178
    %6180 = vmatmul.f32.gmra.mxu0 %v5973
    %v6181 = vpop.f32.mrf.mxu0
    %v6182 = vadd.f32 0.0, %v6181
    %6183 = vmatmul.f32.gmra.mxu0 %v5976
    %v6184 = vpop.f32.mrf.mxu0
    %v6185 = vadd.f32 0.0, %v6184
    %6186 = vmatmul.f32.gmra.mxu0 %v5979
    %v6187 = vpop.f32.mrf.mxu0
    %v6188 = vadd.f32 0.0, %v6187
    %6189 = vmatmul.f32.gmra.mxu0 %v5982
    %v6190 = vpop.f32.mrf.mxu0
    %v6191 = vadd.f32 0.0, %v6190
    %6192 = vmatmul.f32.gmra.mxu0 %v5985
    %v6193 = vpop.f32.mrf.mxu0
    %v6194 = vadd.f32 0.0, %v6193
    %6195 = vmatmul.f32.gmra.mxu0 %v5988
    %v6196 = vpop.f32.mrf.mxu0
    %v6197 = vadd.f32 0.0, %v6196
    %6198 = vmatmul.f32.gmra.mxu0 %v5991
    %v6199 = vpop.f32.mrf.mxu0
    %v6200 = vadd.f32 0.0, %v6199
    %6201 = vmatmul.f32.gmra.mxu0 %v5994
    %v6202 = vpop.f32.mrf.mxu0
    %v6203 = vadd.f32 0.0, %v6202
    %6204 = vmatmul.f32.gmra.mxu0 %v5997
    %v6205 = vpop.f32.mrf.mxu0
    %v6206 = vadd.f32 0.0, %v6205
    %6207 = vmatmul.f32.gmra.mxu0 %v6000
    %v6208 = vpop.f32.mrf.mxu0
    %v6209 = vadd.f32 0.0, %v6208
    %6210 = vmatmul.f32.gmra.mxu0 %v6003
    %v6211 = vpop.f32.mrf.mxu0
    %v6212 = vadd.f32 0.0, %v6211
    %6213 = vmatmul.f32.gmra.mxu0 %v6006
    %v6214 = vpop.f32.mrf.mxu0
    %v6215 = vadd.f32 0.0, %v6214
    %6216 = vmatmul.f32.gmra.mxu0 %v6009
    %v6217 = vpop.f32.mrf.mxu0
    %v6218 = vadd.f32 0.0, %v6217
    %6219 = vmatmul.f32.gmra.mxu0 %v6012
    %v6220 = vpop.f32.mrf.mxu0
    %v6221 = vadd.f32 0.0, %v6220
    %6222 = vmatmul.f32.gmra.mxu0 %v6015
    %v6223 = vpop.f32.mrf.mxu0
    %v6224 = vadd.f32 0.0, %v6223
    %6225 = vmatmul.f32.gmra.mxu0 %v6018
    %v6226 = vpop.f32.mrf.mxu0
    %v6227 = vadd.f32 0.0, %v6226
    %6228 = vmatmul.f32.gmra.mxu0 %v6021
    %v6229 = vpop.f32.mrf.mxu0
    %v6230 = vadd.f32 0.0, %v6229
    %6231 = vmatmul.f32.gmra.mxu0 %v6024
    %v6232 = vpop.f32.mrf.mxu0
    %v6233 = vadd.f32 0.0, %v6232
    %6234 = vmatmul.f32.gmra.mxu0 %v6027
    %v6235 = vpop.f32.mrf.mxu0
    %v6236 = vadd.f32 0.0, %v6235
    %6237 = vmatmul.f32.gmra.mxu0 %v6030
    %v6238 = vpop.f32.mrf.mxu0
    %v6239 = vadd.f32 0.0, %v6238
    %6240 = vmatmul.f32.gmra.mxu0 %v6033
    %v6241 = vpop.f32.mrf.mxu0
    %v6242 = vadd.f32 0.0, %v6241
    %6243 = vmatmul.f32.gmra.mxu0 %v6036
    %v6244 = vpop.f32.mrf.mxu0
    %v6245 = vadd.f32 0.0, %v6244
    %6246 = vmatmul.f32.gmra.mxu0 %v6039
    %v6247 = vpop.f32.mrf.mxu0
    %v6248 = vadd.f32 0.0, %v6247
    %6249 = vmatmul.f32.gmra.mxu0 %v6042
    %v6250 = vpop.f32.mrf.mxu0
    %v6251 = vadd.f32 0.0, %v6250
    %6252 = vmatmul.f32.gmra.mxu0 %v6045
    %v6253 = vpop.f32.mrf.mxu0
    %v6254 = vadd.f32 0.0, %v6253
    %6255 = vmatmul.f32.gmra.mxu0 %v6048
    %v6256 = vpop.f32.mrf.mxu0
    %v6257 = vadd.f32 0.0, %v6256
    %6258 = vmatmul.f32.gmra.mxu0 %v6051
    %v6259 = vpop.f32.mrf.mxu0
    %v6260 = vadd.f32 0.0, %v6259
    %6261 = vmatmul.f32.gmra.mxu0 %v6054
    %v6262 = vpop.f32.mrf.mxu0
    %v6263 = vadd.f32 0.0, %v6262
    %6264 = vmatmul.f32.gmra.mxu0 %v6057
    %v6265 = vpop.f32.mrf.mxu0
    %v6266 = vadd.f32 0.0, %v6265
    %6267 = vmatmul.f32.gmra.mxu0 %v6060
    %v6268 = vpop.f32.mrf.mxu0
    %v6269 = vadd.f32 0.0, %v6268
    %6270 = vmatmul.f32.gmra.mxu0 %v6063
    %v6271 = vpop.f32.mrf.mxu0
    %v6272 = vadd.f32 0.0, %v6271
    %6273 = vmatmul.f32.gmra.mxu0 %v6066
    %v6274 = vpop.f32.mrf.mxu0
    %v6275 = vadd.f32 0.0, %v6274
    %6276 = vmatmul.f32.gmra.mxu0 %v6069
    %v6277 = vpop.f32.mrf.mxu0
    %v6278 = vadd.f32 0.0, %v6277
    %6279 = vmatmul.f32.gmra.mxu0 %v6072
    %v6280 = vpop.f32.mrf.mxu0
    %v6281 = vadd.f32 0.0, %v6280
    %6282 = vmatmul.f32.gmra.mxu0 %v6075
    %v6283 = vpop.f32.mrf.mxu0
    %v6284 = vadd.f32 0.0, %v6283
    %6285 = vmatmul.f32.gmra.mxu0 %v6078
    %v6286 = vpop.f32.mrf.mxu0
    %v6287 = vadd.f32 0.0, %v6286
    %6288 = vmatmul.f32.gmra.mxu0 %v6081
    %v6289 = vpop.f32.mrf.mxu0
    %v6290 = vadd.f32 0.0, %v6289
    %6291 = vmatmul.f32.gmra.mxu0 %v6084
    %v6292 = vpop.f32.mrf.mxu0
    %v6293 = vadd.f32 0.0, %v6292
    %6294 = vmatmul.f32.gmra.mxu0 %v6087
    %v6295 = vpop.f32.mrf.mxu0
    %v6296 = vadd.f32 0.0, %v6295
    %6297 = vdwg.mxu0
    %v6298 = vld [vmem:[%s5] sm:$0x1]
    %v6299 = vld [vmem:[%s6] sm:$0x1]
    %v6300 = vadd.f32 %v6107, %v6110
    %v6301 = vadd.f32 %v6300, %v6113
    %v6302 = vadd.f32 %v6301, %v6116
    %v6303 = vadd.f32 %v6302, %v6119
    %v6304 = vadd.f32 %v6303, %v6122
    %v6305 = vadd.f32 %v6304, %v6125
    %v6306 = vadd.f32 %v6305, %v6128
    %v6307 = vadd.f32 %v6306, %v6131
    %v6308 = vadd.f32 %v6307, %v6134
    %v6309 = vadd.f32 %v6308, %v6137
    %v6310 = vadd.f32 %v6309, %v6140
    %v6311 = vadd.f32 %v6310, %v6143
    %v6312 = vadd.f32 %v6311, %v6146
    %v6313 = vadd.f32 %v6312, %v6149
    %v6314 = vadd.f32 %v6313, %v6152
    %v6315 = vadd.f32 %v6314, %v6155
    %v6316 = vadd.f32 %v6315, %v6158
    %v6317 = vadd.f32 %v6316, %v6161
    %v6318 = vadd.f32 %v6317, %v6164
    %v6319 = vadd.f32 %v6318, %v6167
    %v6320 = vadd.f32 %v6319, %v6170
    %v6321 = vadd.f32 %v6320, %v6173
    %v6322 = vadd.f32 %v6321, %v6176
    %v6323 = vadd.f32 %v6322, %v6179
    %v6324 = vadd.f32 %v6323, %v6182
    %v6325 = vadd.f32 %v6324, %v6185
    %v6326 = vadd.f32 %v6325, %v6188
    %v6327 = vadd.f32 %v6326, %v6191
    %v6328 = vadd.f32 %v6327, %v6194
    %v6329 = vadd.f32 %v6328, %v6197
    %v6330 = vadd.f32 %v6329, %v6200
    %v6331 = vadd.f32 %v6330, %v6203
    %v6332 = vadd.f32 %v6331, %v6206
    %v6333 = vadd.f32 %v6332, %v6209
    %v6334 = vadd.f32 %v6333, %v6212
    %v6335 = vadd.f32 %v6334, %v6215
    %v6336 = vadd.f32 %v6335, %v6218
    %v6337 = vadd.f32 %v6336, %v6221
    %v6338 = vadd.f32 %v6337, %v6224
    %v6339 = vadd.f32 %v6338, %v6227
    %v6340 = vadd.f32 %v6339, %v6230
    %v6341 = vadd.f32 %v6340, %v6233
    %v6342 = vadd.f32 %v6341, %v6236
    %v6343 = vadd.f32 %v6342, %v6239
    %v6344 = vadd.f32 %v6343, %v6242
    %v6345 = vadd.f32 %v6344, %v6245
    %v6346 = vadd.f32 %v6345, %v6248
    %v6347 = vadd.f32 %v6346, %v6251
    %v6348 = vadd.f32 %v6347, %v6254
    %v6349 = vadd.f32 %v6348, %v6257
    %v6350 = vadd.f32 %v6349, %v6260
    %v6351 = vadd.f32 %v6350, %v6263
    %v6352 = vadd.f32 %v6351, %v6266
    %v6353 = vadd.f32 %v6352, %v6269
    %v6354 = vadd.f32 %v6353, %v6272
    %v6355 = vadd.f32 %v6354, %v6275
    %v6356 = vadd.f32 %v6355, %v6278
    %v6357 = vadd.f32 %v6356, %v6281
    %v6358 = vadd.f32 %v6357, %v6284
    %v6359 = vadd.f32 %v6358, %v6287
    %v6360 = vadd.f32 %v6359, %v6290
    %v6361 = vadd.f32 %v6360, %v6293
    %v6362 = vadd.f32 %v6361, %v6296
    %v6363 = vrot.slane %v6362, 4
    %v6364 = vadd.f32 %v6362, %v6363
    %v6365 = vrot.slane %v6364, 2
    %v6366 = vadd.f32 %v6364, %v6365
    %v6367 = vrot.slane %v6366, 1
    %v6368 = vadd.f32 %v6366, %v6367
    %v6369 = vmul.f32 %v6368, 0.001953125
    %v6370 = vmul.f32 %v6107, %v6107
    %v6371 = vmul.f32 %v6110, %v6110
    %v6372 = vmul.f32 %v6113, %v6113
    %v6373 = vmul.f32 %v6116, %v6116
    %v6374 = vmul.f32 %v6119, %v6119
    %v6375 = vmul.f32 %v6122, %v6122
    %v6376 = vmul.f32 %v6125, %v6125
    %v6377 = vmul.f32 %v6128, %v6128
    %v6378 = vmul.f32 %v6131, %v6131
    %v6379 = vmul.f32 %v6134, %v6134
    %v6380 = vmul.f32 %v6137, %v6137
    %v6381 = vmul.f32 %v6140, %v6140
    %v6382 = vmul.f32 %v6143, %v6143
    %v6383 = vmul.f32 %v6146, %v6146
    %v6384 = vmul.f32 %v6149, %v6149
    %v6385 = vmul.f32 %v6152, %v6152
    %v6386 = vmul.f32 %v6155, %v6155
    %v6387 = vmul.f32 %v6158, %v6158
    %v6388 = vmul.f32 %v6161, %v6161
    %v6389 = vmul.f32 %v6164, %v6164
    %v6390 = vmul.f32 %v6167, %v6167
    %v6391 = vmul.f32 %v6170, %v6170
    %v6392 = vmul.f32 %v6173, %v6173
    %v6393 = vmul.f32 %v6176, %v6176
    %v6394 = vmul.f32 %v6179, %v6179
    %v6395 = vmul.f32 %v6182, %v6182
    %v6396 = vmul.f32 %v6185, %v6185
    %v6397 = vmul.f32 %v6188, %v6188
    %v6398 = vmul.f32 %v6191, %v6191
    %v6399 = vmul.f32 %v6194, %v6194
    %v6400 = vmul.f32 %v6197, %v6197
    %v6401 = vmul.f32 %v6200, %v6200
    %v6402 = vmul.f32 %v6203, %v6203
    %v6403 = vmul.f32 %v6206, %v6206
    %v6404 = vmul.f32 %v6209, %v6209
    %v6405 = vmul.f32 %v6212, %v6212
    %v6406 = vmul.f32 %v6215, %v6215
    %v6407 = vmul.f32 %v6218, %v6218
    %v6408 = vmul.f32 %v6221, %v6221
    %v6409 = vmul.f32 %v6224, %v6224
    %v6410 = vmul.f32 %v6227, %v6227
    %v6411 = vmul.f32 %v6230, %v6230
    %v6412 = vmul.f32 %v6233, %v6233
    %v6413 = vmul.f32 %v6236, %v6236
    %v6414 = vmul.f32 %v6239, %v6239
    %v6415 = vmul.f32 %v6242, %v6242
    %v6416 = vmul.f32 %v6245, %v6245
    %v6417 = vmul.f32 %v6248, %v6248
    %v6418 = vmul.f32 %v6251, %v6251
    %v6419 = vmul.f32 %v6254, %v6254
    %v6420 = vmul.f32 %v6257, %v6257
    %v6421 = vmul.f32 %v6260, %v6260
    %v6422 = vmul.f32 %v6263, %v6263
    %v6423 = vmul.f32 %v6266, %v6266
    %v6424 = vmul.f32 %v6269, %v6269
    %v6425 = vmul.f32 %v6272, %v6272
    %v6426 = vmul.f32 %v6275, %v6275
    %v6427 = vmul.f32 %v6278, %v6278
    %v6428 = vmul.f32 %v6281, %v6281
    %v6429 = vmul.f32 %v6284, %v6284
    %v6430 = vmul.f32 %v6287, %v6287
    %v6431 = vmul.f32 %v6290, %v6290
    %v6432 = vmul.f32 %v6293, %v6293
    %v6433 = vmul.f32 %v6296, %v6296
    %v6434 = vadd.f32 %v6370, %v6371
    %v6435 = vadd.f32 %v6434, %v6372
    %v6436 = vadd.f32 %v6435, %v6373
    %v6437 = vadd.f32 %v6436, %v6374
    %v6438 = vadd.f32 %v6437, %v6375
    %v6439 = vadd.f32 %v6438, %v6376
    %v6440 = vadd.f32 %v6439, %v6377
    %v6441 = vadd.f32 %v6440, %v6378
    %v6442 = vadd.f32 %v6441, %v6379
    %v6443 = vadd.f32 %v6442, %v6380
    %v6444 = vadd.f32 %v6443, %v6381
    %v6445 = vadd.f32 %v6444, %v6382
    %v6446 = vadd.f32 %v6445, %v6383
    %v6447 = vadd.f32 %v6446, %v6384
    %v6448 = vadd.f32 %v6447, %v6385
    %v6449 = vadd.f32 %v6448, %v6386
    %v6450 = vadd.f32 %v6449, %v6387
    %v6451 = vadd.f32 %v6450, %v6388
    %v6452 = vadd.f32 %v6451, %v6389
    %v6453 = vadd.f32 %v6452, %v6390
    %v6454 = vadd.f32 %v6453, %v6391
    %v6455 = vadd.f32 %v6454, %v6392
    %v6456 = vadd.f32 %v6455, %v6393
    %v6457 = vadd.f32 %v6456, %v6394
    %v6458 = vadd.f32 %v6457, %v6395
    %v6459 = vadd.f32 %v6458, %v6396
    %v6460 = vadd.f32 %v6459, %v6397
    %v6461 = vadd.f32 %v6460, %v6398
    %v6462 = vadd.f32 %v6461, %v6399
    %v6463 = vadd.f32 %v6462, %v6400
    %v6464 = vadd.f32 %v6463, %v6401
    %v6465 = vadd.f32 %v6464, %v6402
    %v6466 = vadd.f32 %v6465, %v6403
    %v6467 = vadd.f32 %v6466, %v6404
    %v6468 = vadd.f32 %v6467, %v6405
    %v6469 = vadd.f32 %v6468, %v6406
    %v6470 = vadd.f32 %v6469, %v6407
    %v6471 = vadd.f32 %v6470, %v6408
    %v6472 = vadd.f32 %v6471, %v6409
    %v6473 = vadd.f32 %v6472, %v6410
    %v6474 = vadd.f32 %v6473, %v6411
    %v6475 = vadd.f32 %v6474, %v6412
    %v6476 = vadd.f32 %v6475, %v6413
    %v6477 = vadd.f32 %v6476, %v6414
    %v6478 = vadd.f32 %v6477, %v6415
    %v6479 = vadd.f32 %v6478, %v6416
    %v6480 = vadd.f32 %v6479, %v6417
    %v6481 = vadd.f32 %v6480, %v6418
    %v6482 = vadd.f32 %v6481, %v6419
    %v6483 = vadd.f32 %v6482, %v6420
    %v6484 = vadd.f32 %v6483, %v6421
    %v6485 = vadd.f32 %v6484, %v6422
    %v6486 = vadd.f32 %v6485, %v6423
    %v6487 = vadd.f32 %v6486, %v6424
    %v6488 = vadd.f32 %v6487, %v6425
    %v6489 = vadd.f32 %v6488, %v6426
    %v6490 = vadd.f32 %v6489, %v6427
    %v6491 = vadd.f32 %v6490, %v6428
    %v6492 = vadd.f32 %v6491, %v6429
    %v6493 = vadd.f32 %v6492, %v6430
    %v6494 = vadd.f32 %v6493, %v6431
    %v6495 = vadd.f32 %v6494, %v6432
    %v6496 = vadd.f32 %v6495, %v6433
    %v6497 = vrot.slane %v6496, 4
    %v6498 = vadd.f32 %v6496, %v6497
    %v6499 = vrot.slane %v6498, 2
    %v6500 = vadd.f32 %v6498, %v6499
    %v6501 = vrot.slane %v6500, 1
    %v6502 = vadd.f32 %v6500, %v6501
    %v6503 = vmul.f32 %v6502, 0.001953125
    %v6504 = vmul.f32 %v6369, %v6369
    %v6505 = vsub.f32 %v6503, %v6504
    %v6506 = vadd.f32 %v6505, 1e-05
    %v6507 = vrsqrt.pop %v6506
    %v6508 = vmul.f32 %v6507, %v6506
    %v6509 = vmul.f32 %v6508, %v6507
    %v6510 = vmul.f32 0.5, %v6509
    %v6511 = vsub.f32 1.5, %v6510
    %v6512 = vmul.f32 %v6507, %v6511
    %vm6513 = vweird.f32 %v6506
    %vm6514 = vweird.f32 %v6507
    %vm6515 = vmor %vm6513, %vm6514
    %v6516 = vsel %vm6515, %v6507, %v6512
    %v6517 = vmul.f32 %v6298, %v6516
    %v6519 = vperm.slane %v6517, 0
    %v6521 = vmul.f32 %v6107, %v6519
    %v6522 = vmul.f32 %v6110, %v6519
    %v6523 = vmul.f32 %v6113, %v6519
    %v6524 = vmul.f32 %v6116, %v6519
    %v6525 = vmul.f32 %v6119, %v6519
    %v6526 = vmul.f32 %v6122, %v6519
    %v6527 = vmul.f32 %v6125, %v6519
    %v6528 = vmul.f32 %v6128, %v6519
    %v6529 = vmul.f32 %v6131, %v6519
    %v6530 = vmul.f32 %v6134, %v6519
    %v6531 = vmul.f32 %v6137, %v6519
    %v6532 = vmul.f32 %v6140, %v6519
    %v6533 = vmul.f32 %v6143, %v6519
    %v6534 = vmul.f32 %v6146, %v6519
    %v6535 = vmul.f32 %v6149, %v6519
    %v6536 = vmul.f32 %v6152, %v6519
    %v6537 = vmul.f32 %v6155, %v6519
    %v6538 = vmul.f32 %v6158, %v6519
    %v6539 = vmul.f32 %v6161, %v6519
    %v6540 = vmul.f32 %v6164, %v6519
    %v6541 = vmul.f32 %v6167, %v6519
    %v6542 = vmul.f32 %v6170, %v6519
    %v6543 = vmul.f32 %v6173, %v6519
    %v6544 = vmul.f32 %v6176, %v6519
    %v6545 = vmul.f32 %v6179, %v6519
    %v6546 = vmul.f32 %v6182, %v6519
    %v6547 = vmul.f32 %v6185, %v6519
    %v6548 = vmul.f32 %v6188, %v6519
    %v6549 = vmul.f32 %v6191, %v6519
    %v6550 = vmul.f32 %v6194, %v6519
    %v6551 = vmul.f32 %v6197, %v6519
    %v6552 = vmul.f32 %v6200, %v6519
    %v6553 = vmul.f32 %v6203, %v6519
    %v6554 = vmul.f32 %v6206, %v6519
    %v6555 = vmul.f32 %v6209, %v6519
    %v6556 = vmul.f32 %v6212, %v6519
    %v6557 = vmul.f32 %v6215, %v6519
    %v6558 = vmul.f32 %v6218, %v6519
    %v6559 = vmul.f32 %v6221, %v6519
    %v6560 = vmul.f32 %v6224, %v6519
    %v6561 = vmul.f32 %v6227, %v6519
    %v6562 = vmul.f32 %v6230, %v6519
    %v6563 = vmul.f32 %v6233, %v6519
    %v6564 = vmul.f32 %v6236, %v6519
    %v6565 = vmul.f32 %v6239, %v6519
    %v6566 = vmul.f32 %v6242, %v6519
    %v6567 = vmul.f32 %v6245, %v6519
    %v6568 = vmul.f32 %v6248, %v6519
    %v6569 = vmul.f32 %v6251, %v6519
    %v6570 = vmul.f32 %v6254, %v6519
    %v6571 = vmul.f32 %v6257, %v6519
    %v6572 = vmul.f32 %v6260, %v6519
    %v6573 = vmul.f32 %v6263, %v6519
    %v6574 = vmul.f32 %v6266, %v6519
    %v6575 = vmul.f32 %v6269, %v6519
    %v6576 = vmul.f32 %v6272, %v6519
    %v6577 = vmul.f32 %v6275, %v6519
    %v6578 = vmul.f32 %v6278, %v6519
    %v6579 = vmul.f32 %v6281, %v6519
    %v6580 = vmul.f32 %v6284, %v6519
    %v6581 = vmul.f32 %v6287, %v6519
    %v6582 = vmul.f32 %v6290, %v6519
    %v6583 = vmul.f32 %v6293, %v6519
    %v6584 = vmul.f32 %v6296, %v6519
    %v6585 = vmul.f32 %v6369, %v6517
    %v6586 = vsub.f32 %v6299, %v6585
    %v6588 = vperm.slane %v6586, 0
    %v6590 = vadd.f32 %v6521, %v6588
    %v6591 = vadd.f32 %v6522, %v6588
    %v6592 = vadd.f32 %v6523, %v6588
    %v6593 = vadd.f32 %v6524, %v6588
    %v6594 = vadd.f32 %v6525, %v6588
    %v6595 = vadd.f32 %v6526, %v6588
    %v6596 = vadd.f32 %v6527, %v6588
    %v6597 = vadd.f32 %v6528, %v6588
    %v6598 = vadd.f32 %v6529, %v6588
    %v6599 = vadd.f32 %v6530, %v6588
    %v6600 = vadd.f32 %v6531, %v6588
    %v6601 = vadd.f32 %v6532, %v6588
    %v6602 = vadd.f32 %v6533, %v6588
    %v6603 = vadd.f32 %v6534, %v6588
    %v6604 = vadd.f32 %v6535, %v6588
    %v6605 = vadd.f32 %v6536, %v6588
    %v6606 = vadd.f32 %v6537, %v6588
    %v6607 = vadd.f32 %v6538, %v6588
    %v6608 = vadd.f32 %v6539, %v6588
    %v6609 = vadd.f32 %v6540, %v6588
    %v6610 = vadd.f32 %v6541, %v6588
    %v6611 = vadd.f32 %v6542, %v6588
    %v6612 = vadd.f32 %v6543, %v6588
    %v6613 = vadd.f32 %v6544, %v6588
    %v6614 = vadd.f32 %v6545, %v6588
    %v6615 = vadd.f32 %v6546, %v6588
    %v6616 = vadd.f32 %v6547, %v6588
    %v6617 = vadd.f32 %v6548, %v6588
    %v6618 = vadd.f32 %v6549, %v6588
    %v6619 = vadd.f32 %v6550, %v6588
    %v6620 = vadd.f32 %v6551, %v6588
    %v6621 = vadd.f32 %v6552, %v6588
    %v6622 = vadd.f32 %v6553, %v6588
    %v6623 = vadd.f32 %v6554, %v6588
    %v6624 = vadd.f32 %v6555, %v6588
    %v6625 = vadd.f32 %v6556, %v6588
    %v6626 = vadd.f32 %v6557, %v6588
    %v6627 = vadd.f32 %v6558, %v6588
    %v6628 = vadd.f32 %v6559, %v6588
    %v6629 = vadd.f32 %v6560, %v6588
    %v6630 = vadd.f32 %v6561, %v6588
    %v6631 = vadd.f32 %v6562, %v6588
    %v6632 = vadd.f32 %v6563, %v6588
    %v6633 = vadd.f32 %v6564, %v6588
    %v6634 = vadd.f32 %v6565, %v6588
    %v6635 = vadd.f32 %v6566, %v6588
    %v6636 = vadd.f32 %v6567, %v6588
    %v6637 = vadd.f32 %v6568, %v6588
    %v6638 = vadd.f32 %v6569, %v6588
    %v6639 = vadd.f32 %v6570, %v6588
    %v6640 = vadd.f32 %v6571, %v6588
    %v6641 = vadd.f32 %v6572, %v6588
    %v6642 = vadd.f32 %v6573, %v6588
    %v6643 = vadd.f32 %v6574, %v6588
    %v6644 = vadd.f32 %v6575, %v6588
    %v6645 = vadd.f32 %v6576, %v6588
    %v6646 = vadd.f32 %v6577, %v6588
    %v6647 = vadd.f32 %v6578, %v6588
    %v6648 = vadd.f32 %v6579, %v6588
    %v6649 = vadd.f32 %v6580, %v6588
    %v6650 = vadd.f32 %v6581, %v6588
    %v6651 = vadd.f32 %v6582, %v6588
    %v6652 = vadd.f32 %v6583, %v6588
    %v6653 = vadd.f32 %v6584, %v6588
    %v6654 = vsel %vm2092, %v27, 0.0
    %v6655 = vsel %vm2092, %v28, 0.0
    %v6656 = vsel %vm2092, %v29, 0.0
    %v6657 = vsel %vm2092, %v30, 0.0
    %v6658 = vsel %vm2092, %v31, 0.0
    %v6659 = vsel %vm2092, %v32, 0.0
    %v6660 = vsel %vm2092, %v33, 0.0
    %v6661 = vsel %vm2092, %v34, 0.0
    %v6662 = vsel %vm2092, %v35, 0.0
    %v6663 = vsel %vm2092, %v36, 0.0
    %v6664 = vsel %vm2092, %v37, 0.0
    %v6665 = vsel %vm2092, %v38, 0.0
    %v6666 = vsel %vm2092, %v39, 0.0
    %v6667 = vsel %vm2092, %v40, 0.0
    %v6668 = vsel %vm2092, %v41, 0.0
    %v6669 = vsel %vm2092, %v42, 0.0
    %v6670 = vsel %vm2092, %v43, 0.0
    %v6671 = vsel %vm2092, %v44, 0.0
    %v6672 = vsel %vm2092, %v45, 0.0
    %v6673 = vsel %vm2092, %v46, 0.0
    %v6674 = vsel %vm2092, %v47, 0.0
    %v6675 = vsel %vm2092, %v48, 0.0
    %v6676 = vsel %vm2092, %v49, 0.0
    %v6677 = vsel %vm2092, %v50, 0.0
    %v6678 = vsel %vm2092, %v51, 0.0
    %v6679 = vsel %vm2092, %v52, 0.0
    %v6680 = vsel %vm2092, %v53, 0.0
    %v6681 = vsel %vm2092, %v54, 0.0
    %v6682 = vsel %vm2092, %v55, 0.0
    %v6683 = vsel %vm2092, %v56, 0.0
    %v6684 = vsel %vm2092, %v57, 0.0
    %v6685 = vsel %vm2092, %v58, 0.0
    %v6686 = vsel %vm2092, %v59, 0.0
    %v6687 = vsel %vm2092, %v60, 0.0
    %v6688 = vsel %vm2092, %v61, 0.0
    %v6689 = vsel %vm2092, %v62, 0.0
    %v6690 = vsel %vm2092, %v63, 0.0
    %v6691 = vsel %vm2092, %v64, 0.0
    %v6692 = vsel %vm2092, %v65, 0.0
    %v6693 = vsel %vm2092, %v66, 0.0
    %v6694 = vsel %vm2092, %v67, 0.0
    %v6695 = vsel %vm2092, %v68, 0.0
    %v6696 = vsel %vm2092, %v69, 0.0
    %v6697 = vsel %vm2092, %v70, 0.0
    %v6698 = vsel %vm2092, %v71, 0.0
    %v6699 = vsel %vm2092, %v72, 0.0
    %v6700 = vsel %vm2092, %v73, 0.0
    %v6701 = vsel %vm2092, %v74, 0.0
    %v6702 = vsel %vm2092, %v75, 0.0
    %v6703 = vsel %vm2092, %v76, 0.0
    %v6704 = vsel %vm2092, %v77, 0.0
    %v6705 = vsel %vm2092, %v78, 0.0
    %v6706 = vsel %vm2092, %v79, 0.0
    %v6707 = vsel %vm2092, %v80, 0.0
    %v6708 = vsel %vm2092, %v81, 0.0
    %v6709 = vsel %vm2092, %v82, 0.0
    %v6710 = vsel %vm2092, %v83, 0.0
    %v6711 = vsel %vm2092, %v84, 0.0
    %v6712 = vsel %vm2092, %v85, 0.0
    %v6713 = vsel %vm2092, %v86, 0.0
    %v6714 = vsel %vm2092, %v87, 0.0
    %v6715 = vsel %vm2092, %v88, 0.0
    %v6716 = vsel %vm2092, %v89, 0.0
    %v6717 = vsel %vm2092, %v90, 0.0
    %v6718 = vadd.f32 %v6590, %v6654
    %v6719 = vadd.f32 %v6591, %v6655
    %v6720 = vadd.f32 %v6592, %v6656
    %v6721 = vadd.f32 %v6593, %v6657
    %v6722 = vadd.f32 %v6594, %v6658
    %v6723 = vadd.f32 %v6595, %v6659
    %v6724 = vadd.f32 %v6596, %v6660
    %v6725 = vadd.f32 %v6597, %v6661
    %v6726 = vadd.f32 %v6598, %v6662
    %v6727 = vadd.f32 %v6599, %v6663
    %v6728 = vadd.f32 %v6600, %v6664
    %v6729 = vadd.f32 %v6601, %v6665
    %v6730 = vadd.f32 %v6602, %v6666
    %v6731 = vadd.f32 %v6603, %v6667
    %v6732 = vadd.f32 %v6604, %v6668
    %v6733 = vadd.f32 %v6605, %v6669
    %v6734 = vadd.f32 %v6606, %v6670
    %v6735 = vadd.f32 %v6607, %v6671
    %v6736 = vadd.f32 %v6608, %v6672
    %v6737 = vadd.f32 %v6609, %v6673
    %v6738 = vadd.f32 %v6610, %v6674
    %v6739 = vadd.f32 %v6611, %v6675
    %v6740 = vadd.f32 %v6612, %v6676
    %v6741 = vadd.f32 %v6613, %v6677
    %v6742 = vadd.f32 %v6614, %v6678
    %v6743 = vadd.f32 %v6615, %v6679
    %v6744 = vadd.f32 %v6616, %v6680
    %v6745 = vadd.f32 %v6617, %v6681
    %v6746 = vadd.f32 %v6618, %v6682
    %v6747 = vadd.f32 %v6619, %v6683
    %v6748 = vadd.f32 %v6620, %v6684
    %v6749 = vadd.f32 %v6621, %v6685
    %v6750 = vadd.f32 %v6622, %v6686
    %v6751 = vadd.f32 %v6623, %v6687
    %v6752 = vadd.f32 %v6624, %v6688
    %v6753 = vadd.f32 %v6625, %v6689
    %v6754 = vadd.f32 %v6626, %v6690
    %v6755 = vadd.f32 %v6627, %v6691
    %v6756 = vadd.f32 %v6628, %v6692
    %v6757 = vadd.f32 %v6629, %v6693
    %v6758 = vadd.f32 %v6630, %v6694
    %v6759 = vadd.f32 %v6631, %v6695
    %v6760 = vadd.f32 %v6632, %v6696
    %v6761 = vadd.f32 %v6633, %v6697
    %v6762 = vadd.f32 %v6634, %v6698
    %v6763 = vadd.f32 %v6635, %v6699
    %v6764 = vadd.f32 %v6636, %v6700
    %v6765 = vadd.f32 %v6637, %v6701
    %v6766 = vadd.f32 %v6638, %v6702
    %v6767 = vadd.f32 %v6639, %v6703
    %v6768 = vadd.f32 %v6640, %v6704
    %v6769 = vadd.f32 %v6641, %v6705
    %v6770 = vadd.f32 %v6642, %v6706
    %v6771 = vadd.f32 %v6643, %v6707
    %v6772 = vadd.f32 %v6644, %v6708
    %v6773 = vadd.f32 %v6645, %v6709
    %v6774 = vadd.f32 %v6646, %v6710
    %v6775 = vadd.f32 %v6647, %v6711
    %v6776 = vadd.f32 %v6648, %v6712
    %v6777 = vadd.f32 %v6649, %v6713
    %v6778 = vadd.f32 %v6650, %v6714
    %v6779 = vadd.f32 %v6651, %v6715
    %v6780 = vadd.f32 %v6652, %v6716
    %v6781 = vadd.f32 %v6653, %v6717
    %v6782 = vmax.f32 %v6718, 0.0
    %v6783 = vmax.f32 %v6719, 0.0
    %v6784 = vmax.f32 %v6720, 0.0
    %v6785 = vmax.f32 %v6721, 0.0
    %v6786 = vmax.f32 %v6722, 0.0
    %v6787 = vmax.f32 %v6723, 0.0
    %v6788 = vmax.f32 %v6724, 0.0
    %v6789 = vmax.f32 %v6725, 0.0
    %v6790 = vmax.f32 %v6726, 0.0
    %v6791 = vmax.f32 %v6727, 0.0
    %v6792 = vmax.f32 %v6728, 0.0
    %v6793 = vmax.f32 %v6729, 0.0
    %v6794 = vmax.f32 %v6730, 0.0
    %v6795 = vmax.f32 %v6731, 0.0
    %v6796 = vmax.f32 %v6732, 0.0
    %v6797 = vmax.f32 %v6733, 0.0
    %v6798 = vmax.f32 %v6734, 0.0
    %v6799 = vmax.f32 %v6735, 0.0
    %v6800 = vmax.f32 %v6736, 0.0
    %v6801 = vmax.f32 %v6737, 0.0
    %v6802 = vmax.f32 %v6738, 0.0
    %v6803 = vmax.f32 %v6739, 0.0
    %v6804 = vmax.f32 %v6740, 0.0
    %v6805 = vmax.f32 %v6741, 0.0
    %v6806 = vmax.f32 %v6742, 0.0
    %v6807 = vmax.f32 %v6743, 0.0
    %v6808 = vmax.f32 %v6744, 0.0
    %v6809 = vmax.f32 %v6745, 0.0
    %v6810 = vmax.f32 %v6746, 0.0
    %v6811 = vmax.f32 %v6747, 0.0
    %v6812 = vmax.f32 %v6748, 0.0
    %v6813 = vmax.f32 %v6749, 0.0
    %v6814 = vmax.f32 %v6750, 0.0
    %v6815 = vmax.f32 %v6751, 0.0
    %v6816 = vmax.f32 %v6752, 0.0
    %v6817 = vmax.f32 %v6753, 0.0
    %v6818 = vmax.f32 %v6754, 0.0
    %v6819 = vmax.f32 %v6755, 0.0
    %v6820 = vmax.f32 %v6756, 0.0
    %v6821 = vmax.f32 %v6757, 0.0
    %v6822 = vmax.f32 %v6758, 0.0
    %v6823 = vmax.f32 %v6759, 0.0
    %v6824 = vmax.f32 %v6760, 0.0
    %v6825 = vmax.f32 %v6761, 0.0
    %v6826 = vmax.f32 %v6762, 0.0
    %v6827 = vmax.f32 %v6763, 0.0
    %v6828 = vmax.f32 %v6764, 0.0
    %v6829 = vmax.f32 %v6765, 0.0
    %v6830 = vmax.f32 %v6766, 0.0
    %v6831 = vmax.f32 %v6767, 0.0
    %v6832 = vmax.f32 %v6768, 0.0
    %v6833 = vmax.f32 %v6769, 0.0
    %v6834 = vmax.f32 %v6770, 0.0
    %v6835 = vmax.f32 %v6771, 0.0
    %v6836 = vmax.f32 %v6772, 0.0
    %v6837 = vmax.f32 %v6773, 0.0
    %v6838 = vmax.f32 %v6774, 0.0
    %v6839 = vmax.f32 %v6775, 0.0
    %v6840 = vmax.f32 %v6776, 0.0
    %v6841 = vmax.f32 %v6777, 0.0
    %v6842 = vmax.f32 %v6778, 0.0
    %v6843 = vmax.f32 %v6779, 0.0
    %v6844 = vmax.f32 %v6780, 0.0
    %v6845 = vmax.f32 %v6781, 0.0
    %6846 = vst [vmem:[#allocation2] sm:$0xff] %v6782
    %6847 = vst [vmem:[#allocation2 + $0x8] sm:$0xff] %v6783
    %6848 = vst [vmem:[#allocation2 + $0x10] sm:$0xff] %v6784
    %6849 = vst [vmem:[#allocation2 + $0x18] sm:$0xff] %v6785
    %6850 = vst [vmem:[#allocation2 + $0x20] sm:$0xff] %v6786
    %6851 = vst [vmem:[#allocation2 + $0x28] sm:$0xff] %v6787
    %6852 = vst [vmem:[#allocation2 + $0x30] sm:$0xff] %v6788
    %6853 = vst [vmem:[#allocation2 + $0x38] sm:$0xff] %v6789
    %6854 = vst [vmem:[#allocation2 + $0x40] sm:$0xff] %v6790
    %6855 = vst [vmem:[#allocation2 + $0x48] sm:$0xff] %v6791
    %6856 = vst [vmem:[#allocation2 + $0x50] sm:$0xff] %v6792
    %6857 = vst [vmem:[#allocation2 + $0x58] sm:$0xff] %v6793
    %6858 = vst [vmem:[#allocation2 + $0x60] sm:$0xff] %v6794
    %6859 = vst [vmem:[#allocation2 + $0x68] sm:$0xff] %v6795
    %6860 = vst [vmem:[#allocation2 + $0x70] sm:$0xff] %v6796
    %6861 = vst [vmem:[#allocation2 + $0x78] sm:$0xff] %v6797
    %6862 = vst [vmem:[#allocation2 + $0x80] sm:$0xff] %v6798
    %6863 = vst [vmem:[#allocation2 + $0x88] sm:$0xff] %v6799
    %6864 = vst [vmem:[#allocation2 + $0x90] sm:$0xff] %v6800
    %6865 = vst [vmem:[#allocation2 + $0x98] sm:$0xff] %v6801
    %6866 = vst [vmem:[#allocation2 + $0xa0] sm:$0xff] %v6802
    %6867 = vst [vmem:[#allocation2 + $0xa8] sm:$0xff] %v6803
    %6868 = vst [vmem:[#allocation2 + $0xb0] sm:$0xff] %v6804
    %6869 = vst [vmem:[#allocation2 + $0xb8] sm:$0xff] %v6805
    %6870 = vst [vmem:[#allocation2 + $0xc0] sm:$0xff] %v6806
    %6871 = vst [vmem:[#allocation2 + $0xc8] sm:$0xff] %v6807
    %6872 = vst [vmem:[#allocation2 + $0xd0] sm:$0xff] %v6808
    %6873 = vst [vmem:[#allocation2 + $0xd8] sm:$0xff] %v6809
    %6874 = vst [vmem:[#allocation2 + $0xe0] sm:$0xff] %v6810
    %6875 = vst [vmem:[#allocation2 + $0xe8] sm:$0xff] %v6811
    %6876 = vst [vmem:[#allocation2 + $0xf0] sm:$0xff] %v6812
    %6877 = vst [vmem:[#allocation2 + $0xf8] sm:$0xff] %v6813
    %6878 = vst [vmem:[#allocation2 + $0x100] sm:$0xff] %v6814
    %6879 = vst [vmem:[#allocation2 + $0x108] sm:$0xff] %v6815
    %6880 = vst [vmem:[#allocation2 + $0x110] sm:$0xff] %v6816
    %6881 = vst [vmem:[#allocation2 + $0x118] sm:$0xff] %v6817
    %6882 = vst [vmem:[#allocation2 + $0x120] sm:$0xff] %v6818
    %6883 = vst [vmem:[#allocation2 + $0x128] sm:$0xff] %v6819
    %6884 = vst [vmem:[#allocation2 + $0x130] sm:$0xff] %v6820
    %6885 = vst [vmem:[#allocation2 + $0x138] sm:$0xff] %v6821
    %6886 = vst [vmem:[#allocation2 + $0x140] sm:$0xff] %v6822
    %6887 = vst [vmem:[#allocation2 + $0x148] sm:$0xff] %v6823
    %6888 = vst [vmem:[#allocation2 + $0x150] sm:$0xff] %v6824
    %6889 = vst [vmem:[#allocation2 + $0x158] sm:$0xff] %v6825
    %6890 = vst [vmem:[#allocation2 + $0x160] sm:$0xff] %v6826
    %6891 = vst [vmem:[#allocation2 + $0x168] sm:$0xff] %v6827
    %6892 = vst [vmem:[#allocation2 + $0x170] sm:$0xff] %v6828
    %6893 = vst [vmem:[#allocation2 + $0x178] sm:$0xff] %v6829
    %6894 = vst [vmem:[#allocation2 + $0x180] sm:$0xff] %v6830
    %6895 = vst [vmem:[#allocation2 + $0x188] sm:$0xff] %v6831
    %6896 = vst [vmem:[#allocation2 + $0x190] sm:$0xff] %v6832
    %6897 = vst [vmem:[#allocation2 + $0x198] sm:$0xff] %v6833
    %6898 = vst [vmem:[#allocation2 + $0x1a0] sm:$0xff] %v6834
    %6899 = vst [vmem:[#allocation2 + $0x1a8] sm:$0xff] %v6835
    %6900 = vst [vmem:[#allocation2 + $0x1b0] sm:$0xff] %v6836
    %6901 = vst [vmem:[#allocation2 + $0x1b8] sm:$0xff] %v6837
    %6902 = vst [vmem:[#allocation2 + $0x1c0] sm:$0xff] %v6838
    %6903 = vst [vmem:[#allocation2 + $0x1c8] sm:$0xff] %v6839
    %6904 = vst [vmem:[#allocation2 + $0x1d0] sm:$0xff] %v6840
    %6905 = vst [vmem:[#allocation2 + $0x1d8] sm:$0xff] %v6841
    %6906 = vst [vmem:[#allocation2 + $0x1e0] sm:$0xff] %v6842
    %6907 = vst [vmem:[#allocation2 + $0x1e8] sm:$0xff] %v6843
    %6908 = vst [vmem:[#allocation2 + $0x1f0] sm:$0xff] %v6844
    %6909 = vst [vmem:[#allocation2 + $0x1f8] sm:$0xff] %v6845
    // Predicated region
    $region30: #{tpu_custom_call.1} parent=1 // pred_check
      _
    $region31: #{tpu_custom_call.1} parent=1 // pred_check_branch
      %6911 = sbr.rel (0) target = $region33
    $region32: #{tpu_custom_call.1} parent=1 // pred_region
      %6913 = vsyncadd [#allocation3], 0
      %s6914 = sshll.u32 [#allocation2], 4
      %s6915 = int_to_ptr.vmem [resolvable:$true] %s6914
      %s6916 = sshll.u32 %s7, 4
      %s6917 = int_to_ptr.hbm [resolvable:$true] %s6916
      %6922 = dma.vmem_to_hbm [thread:$0]  %s6915, 8192, %s6917, [#allocation3], 128, 128, 8
    $region33: #{tpu_custom_call.1} parent=1 // pred_fallthru
      _
    // Predicated region
    $region34: #{tpu_custom_call.1} parent=1 // pred_check
      _
    $region35: #{tpu_custom_call.1} parent=1 // pred_check_branch
      %6924 = sbr.rel (0) target = $region37
    $region36: #{tpu_custom_call.1} parent=1 // pred_region
      %6926 = dma.done [#allocation3], 8192
    $region37: #{tpu_custom_call.1} parent=1 // pred_fallthru
      _
    %6927 = vsyncpa [#allocation3], 1

</llo_original>
